<compile_context>
chip_gen: v6e
topology: v6e:2x2x1
jax: 0.10.0
libtpu: 0.0.40
codegen_flags: <defaults>
</compile_context>

<pallas_src>
import functools
import math

import jax
import jax.numpy as jnp
from jax.experimental import pallas as pl
from jax.experimental.pallas import tpu as pltpu


def _dilated_mha_kernel(x_ref, wq_ref, wk_ref, wv_ref, bq_ref, bk_ref, bv_ref,
                        wo_ref, bo_ref, o_ref, *, num_heads, head_dim,
                        seg_rows, block_segments, d_model):
    """Fused multi-head self-attention over `block_segments` dilated segments.

    x_ref:        (TB*S, W)  bf16 tile; only the first d_model lanes are used
                             (W == dilation_rate*d_model on the fused path).
    wq/wk/wv_ref: (D, D)     projection weights; 1/sqrt(hd) pre-folded into
                             wq/bq by the wrapper.
    bq/bk/bv_ref: (1, D)     projection biases.
    wo_ref:       (D, Dout)  output projection weight (Dout lane-dense).
    bo_ref:       (1, Dout)
    o_ref:        (TB*S, Dout) output tile.
    """
    H, hd, S, TB, D = num_heads, head_dim, seg_rows, block_segments, d_model
    cdt = x_ref.dtype  # MXU operand dtype (bf16 in the demo)

    # Fused dilation select: keep the first D lanes (no-op when W == D).
    x = x_ref[:, 0:D]                                            # (TB*S, D)

    def proj(w_ref, b_ref):
        y = jnp.dot(x, w_ref[...], preferred_element_type=jnp.float32)
        return (y + b_ref[...].astype(jnp.float32)).astype(cdt)

    q = proj(wq_ref, bq_ref)        # already scaled by 1/sqrt(hd)
    k = proj(wk_ref, bk_ref)
    v = proj(wv_ref, bv_ref)

    def split_heads(t):             # (TB*S, D) -> (TB*H, S, hd)
        t = t.reshape(TB, S, H, hd)
        t = jnp.swapaxes(t, 1, 2)   # (TB, H, S, hd)
        return t.reshape(TB * H, S, hd)
    # TODO(synk): the two head transposes are XLU relayouts; for large
    # head_dim / S consider pltpu.einshape or folding the merge into wo.

    qh, kh, vh = split_heads(q), split_heads(k), split_heads(v)

    # Head-batched attention: one batched matmul pair keeps the MXU fed.
    s = jnp.einsum("bqd,bkd->bqk", qh, kh,
                   preferred_element_type=jnp.float32)           # (TB*H,S,S) f32
    s = s - jnp.max(s, axis=-1, keepdims=True)
    p = jnp.exp(s)
    l = jnp.sum(p, axis=-1, keepdims=True)                       # (TB*H,S,1) f32
    ctx = jnp.einsum("bqk,bkd->bqd", p.astype(cdt), vh,
                     preferred_element_type=jnp.float32)         # (TB*H,S,hd)
    ctx = ctx * pl.reciprocal(l, approx=True)                    # EUP slot

    # Merge heads: (TB*H, S, hd) -> (TB*S, D).
    ctx = jnp.swapaxes(ctx.reshape(TB, H, S, hd), 1, 2).reshape(TB * S, D)

    # Output projection (bf16 operands, f32 accumulate), lane-dense store.
    out = jnp.dot(ctx.astype(cdt), wo_ref[...],
                  preferred_element_type=jnp.float32)
    out = out + bo_ref[...].astype(jnp.float32)
    o_ref[...] = out.astype(o_ref.dtype)


def _vmem_limit_bytes():
    """~75% of physical VMEM: ~96 MiB on v5e/v6e (128 MiB), ~48 MiB on v7x."""
    cap = 64 * 1024 * 1024
    try:
        info = pltpu.get_tpu_info()
        cap = getattr(info, "vmem_capacity_bytes", None) or cap
    except Exception:
        pass
    return min(int(cap) * 3 // 4, 100 * 1024 * 1024)


def _pick_block_segments(num_segments, seg_rows, d_model, d_out, num_heads,
                         in_width, vmem_budget_bytes):
    """Pick how many dilated segments to process per grid step (VMEM-aware)."""
    S = seg_rows

    def footprint(tb):
        r = tb * S
        x_pipe = 2 * r * in_width * 2            # double-buffered bf16 input
        o_pipe = 2 * r * d_out * 2               # double-buffered bf16 output
        qkv = 3 * r * d_model * 2                # bf16 q/k/v
        scores = 2 * tb * num_heads * S * S * 4  # f32 scores + exp(scores)
        ctx = r * d_model * 4 + r * d_out * 4    # f32 ctx + f32 out
        return x_pipe + o_pipe + qkv + scores + ctx

    weights = (3 * d_model * d_model + d_model * d_out) * 2 + 8 * d_out
    budget = max(vmem_budget_bytes - weights, vmem_budget_bytes // 4)

    divisors = [d for d in range(1, num_segments + 1) if num_segments % d == 0]
    # bf16 sublane packing: row block a multiple of 16 unless it spans all rows.
    legal = [d for d in divisors if (d * S) % 16 == 0 or d == num_segments]
    if not legal:
        legal = [num_segments]
    fitting = [d for d in legal if footprint(d) <= budget]
    if not fitting:
        return min(legal)
    best = max(fitting)
    # Megacore (v7x): prefer an even number of grid steps if the tile stays
    # within 2x of the largest fitting one.
    even = [d for d in fitting
            if (num_segments // d) % 2 == 0 and 2 * d >= best]
    return max(even) if even else best


def mha_pallas(xr, wq, wk, wv, bq, bk, bv, wo, bo, *, num_heads, d_model,
               num_segments, seg_rows):
    """xr: (num_segments*seg_rows, W) -> (num_segments*seg_rows, Dout)."""
    rows_total, W = xr.shape
    D = d_model
    d_out = wo.shape[1]

    vmem_limit = _vmem_limit_bytes()
    TB = _pick_block_segments(num_segments, seg_rows, D, d_out, num_heads, W,
                              vmem_limit)
    R = TB * seg_rows

    kernel = functools.partial(
        _dilated_mha_kernel, num_heads=num_heads, head_dim=D // num_heads,
        seg_rows=seg_rows, block_segments=TB, d_model=D)

    # Grid-invariant weights/biases: whole array resident in VMEM (one DMA,
    # single-buffered) instead of double-buffered pipeline blocks.
    wspec = pl.BlockSpec(memory_space=pltpu.MemorySpace.VMEM)

    return pl.pallas_call(
        kernel,
        out_shape=jax.ShapeDtypeStruct((rows_total, d_out), xr.dtype),
        grid=(num_segments // TB,),
        in_specs=[pl.BlockSpec((R, W), lambda i: (i, 0))] + [wspec] * 8,
        out_specs=pl.BlockSpec((R, d_out), lambda i: (i, 0)),
        compiler_params=pltpu.CompilerParams(
            dimension_semantics=("parallel",),
            vmem_limit_bytes=vmem_limit),
    )(xr, wq, wk, wv, bq, bk, bv, wo, bo)


def dilated_attention_forward(x, params, *, segment_size, dilation_rate,
                              num_heads):
    """Forward pass of DilatedAttention (default flags).

    x: (B, seq_len, d_model) -> (B, (seq_len//segment_size) *
                                    ceil(segment_size/dilation_rate), d_model)
    """
    B, seq_len, D = x.shape
    assert seq_len % segment_size == 0
    n_seg = seq_len // segment_size
    BG = B * n_seg

    if segment_size % dilation_rate == 0:
        # Fuse the dilation into the kernel load: contiguous (free) reshape so
        # column block [0:D] of each row is the dilated selection.
        s_sparse = segment_size // dilation_rate
        xr = x.reshape(BG * s_sparse, dilation_rate * D)
    else:
        # Fallback: materialize the strided slice in XLA (rare path).
        xs = x.reshape(B, n_seg, segment_size, D)[:, :, ::dilation_rate, :]
        s_sparse = xs.shape[2]
        xr = xs.reshape(BG * s_sparse, D)

    # --- One-time weight-side transforms (tiny tensors, outside the kernel) --
    wqkv, bqkv, wo, bo = (params["wqkv"], params["bqkv"],
                          params["wo"], params["bo"])
    hd = D // num_heads
    scale = 1.0 / math.sqrt(hd)
    # Fold 1/sqrt(head_dim) into the Q projection (weight-side).
    wq = (wqkv[:, 0:D].astype(jnp.float32) * scale).astype(wqkv.dtype)
    bq = (bqkv[:, 0:D].astype(jnp.float32) * scale).astype(bqkv.dtype)
    wk, bk = wqkv[:, D:2 * D], bqkv[:, D:2 * D]
    wv, bv = wqkv[:, 2 * D:3 * D], bqkv[:, 2 * D:3 * D]

    # Lane-dense output path: pad the output projection to 128 lanes when
    # d_model < 128 (zero columns, sliced off below).
    d_out = 128 if D < 128 else D
    if d_out != D:
        wo_k = jnp.pad(wo, ((0, 0), (0, d_out - D)))
        bo_k = jnp.pad(bo, ((0, 0), (0, d_out - D)))
    else:
        wo_k, bo_k = wo, bo

    attn = mha_pallas(xr, wq, wk, wv, bq, bk, bv, wo_k, bo_k,
                      num_heads=num_heads, d_model=D, num_segments=BG,
                      seg_rows=s_sparse)
    if d_out != D:
        attn = attn[:, :D]
    # dropout p=0.0 -> identity; casual/use_rel_pos_bias/use_xpos are False.
    return attn.reshape(B, n_seg * s_sparse, D)


def _reference_forward(x, params, *, segment_size, dilation_rate, num_heads):
    """Pure-JAX reference (f32) for correctness checking."""
    B, S, D = x.shape
    hd = D // num_heads
    n_seg = S // segment_size
    xs = x.astype(jnp.float32).reshape(B, n_seg, segment_size, D)
    xs = xs[:, :, ::dilation_rate, :]
    s_sparse = xs.shape[2]
    xr = xs.reshape(B * n_seg, s_sparse, D)
    qkv = (xr @ params["wqkv"].astype(jnp.float32)
           + params["bqkv"].astype(jnp.float32))
    q, k, v = jnp.split(qkv, 3, axis=-1)

    def split_heads(t):  # (BG, S, D) -> (BG, H, S, hd)
        return t.reshape(t.shape[0], t.shape[1], num_heads, hd).transpose(0, 2, 1, 3)

    qh, kh, vh = split_heads(q), split_heads(k), split_heads(v)
    s = jnp.einsum("bhqd,bhkd->bhqk", qh, kh) / math.sqrt(hd)
    p = jax.nn.softmax(s, axis=-1)
    ctx = jnp.einsum("bhqk,bhkd->bhqd", p, vh).transpose(0, 2, 1, 3)
    ctx = ctx.reshape(B * n_seg, s_sparse, D)
    out = ctx @ params["wo"].astype(jnp.float32) + params["bo"].astype(jnp.float32)
    return out.reshape(B, n_seg * s_sparse, D)


def init_params(key, d_model, dtype):
    """Deterministic init of FlashMHA-equivalent parameters."""
    k1, k2, k3, k4 = jax.random.split(key, 4)
    bound = 1.0 / math.sqrt(d_model)
    wqkv = jax.random.uniform(k1, (d_model, 3 * d_model), jnp.float32,
                              -bound, bound).astype(dtype)
    bqkv = jax.random.uniform(k2, (1, 3 * d_model), jnp.float32,
                              -bound, bound).astype(dtype)
    wo = jax.random.uniform(k3, (d_model, d_model), jnp.float32,
                            -bound, bound).astype(dtype)
    bo = jax.random.uniform(k4, (1, d_model), jnp.float32,
                            -bound, bound).astype(dtype)
    return {"wqkv": wqkv, "bqkv": bqkv, "wo": wo, "bo": bo}


if __name__ == "__main__":
    # Small config consistent with the module:
    #   d_model=64, num_heads=4, dilation_rate=2, segment_size=16
    #   input x: (batch=2, seq_len=64, d_model=64)
    d_model, num_heads = 64, 4
    dilation_rate, segment_size = 2, 16
    batch, seq_len = 2, 64
    dtype = jnp.bfloat16  # torch fp16 -> TPU bf16

    key = jax.random.PRNGKey(0)
    kx, kp = jax.random.split(key)
    x = jax.random.normal(kx, (batch, seq_len, d_model), jnp.float32).astype(dtype)
    params = init_params(kp, d_model, dtype)

    out = dilated_attention_forward(
        x, params, segment_size=segment_size,
        dilation_rate=dilation_rate, num_heads=num_heads)
    out = jax.block_until_ready(out)

    s_sparse = -(-segment_size // dilation_rate)
    expected_seq = (seq_len // segment_size) * s_sparse
    assert out.shape == (batch, expected_seq, d_model), out.shape

    ref = _reference_forward(
        x, params, segment_size=segment_size,
        dilation_rate=dilation_rate, num_heads=num_heads)
    # bf16 MXU operands + approx reciprocal change results at the bf16
    # rounding level; 5e-2 absolute is comfortably above that.
    err = float(jnp.max(jnp.abs(out.astype(jnp.float32) - ref)))
    assert err < 5e-2, f"max abs err {err}"

    print("KERNEL_OK")
</pallas_src>

<mosaic_0001>
module attributes {stable_mosaic.version = 11 : i64} {
  func.func @_dilated_mha_kernel(%arg0: i32, %arg1: memref<32x128xbf16, #tpu.memory_space<vmem>>, %arg2: memref<64x64xbf16, #tpu.memory_space<vmem>>, %arg3: memref<64x64xbf16, #tpu.memory_space<vmem>>, %arg4: memref<64x64xbf16, #tpu.memory_space<vmem>>, %arg5: memref<1x64xbf16, #tpu.memory_space<vmem>>, %arg6: memref<1x64xbf16, #tpu.memory_space<vmem>>, %arg7: memref<1x64xbf16, #tpu.memory_space<vmem>>, %arg8: memref<64x128xbf16, #tpu.memory_space<vmem>>, %arg9: memref<1x128xbf16, #tpu.memory_space<vmem>>, %arg10: memref<32x128xbf16, #tpu.memory_space<vmem>>) attributes {dimension_semantics = [#tpu.dimension_semantics<parallel>], iteration_bounds = array<i64: 2>, scalar_prefetch = 0 : i64, scratch_operands = 0 : i64, tpu.core_type = #tpu.core_type<tc>, window_params = [{transform_indices = @transform_0, window_bounds = array<i64: 32, 128>}, {pipeline_mode = #tpu.pipeline_mode<synchronous>, transform_indices = @transform_1, window_bounds = array<i64: 64, 64>}, {pipeline_mode = #tpu.pipeline_mode<synchronous>, transform_indices = @transform_2, window_bounds = array<i64: 64, 64>}, {pipeline_mode = #tpu.pipeline_mode<synchronous>, transform_indices = @transform_3, window_bounds = array<i64: 64, 64>}, {pipeline_mode = #tpu.pipeline_mode<synchronous>, transform_indices = @transform_4, window_bounds = array<i64: 1, 64>}, {pipeline_mode = #tpu.pipeline_mode<synchronous>, transform_indices = @transform_5, window_bounds = array<i64: 1, 64>}, {pipeline_mode = #tpu.pipeline_mode<synchronous>, transform_indices = @transform_6, window_bounds = array<i64: 1, 64>}, {pipeline_mode = #tpu.pipeline_mode<synchronous>, transform_indices = @transform_7, window_bounds = array<i64: 64, 128>}, {pipeline_mode = #tpu.pipeline_mode<synchronous>, transform_indices = @transform_8, window_bounds = array<i64: 1, 128>}, {transform_indices = @transform_9, window_bounds = array<i64: 32, 128>}]} {
    %c0 = arith.constant 0 : index
    %c0_0 = arith.constant 0 : index
    %0 = vector.load %arg1[%c0, %c0_0] : memref<32x128xbf16, #tpu.memory_space<vmem>>, vector<32x64xbf16>
    %c0_1 = arith.constant 0 : index
    %c0_2 = arith.constant 0 : index
    %1 = vector.load %arg2[%c0_1, %c0_2] : memref<64x64xbf16, #tpu.memory_space<vmem>>, vector<64x64xbf16>
    %cst = arith.constant dense<0.000000e+00> : vector<32x64xf32>
    %2 = tpu.matmul %0, %1, %cst {dimension_numbers = #tpu.dot_dimension_numbers<[1], [0], [0], [1], [0, 0, 1, 1], [], []>} : vector<32x64xbf16>, vector<64x64xbf16>, vector<32x64xf32> -> vector<32x64xf32>
    %c0_3 = arith.constant 0 : index
    %c0_4 = arith.constant 0 : index
    %3 = vector.load %arg5[%c0_3, %c0_4] : memref<1x64xbf16, #tpu.memory_space<vmem>>, vector<1x64xbf16>
    %4 = arith.extf %3 : vector<1x64xbf16> to vector<1x64xf32>
    %5 = vector.broadcast %4 : vector<1x64xf32> to vector<32x64xf32>
    %6 = arith.addf %2, %5 : vector<32x64xf32>
    %7 = arith.truncf %6 : vector<32x64xf32> to vector<32x64xbf16>
    %c0_5 = arith.constant 0 : index
    %c0_6 = arith.constant 0 : index
    %8 = vector.load %arg3[%c0_5, %c0_6] : memref<64x64xbf16, #tpu.memory_space<vmem>>, vector<64x64xbf16>
    %cst_7 = arith.constant dense<0.000000e+00> : vector<32x64xf32>
    %9 = tpu.matmul %0, %8, %cst_7 {dimension_numbers = #tpu.dot_dimension_numbers<[1], [0], [0], [1], [0, 0, 1, 1], [], []>} : vector<32x64xbf16>, vector<64x64xbf16>, vector<32x64xf32> -> vector<32x64xf32>
    %c0_8 = arith.constant 0 : index
    %c0_9 = arith.constant 0 : index
    %10 = vector.load %arg6[%c0_8, %c0_9] : memref<1x64xbf16, #tpu.memory_space<vmem>>, vector<1x64xbf16>
    %11 = arith.extf %10 : vector<1x64xbf16> to vector<1x64xf32>
    %12 = vector.broadcast %11 : vector<1x64xf32> to vector<32x64xf32>
    %13 = arith.addf %9, %12 : vector<32x64xf32>
    %14 = arith.truncf %13 : vector<32x64xf32> to vector<32x64xbf16>
    %c0_10 = arith.constant 0 : index
    %c0_11 = arith.constant 0 : index
    %15 = vector.load %arg4[%c0_10, %c0_11] : memref<64x64xbf16, #tpu.memory_space<vmem>>, vector<64x64xbf16>
    %cst_12 = arith.constant dense<0.000000e+00> : vector<32x64xf32>
    %16 = tpu.matmul %0, %15, %cst_12 {dimension_numbers = #tpu.dot_dimension_numbers<[1], [0], [0], [1], [0, 0, 1, 1], [], []>} : vector<32x64xbf16>, vector<64x64xbf16>, vector<32x64xf32> -> vector<32x64xf32>
    %c0_13 = arith.constant 0 : index
    %c0_14 = arith.constant 0 : index
    %17 = vector.load %arg7[%c0_13, %c0_14] : memref<1x64xbf16, #tpu.memory_space<vmem>>, vector<1x64xbf16>
    %18 = arith.extf %17 : vector<1x64xbf16> to vector<1x64xf32>
    %19 = vector.broadcast %18 : vector<1x64xf32> to vector<32x64xf32>
    %20 = arith.addf %16, %19 : vector<32x64xf32>
    %21 = arith.truncf %20 : vector<32x64xf32> to vector<32x64xbf16>
    %22 = vector.shape_cast %7 : vector<32x64xbf16> to vector<4x8x4x16xbf16>
    %23 = tpu.transpose %22, [0, 2, 1, 3] : vector<4x8x4x16xbf16> -> vector<4x4x8x16xbf16>
    %24 = vector.shape_cast %23 : vector<4x4x8x16xbf16> to vector<16x8x16xbf16>
    %25 = vector.shape_cast %14 : vector<32x64xbf16> to vector<4x8x4x16xbf16>
    %26 = tpu.transpose %25, [0, 2, 1, 3] : vector<4x8x4x16xbf16> -> vector<4x4x8x16xbf16>
    %27 = vector.shape_cast %26 : vector<4x4x8x16xbf16> to vector<16x8x16xbf16>
    %28 = vector.shape_cast %21 : vector<32x64xbf16> to vector<4x8x4x16xbf16>
    %29 = tpu.transpose %28, [0, 2, 1, 3] : vector<4x8x4x16xbf16> -> vector<4x4x8x16xbf16>
    %30 = vector.shape_cast %29 : vector<4x4x8x16xbf16> to vector<16x8x16xbf16>
    "tpu.trace_start"() <{level = 10 : i32, message = "bqd,bkd->bqk"}> : () -> ()
    %cst_15 = arith.constant dense<0.000000e+00> : vector<16x8x8xf32>
    %31 = tpu.matmul %24, %27, %cst_15 {dimension_numbers = #tpu.dot_dimension_numbers<[2], [2], [1], [1], [0, 0, 0, 1, 1, 1], [0], [0]>} : vector<16x8x16xbf16>, vector<16x8x16xbf16>, vector<16x8x8xf32> -> vector<16x8x8xf32>
    "tpu.trace_stop"() : () -> ()
    %cst_16 = arith.constant dense<0xFF800000> : vector<16x8xf32>
    %32 = vector.multi_reduction <maximumf>, %31, %cst_16 [2] : vector<16x8x8xf32> to vector<16x8xf32>
    %33 = vector.shape_cast %32 : vector<16x8xf32> to vector<16x8x1xf32>
    %34 = vector.broadcast %33 : vector<16x8x1xf32> to vector<16x8x8xf32>
    %35 = arith.subf %31, %34 : vector<16x8x8xf32>
    %36 = math.exp %35 : vector<16x8x8xf32>
    %cst_17 = arith.constant dense<0.000000e+00> : vector<16x8xf32>
    %37 = vector.multi_reduction <add>, %36, %cst_17 [2] : vector<16x8x8xf32> to vector<16x8xf32>
    %38 = vector.shape_cast %37 : vector<16x8xf32> to vector<16x8x1xf32>
    %39 = arith.truncf %36 : vector<16x8x8xf32> to vector<16x8x8xbf16>
    "tpu.trace_start"() <{level = 10 : i32, message = "bqk,bkd->bqd"}> : () -> ()
    %cst_18 = arith.constant dense<0.000000e+00> : vector<16x8x16xf32>
    %40 = tpu.matmul %39, %30, %cst_18 {dimension_numbers = #tpu.dot_dimension_numbers<[2], [1], [1], [2], [0, 0, 0, 1, 1, 2], [0], [0]>} : vector<16x8x8xbf16>, vector<16x8x16xbf16>, vector<16x8x16xf32> -> vector<16x8x16xf32>
    "tpu.trace_stop"() : () -> ()
    %41 = tpu.reciprocal %38 {approx = true} : vector<16x8x1xf32> -> vector<16x8x1xf32>
    %42 = vector.broadcast %41 : vector<16x8x1xf32> to vector<16x8x16xf32>
    %43 = arith.mulf %40, %42 : vector<16x8x16xf32>
    %44 = vector.shape_cast %43 : vector<16x8x16xf32> to vector<4x4x8x16xf32>
    %45 = tpu.transpose %44, [0, 2, 1, 3] : vector<4x4x8x16xf32> -> vector<4x8x4x16xf32>
    %46 = vector.shape_cast %45 : vector<4x8x4x16xf32> to vector<32x64xf32>
    %47 = arith.truncf %46 : vector<32x64xf32> to vector<32x64xbf16>
    %c0_19 = arith.constant 0 : index
    %c0_20 = arith.constant 0 : index
    %48 = vector.load %arg8[%c0_19, %c0_20] : memref<64x128xbf16, #tpu.memory_space<vmem>>, vector<64x128xbf16>
    %cst_21 = arith.constant dense<0.000000e+00> : vector<32x128xf32>
    %49 = tpu.matmul %47, %48, %cst_21 {dimension_numbers = #tpu.dot_dimension_numbers<[1], [0], [0], [1], [0, 0, 1, 1], [], []>} : vector<32x64xbf16>, vector<64x128xbf16>, vector<32x128xf32> -> vector<32x128xf32>
    %c0_22 = arith.constant 0 : index
    %c0_23 = arith.constant 0 : index
    %50 = vector.load %arg9[%c0_22, %c0_23] : memref<1x128xbf16, #tpu.memory_space<vmem>>, vector<1x128xbf16>
    %51 = arith.extf %50 : vector<1x128xbf16> to vector<1x128xf32>
    %52 = vector.broadcast %51 : vector<1x128xf32> to vector<32x128xf32>
    %53 = arith.addf %49, %52 : vector<32x128xf32>
    %54 = arith.truncf %53 : vector<32x128xf32> to vector<32x128xbf16>
    %c0_24 = arith.constant 0 : index
    %c0_25 = arith.constant 0 : index
    %55 = vector.load %arg10[%c0_24, %c0_25] : memref<32x128xbf16, #tpu.memory_space<vmem>>, vector<32x128xbf16>
    tpu.vector_store %arg10[%c0_24, %c0_25], %54 {strides = array<i32>} : memref<32x128xbf16, #tpu.memory_space<vmem>>, vector<32x128xbf16>,
    return
  }
  func.func @transform_0(%arg0: i32) -> (i32, i32) {
    %c0_i32 = arith.constant 0 : i32
    %c0_i32_0 = arith.constant 0 : i32
    return %arg0, %c0_i32 : i32, i32
  }
  func.func @transform_1(%arg0: i32) -> (i32, i32) {
    %c0_i32 = arith.constant 0 : i32
    %c0_i32_0 = arith.constant 0 : i32
    %c0_i32_1 = arith.constant 0 : i32
    return %c0_i32, %c0_i32_0 : i32, i32
  }
  func.func @transform_2(%arg0: i32) -> (i32, i32) {
    %c0_i32 = arith.constant 0 : i32
    %c0_i32_0 = arith.constant 0 : i32
    %c0_i32_1 = arith.constant 0 : i32
    return %c0_i32, %c0_i32_0 : i32, i32
  }
  func.func @transform_3(%arg0: i32) -> (i32, i32) {
    %c0_i32 = arith.constant 0 : i32
    %c0_i32_0 = arith.constant 0 : i32
    %c0_i32_1 = arith.constant 0 : i32
    return %c0_i32, %c0_i32_0 : i32, i32
  }
  func.func @transform_4(%arg0: i32) -> (i32, i32) {
    %c0_i32 = arith.constant 0 : i32
    %c0_i32_0 = arith.constant 0 : i32
    %c0_i32_1 = arith.constant 0 : i32
    return %c0_i32, %c0_i32_0 : i32, i32
  }
  func.func @transform_5(%arg0: i32) -> (i32, i32) {
    %c0_i32 = arith.constant 0 : i32
    %c0_i32_0 = arith.constant 0 : i32
    %c0_i32_1 = arith.constant 0 : i32
    return %c0_i32, %c0_i32_0 : i32, i32
  }
  func.func @transform_6(%arg0: i32) -> (i32, i32) {
    %c0_i32 = arith.constant 0 : i32
    %c0_i32_0 = arith.constant 0 : i32
    %c0_i32_1 = arith.constant 0 : i32
    return %c0_i32, %c0_i32_0 : i32, i32
  }
  func.func @transform_7(%arg0: i32) -> (i32, i32) {
    %c0_i32 = arith.constant 0 : i32
    %c0_i32_0 = arith.constant 0 : i32
    %c0_i32_1 = arith.constant 0 : i32
    return %c0_i32, %c0_i32_0 : i32, i32
  }
  func.func @transform_8(%arg0: i32) -> (i32, i32) {
    %c0_i32 = arith.constant 0 : i32
    %c0_i32_0 = arith.constant 0 : i32
    %c0_i32_1 = arith.constant 0 : i32
    return %c0_i32, %c0_i32_0 : i32, i32
  }
  func.func @transform_9(%arg0: i32) -> (i32, i32) {
    %c0_i32 = arith.constant 0 : i32
    %c0_i32_0 = arith.constant 0 : i32
    return %arg0, %c0_i32 : i32, i32
  }
}

</mosaic_0001>

<llo_original>
// kernel: tpu_custom_call.1
$region0: #{tpu_custom_call.1}
  #allocation0 [shape = 'u32[]', space=smem, size = 0x4, offset = 0x4, fixed_abs, tag = 'smem constant byte address 0x4 - core index']
  #allocation1 [shape = 'u32[144,128]{1,0:T(1,128)}', space=vmem, size = 0x12000, scoped, tag = 'internal scratch']
  %s0 = inlined_call_operand.hbm [shape: bf16[64,128], index: 0, kind: input, shape index: {}]
  %s1 = inlined_call_operand.hbm [shape: bf16[64,64], index: 1, kind: input, shape index: {}]
  %s2 = inlined_call_operand.hbm [shape: bf16[64,64], index: 2, kind: input, shape index: {}]
  %s3 = inlined_call_operand.hbm [shape: bf16[64,64], index: 3, kind: input, shape index: {}]
  %s4 = inlined_call_operand.vmem [shape: bf16[1,64], index: 4, kind: input, shape index: {}]
  %s5 = inlined_call_operand.vmem [shape: bf16[1,64], index: 5, kind: input, shape index: {}]
  %s6 = inlined_call_operand.vmem [shape: bf16[1,64], index: 6, kind: input, shape index: {}]
  %s7 = inlined_call_operand.hbm [shape: bf16[64,128], index: 7, kind: input, shape index: {}]
  %s8 = inlined_call_operand.vmem [shape: bf16[1,128], index: 8, kind: input, shape index: {}]
  %s9 = inlined_call_operand.hbm [shape: bf16[64,128], index: 9, kind: output, shape index: {}]
  %s10 = sld [smem:[#allocation0]]
  $region89: #{tpu_custom_call.1} parent=0
    _
  %s12 = ssub.s32 1, %s10
  %s13 = scalar_select 0, %s12, %s10
  $region1: #{tpu_custom_call.1} parent=0
    #allocation2 [shape = 'u8[16384]{0}', space=vmem, size = 0x4000, scoped, tag = 'input window, operand 0']
    #allocation3 [shape = 's32[2]{0}', space=sflag, size = 0x8, scoped, tag = 'scoped memory for tpu_custom_call.1']
    #allocation4 [shape = 's32[2]{0}', space=sflag, size = 0x8, scoped, tag = 'scoped memory for tpu_custom_call.1']
    #allocation5 [shape = 'u8[16384]{0}', space=vmem, size = 0x4000, scoped, tag = 'input window, operand 1, single buffered']
    #allocation6 [shape = 's32[1]{0}', space=sflag, size = 0x4, scoped, tag = 'scoped memory for tpu_custom_call.1']
    #allocation7 [shape = 'u8[16384]{0}', space=vmem, size = 0x4000, scoped, tag = 'input window, operand 2, single buffered']
    #allocation8 [shape = 'u8[16384]{0}', space=vmem, size = 0x4000, scoped, tag = 'input window, operand 3, single buffered']
    #allocation9 [shape = 's32[1]{0}', space=sflag, size = 0x4, scoped, tag = 'scoped memory for tpu_custom_call.1']
    #allocation10 [shape = 'u8[16384]{0}', space=vmem, size = 0x4000, scoped, tag = 'input window, operand 7, single buffered']
    #allocation11 [shape = 'u8[16384]{0}', space=vmem, size = 0x4000, scoped, tag = 'output window, operand 0']
    %14 = vsyncpa [#allocation3], 0
    %s15 = scalar_lea.sflag [#allocation3], 1
    %16 = vsyncpa %s15, 0
    %17 = vsyncpa [#allocation6], 0
    %18 = vsyncpa [#allocation9], 0
    %19 = vsyncpa [#allocation4], 0
    %s20 = scalar_lea.sflag [#allocation4], 1
    %21 = vsyncpa %s20, 0
    loop: start=0, step=1, limit=4
    $region2: #{tpu_custom_call.1} parent=1 // loop_pre_header
      _
    $region3: #{tpu_custom_call.1} parent=1 // loop_header
      %s23 = sphi 0, %s27
      %p24 = scmp.ge.s32.totalorder %s23, 4
      %s33 = sphi 0, %s35
      %s36 = sphi 0, %s33
      %s37 = sphi 0, %s36
      %s53 = sphi 0, %s37
      %s57 = sphi 0, %s57
      %s59 = sphi 0, %s57
      %s60 = sphi 0, %s59
      %s74 = sphi 0, %s60
      %s78 = sphi 0, %s78
      %s80 = sphi 0, %s78
      %s81 = sphi 0, %s80
      %s95 = sphi 0, %s81
      %s99 = sphi 0, %s99
      %s101 = sphi 0, %s99
      %s102 = sphi 0, %s101
      %s116 = sphi 0, %s102
      %s120 = sphi 0, %s120
      %s122 = sphi 0, %s120
      %s123 = sphi 0, %s122
      %s137 = sphi 0, %s123
      %s141 = sphi 0, %s141
      %s143 = sphi 0, %s141
      %s144 = sphi 0, %s143
      %s158 = sphi 0, %s144
      %s162 = sphi 0, %s162
      %s164 = sphi 0, %s162
      %s165 = sphi 0, %s164
      %s179 = sphi 0, %s165
      %s183 = sphi 0, %s183
      %s185 = sphi 0, %s183
      %s186 = sphi 0, %s185
      %s200 = sphi 0, %s186
      %s204 = sphi 0, %s204
      %s206 = sphi 0, %s204
      %s207 = sphi 0, %s206
      %s221 = sphi 0, %s207
      %s227 = sphi 0, %s229
      %s230 = sphi 0, %s227
      %s231 = sphi 0, %s230
      %s247 = sphi 0, %s231
    $region4: #{tpu_custom_call.1} parent=1 // loop_header_branch
      %26 = sbr.rel (%p24) target = $region8
    $region5: #{tpu_custom_call.1} parent=1 // loop_body
      %s28 = ssub.s32 %s23, 1
      %s29 = ssub.s32 %s23, 2
      %s30 = sadd.s32 %s23, 1
      %s31 = ssub.s32 %s23, %s30
      %p32 = scmp.eq.s32.totalorder %s31, 0
      %s34 = sadd.s32 %s33, 1
      %s35 = scalar_select %p32, %s33, %s34
      %p38 = pneg %p32
      %p39 = scmp.eq.s32.totalorder %s23, 1
      %p40 = por %p38, %p39
      %p41 = scmp.ne.s32.totalorder %s33, %s36
      %p42 = scmp.eq.s32.totalorder %s23, 0
      %p43 = por %p41, %p42
      %p44 = scmp.ne.s32.totalorder %s33, %s36
      %p45 = scmp.eq.s32.totalorder %s28, 1
      %p46 = por %p44, %p45
      %p47 = scmp.ne.s32.totalorder %s36, %s37
      %p48 = scmp.eq.s32.totalorder %s28, 0
      %p49 = por %p47, %p48
      %p50 = scmp.ne.s32.totalorder %s36, %s37
      %p51 = scmp.eq.s32.totalorder %s29, 1
      %p52 = por %p50, %p51
      %p54 = scmp.ne.s32.totalorder %s37, %s53
      %p55 = scmp.eq.s32.totalorder %s29, 0
      %p56 = por %p54, %p55
      %s58 = sadd.s32 %s57, 1
      %p61 = scmp.eq.s32.totalorder %s23, 1
      %p62 = scmp.ne.s32.totalorder %s57, %s59
      %p63 = scmp.eq.s32.totalorder %s23, 0
      %p64 = por %p62, %p63
      %p65 = scmp.ne.s32.totalorder %s57, %s59
      %p66 = scmp.eq.s32.totalorder %s28, 1
      %p67 = por %p65, %p66
      %p68 = scmp.ne.s32.totalorder %s59, %s60
      %p69 = scmp.eq.s32.totalorder %s28, 0
      %p70 = por %p68, %p69
      %p71 = scmp.ne.s32.totalorder %s59, %s60
      %p72 = scmp.eq.s32.totalorder %s29, 1
      %p73 = por %p71, %p72
      %p75 = scmp.ne.s32.totalorder %s60, %s74
      %p76 = scmp.eq.s32.totalorder %s29, 0
      %p77 = por %p75, %p76
      %s79 = sadd.s32 %s78, 1
      %p82 = scmp.eq.s32.totalorder %s23, 1
      %p83 = scmp.ne.s32.totalorder %s78, %s80
      %p84 = scmp.eq.s32.totalorder %s23, 0
      %p85 = por %p83, %p84
      %p86 = scmp.ne.s32.totalorder %s78, %s80
      %p87 = scmp.eq.s32.totalorder %s28, 1
      %p88 = por %p86, %p87
      %p89 = scmp.ne.s32.totalorder %s80, %s81
      %p90 = scmp.eq.s32.totalorder %s28, 0
      %p91 = por %p89, %p90
      %p92 = scmp.ne.s32.totalorder %s80, %s81
      %p93 = scmp.eq.s32.totalorder %s29, 1
      %p94 = por %p92, %p93
      %p96 = scmp.ne.s32.totalorder %s81, %s95
      %p97 = scmp.eq.s32.totalorder %s29, 0
      %p98 = por %p96, %p97
      %s100 = sadd.s32 %s99, 1
      %p103 = scmp.eq.s32.totalorder %s23, 1
      %p104 = scmp.ne.s32.totalorder %s99, %s101
      %p105 = scmp.eq.s32.totalorder %s23, 0
      %p106 = por %p104, %p105
      %p107 = scmp.ne.s32.totalorder %s99, %s101
      %p108 = scmp.eq.s32.totalorder %s28, 1
      %p109 = por %p107, %p108
      %p110 = scmp.ne.s32.totalorder %s101, %s102
      %p111 = scmp.eq.s32.totalorder %s28, 0
      %p112 = por %p110, %p111
      %p113 = scmp.ne.s32.totalorder %s101, %s102
      %p114 = scmp.eq.s32.totalorder %s29, 1
      %p115 = por %p113, %p114
      %p117 = scmp.ne.s32.totalorder %s102, %s116
      %p118 = scmp.eq.s32.totalorder %s29, 0
      %p119 = por %p117, %p118
      %s121 = sadd.s32 %s120, 1
      %p124 = scmp.eq.s32.totalorder %s23, 1
      %p125 = scmp.ne.s32.totalorder %s120, %s122
      %p126 = scmp.eq.s32.totalorder %s23, 0
      %p127 = por %p125, %p126
      %p128 = scmp.ne.s32.totalorder %s120, %s122
      %p129 = scmp.eq.s32.totalorder %s28, 1
      %p130 = por %p128, %p129
      %p131 = scmp.ne.s32.totalorder %s122, %s123
      %p132 = scmp.eq.s32.totalorder %s28, 0
      %p133 = por %p131, %p132
      %p134 = scmp.ne.s32.totalorder %s122, %s123
      %p135 = scmp.eq.s32.totalorder %s29, 1
      %p136 = por %p134, %p135
      %p138 = scmp.ne.s32.totalorder %s123, %s137
      %p139 = scmp.eq.s32.totalorder %s29, 0
      %p140 = por %p138, %p139
      %s142 = sadd.s32 %s141, 1
      %p145 = scmp.eq.s32.totalorder %s23, 1
      %p146 = scmp.ne.s32.totalorder %s141, %s143
      %p147 = scmp.eq.s32.totalorder %s23, 0
      %p148 = por %p146, %p147
      %p149 = scmp.ne.s32.totalorder %s141, %s143
      %p150 = scmp.eq.s32.totalorder %s28, 1
      %p151 = por %p149, %p150
      %p152 = scmp.ne.s32.totalorder %s143, %s144
      %p153 = scmp.eq.s32.totalorder %s28, 0
      %p154 = por %p152, %p153
      %p155 = scmp.ne.s32.totalorder %s143, %s144
      %p156 = scmp.eq.s32.totalorder %s29, 1
      %p157 = por %p155, %p156
      %p159 = scmp.ne.s32.totalorder %s144, %s158
      %p160 = scmp.eq.s32.totalorder %s29, 0
      %p161 = por %p159, %p160
      %s163 = sadd.s32 %s162, 1
      %p166 = scmp.eq.s32.totalorder %s23, 1
      %p167 = scmp.ne.s32.totalorder %s162, %s164
      %p168 = scmp.eq.s32.totalorder %s23, 0
      %p169 = por %p167, %p168
      %p170 = scmp.ne.s32.totalorder %s162, %s164
      %p171 = scmp.eq.s32.totalorder %s28, 1
      %p172 = por %p170, %p171
      %p173 = scmp.ne.s32.totalorder %s164, %s165
      %p174 = scmp.eq.s32.totalorder %s28, 0
      %p175 = por %p173, %p174
      %p176 = scmp.ne.s32.totalorder %s164, %s165
      %p177 = scmp.eq.s32.totalorder %s29, 1
      %p178 = por %p176, %p177
      %p180 = scmp.ne.s32.totalorder %s165, %s179
      %p181 = scmp.eq.s32.totalorder %s29, 0
      %p182 = por %p180, %p181
      %s184 = sadd.s32 %s183, 1
      %p187 = scmp.eq.s32.totalorder %s23, 1
      %p188 = scmp.ne.s32.totalorder %s183, %s185
      %p189 = scmp.eq.s32.totalorder %s23, 0
      %p190 = por %p188, %p189
      %p191 = scmp.ne.s32.totalorder %s183, %s185
      %p192 = scmp.eq.s32.totalorder %s28, 1
      %p193 = por %p191, %p192
      %p194 = scmp.ne.s32.totalorder %s185, %s186
      %p195 = scmp.eq.s32.totalorder %s28, 0
      %p196 = por %p194, %p195
      %p197 = scmp.ne.s32.totalorder %s185, %s186
      %p198 = scmp.eq.s32.totalorder %s29, 1
      %p199 = por %p197, %p198
      %p201 = scmp.ne.s32.totalorder %s186, %s200
      %p202 = scmp.eq.s32.totalorder %s29, 0
      %p203 = por %p201, %p202
      %s205 = sadd.s32 %s204, 1
      %p208 = scmp.eq.s32.totalorder %s23, 1
      %p209 = scmp.ne.s32.totalorder %s204, %s206
      %p210 = scmp.eq.s32.totalorder %s23, 0
      %p211 = por %p209, %p210
      %p212 = scmp.ne.s32.totalorder %s204, %s206
      %p213 = scmp.eq.s32.totalorder %s28, 1
      %p214 = por %p212, %p213
      %p215 = scmp.ne.s32.totalorder %s206, %s207
      %p216 = scmp.eq.s32.totalorder %s28, 0
      %p217 = por %p215, %p216
      %p218 = scmp.ne.s32.totalorder %s206, %s207
      %p219 = scmp.eq.s32.totalorder %s29, 1
      %p220 = por %p218, %p219
      %p222 = scmp.ne.s32.totalorder %s207, %s221
      %p223 = scmp.eq.s32.totalorder %s29, 0
      %p224 = por %p222, %p223
      %s225 = ssub.s32 %s23, %s30
      %p226 = scmp.eq.s32.totalorder %s225, 0
      %s228 = sadd.s32 %s227, 1
      %s229 = scalar_select %p226, %s227, %s228
      %p232 = pneg %p226
      %p233 = scmp.eq.s32.totalorder %s23, 1
      %p234 = por %p232, %p233
      %p235 = scmp.ne.s32.totalorder %s227, %s230
      %p236 = scmp.eq.s32.totalorder %s23, 0
      %p237 = por %p235, %p236
      %p238 = scmp.ne.s32.totalorder %s227, %s230
      %p239 = scmp.eq.s32.totalorder %s28, 1
      %p240 = por %p238, %p239
      %p241 = scmp.ne.s32.totalorder %s230, %s231
      %p242 = scmp.eq.s32.totalorder %s28, 0
      %p243 = por %p241, %p242
      %p244 = scmp.ne.s32.totalorder %s230, %s231
      %p245 = scmp.eq.s32.totalorder %s29, 1
      %p246 = por %p244, %p245
      %p248 = scmp.ne.s32.totalorder %s231, %s247
      %p249 = scmp.eq.s32.totalorder %s29, 0
      %p250 = por %p248, %p249
      %p251 = scmp.le.s32.totalorder 1, %s23
      %p252 = scmp.lt.s32.totalorder %s23, 3
      %p253 = pnand %p251, %p252
      %p254 = pneg %p253
      // Predicated region
      $region9: #{tpu_custom_call.1} parent=5 // pred_check
        _
      $region10: #{tpu_custom_call.1} parent=5 // pred_check_branch
        %256 = sbr.rel (%p253) target = $region12
      $region11: #{tpu_custom_call.1} parent=5 // pred_region
        %s257 = ssub.s32 %s23, 1
        // Predicated region
        $region13: #{tpu_custom_call.1} parent=11 // pred_check
          %p258 = pneg %p70
        $region14: #{tpu_custom_call.1} parent=11 // pred_check_branch
          %260 = sbr.rel (%p258) target = $region16
        $region15: #{tpu_custom_call.1} parent=11 // pred_region
          %s262 = ssub.s32 512, 512
          %263 = vsyncadd [#allocation6], %s262
          %s264 = sshll.u32 [#allocation5], 4
          %s265 = int_to_ptr.vmem [resolvable:$true] %s264
          %270 = dma.hbm_to_vmem [thread:$0]  %s1, 512, %s265, [#allocation6], 64, 64, 4
        $region16: #{tpu_custom_call.1} parent=11 // pred_fallthru
          _
        // Predicated region
        $region17: #{tpu_custom_call.1} parent=11 // pred_check
          %p271 = pneg %p91
        $region18: #{tpu_custom_call.1} parent=11 // pred_check_branch
          %273 = sbr.rel (%p271) target = $region20
        $region19: #{tpu_custom_call.1} parent=11 // pred_region
          %s275 = ssub.s32 512, 512
          %276 = vsyncadd [#allocation6], %s275
          %s277 = sshll.u32 [#allocation7], 4
          %s278 = int_to_ptr.vmem [resolvable:$true] %s277
          %283 = dma.hbm_to_vmem [thread:$0]  %s2, 512, %s278, [#allocation6], 64, 64, 4
        $region20: #{tpu_custom_call.1} parent=11 // pred_fallthru
          _
        // Predicated region
        $region21: #{tpu_custom_call.1} parent=11 // pred_check
          %p284 = pneg %p112
        $region22: #{tpu_custom_call.1} parent=11 // pred_check_branch
          %286 = sbr.rel (%p284) target = $region24
        $region23: #{tpu_custom_call.1} parent=11 // pred_region
          %s288 = ssub.s32 512, 512
          %289 = vsyncadd [#allocation9], %s288
          %s290 = sshll.u32 [#allocation8], 4
          %s291 = int_to_ptr.vmem [resolvable:$true] %s290
          %296 = dma.hbm_to_vmem [thread:$0]  %s3, 512, %s291, [#allocation9], 64, 64, 4
        $region24: #{tpu_custom_call.1} parent=11 // pred_fallthru
          _
        // Predicated region
        $region25: #{tpu_custom_call.1} parent=11 // pred_check
          %p297 = pneg %p133
        $region26: #{tpu_custom_call.1} parent=11 // pred_check_branch
          %299 = sbr.rel (%p297) target = $region28
        $region27: #{tpu_custom_call.1} parent=11 // pred_region
          _
        $region28: #{tpu_custom_call.1} parent=11 // pred_fallthru
          _
        // Predicated region
        $region29: #{tpu_custom_call.1} parent=11 // pred_check
          %p300 = pneg %p154
        $region30: #{tpu_custom_call.1} parent=11 // pred_check_branch
          %302 = sbr.rel (%p300) target = $region32
        $region31: #{tpu_custom_call.1} parent=11 // pred_region
          _
        $region32: #{tpu_custom_call.1} parent=11 // pred_fallthru
          _
        // Predicated region
        $region33: #{tpu_custom_call.1} parent=11 // pred_check
          %p303 = pneg %p175
        $region34: #{tpu_custom_call.1} parent=11 // pred_check_branch
          %305 = sbr.rel (%p303) target = $region36
        $region35: #{tpu_custom_call.1} parent=11 // pred_region
          _
        $region36: #{tpu_custom_call.1} parent=11 // pred_fallthru
          _
        // Predicated region
        $region37: #{tpu_custom_call.1} parent=11 // pred_check
          %p306 = pneg %p196
        $region38: #{tpu_custom_call.1} parent=11 // pred_check_branch
          %308 = sbr.rel (%p306) target = $region40
        $region39: #{tpu_custom_call.1} parent=11 // pred_region
          %s310 = ssub.s32 512, 512
          %311 = vsyncadd [#allocation9], %s310
          %s312 = sshll.u32 [#allocation10], 4
          %s313 = int_to_ptr.vmem [resolvable:$true] %s312
          %318 = dma.hbm_to_vmem [thread:$0]  %s7, 512, %s313, [#allocation9], 64, 64, 4
        $region40: #{tpu_custom_call.1} parent=11 // pred_fallthru
          _
        // Predicated region
        $region41: #{tpu_custom_call.1} parent=11 // pred_check
          %p319 = pneg %p217
        $region42: #{tpu_custom_call.1} parent=11 // pred_check_branch
          %321 = sbr.rel (%p319) target = $region44
        $region43: #{tpu_custom_call.1} parent=11 // pred_region
          _
        $region44: #{tpu_custom_call.1} parent=11 // pred_fallthru
          _
      $region12: #{tpu_custom_call.1} parent=5 // pred_fallthru
        _
      %p322 = scmp.lt.s32.totalorder %s23, 2
      // Predicated region
      $region45: #{tpu_custom_call.1} parent=5 // pred_check
        %p323 = pneg %p322
      $region46: #{tpu_custom_call.1} parent=5 // pred_check_branch
        %325 = sbr.rel (%p323) target = $region48
      $region47: #{tpu_custom_call.1} parent=5 // pred_region
        // Predicated region
        $region49: #{tpu_custom_call.1} parent=47 // pred_check
          %p326 = pneg %p43
        $region50: #{tpu_custom_call.1} parent=47 // pred_check_branch
          %328 = sbr.rel (%p326) target = $region52
        $region51: #{tpu_custom_call.1} parent=47 // pred_region
          %s329 = sand.u32 %s33, 1
          %s330 = scalar_lea.sflag [#allocation3], %s329
          %s331 = sand.u32 %s33, 1
          %s332 = smul.addr %s331, 16
          %s333 = scalar_lea.vmem [#allocation2], %s332
          %s334 = smul.u32 4, %s23
          %s336 = ssub.s32 256, 256
          %337 = vsyncadd %s330, %s336
          %s338 = smul.addr %s334, 64
          %s339 = scalar_lea.hbm %s0, %s338
          %s340 = sshll.u32 %s333, 4
          %s341 = int_to_ptr.vmem [resolvable:$true] %s340
          %346 = dma.hbm_to_vmem [thread:$0]  %s339, 256, %s341, %s330, 64, 64, 4
        $region52: #{tpu_custom_call.1} parent=47 // pred_fallthru
          _
      $region48: #{tpu_custom_call.1} parent=5 // pred_fallthru
        _
      %p347 = scmp.le.s32.totalorder 1, %s23
      %p348 = scmp.lt.s32.totalorder %s23, 3
      %p349 = pnand %p347, %p348
      %p350 = pneg %p349
      // Predicated region
      $region53: #{tpu_custom_call.1} parent=5 // pred_check
        _
      $region54: #{tpu_custom_call.1} parent=5 // pred_check_branch
        %352 = sbr.rel (%p349) target = $region56
      $region55: #{tpu_custom_call.1} parent=5 // pred_region
        %s353 = ssub.s32 %s23, 1
        %s354 = sand.u32 %s36, 1
        %s355 = scalar_lea.sflag [#allocation3], %s354
        %s356 = sand.u32 %s36, 1
        %s357 = smul.addr %s356, 16
        %s358 = scalar_lea.vmem [#allocation2], %s357
        // Predicated region
        $region57: #{tpu_custom_call.1} parent=55 // pred_check
          %p359 = pneg %p49
        $region58: #{tpu_custom_call.1} parent=55 // pred_check_branch
          %361 = sbr.rel (%p359) target = $region60
        $region59: #{tpu_custom_call.1} parent=55 // pred_region
          %362 = dma.done %s355, 256
        $region60: #{tpu_custom_call.1} parent=55 // pred_fallthru
          _
        // Predicated region
        $region61: #{tpu_custom_call.1} parent=55 // pred_check
          %p363 = pneg %p70
        $region62: #{tpu_custom_call.1} parent=55 // pred_check_branch
          %365 = sbr.rel (%p363) target = $region64
        $region63: #{tpu_custom_call.1} parent=55 // pred_region
          %366 = dma.done [#allocation6], 512
        $region64: #{tpu_custom_call.1} parent=55 // pred_fallthru
          _
        // Predicated region
        $region65: #{tpu_custom_call.1} parent=55 // pred_check
          %p367 = pneg %p91
        $region66: #{tpu_custom_call.1} parent=55 // pred_check_branch
          %369 = sbr.rel (%p367) target = $region68
        $region67: #{tpu_custom_call.1} parent=55 // pred_region
          %370 = dma.done [#allocation6], 512
        $region68: #{tpu_custom_call.1} parent=55 // pred_fallthru
          _
        // Predicated region
        $region69: #{tpu_custom_call.1} parent=55 // pred_check
          %p371 = pneg %p112
        $region70: #{tpu_custom_call.1} parent=55 // pred_check_branch
          %373 = sbr.rel (%p371) target = $region72
        $region71: #{tpu_custom_call.1} parent=55 // pred_region
          %374 = dma.done [#allocation9], 512
        $region72: #{tpu_custom_call.1} parent=55 // pred_fallthru
          _
        // Predicated region
        $region73: #{tpu_custom_call.1} parent=55 // pred_check
          %p375 = pneg %p196
        $region74: #{tpu_custom_call.1} parent=55 // pred_check_branch
          %377 = sbr.rel (%p375) target = $region76
        $region75: #{tpu_custom_call.1} parent=55 // pred_region
          %378 = dma.done [#allocation9], 512
        $region76: #{tpu_custom_call.1} parent=55 // pred_fallthru
          _
        %s379 = sand.u32 %s36, 1
        %s380 = scalar_lea.sflag [#allocation3], %s379
        %s381 = sand.u32 %s36, 1
        %s382 = smul.addr %s381, 16
        %s383 = scalar_lea.vmem [#allocation2], %s382
        %p384 = pneg %p49
        %p385 = pneg %p46
        %p386 = pneg %p70
        %p387 = pneg %p67
        %p388 = pneg %p91
        %p389 = pneg %p88
        %p390 = pneg %p112
        %p391 = pneg %p109
        %p392 = pneg %p133
        %p393 = pneg %p130
        %p394 = pneg %p154
        %p395 = pneg %p151
        %p396 = pneg %p175
        %p397 = pneg %p172
        %p398 = pneg %p196
        %p399 = pneg %p193
        %p400 = pneg %p217
        %p401 = pneg %p214
        %p402 = pneg %p243
        %p403 = pneg %p240
        %s404 = sand.u32 %s230, 1
        %s405 = scalar_lea.sflag [#allocation4], %s404
        %s406 = sand.u32 %s230, 1
        %s407 = smul.addr %s406, 16
        %s408 = scalar_lea.vmem [#allocation11], %s407
        %s409 = smul.u32 4, %s28
        %s410 = smul.u32 4, %s28
        %v412 = vld [vmem:[%s358] sm:$0xf]
        %v413 = vld [vmem:[%s358 + $0x4] sm:$0xf]
        %v414 = vld [vmem:[%s358 + $0x8] sm:$0xf]
        %v415 = vld [vmem:[%s358 + $0xc] sm:$0xf]
        %v416 = vld [vmem:[#allocation5] sm:$0xf]
        %v417 = vld [vmem:[#allocation5 + $0x4] sm:$0xf]
        %v418 = vld [vmem:[#allocation5 + $0x8] sm:$0xf]
        %v419 = vld [vmem:[#allocation5 + $0xc] sm:$0xf]
        %v420 = vld [vmem:[#allocation5 + $0x10] sm:$0xf]
        %v421 = vld [vmem:[#allocation5 + $0x14] sm:$0xf]
        %v422 = vld [vmem:[#allocation5 + $0x18] sm:$0xf]
        %v423 = vld [vmem:[#allocation5 + $0x1c] sm:$0xf]
        %v424 = vld [vmem:[%s4] sm:$0x1]
        %v425 = vunpack.c.l.bf16 %v424
        %v426 = vlaneseq
        %v427 = vshrl.u32 %v426, 7
        %v428 = vsub.s32 0, %v427
        %v429 = vrot.slane %v425, %v428
        %v434 = vunpack.c.l.b16 %v412
        %v435 = vunpack.c.l.b16 %v413
        %v436 = vunpack.c.l.b16 %v414
        %v437 = vunpack.c.l.b16 %v415
        %v438 = vpack.c.b16 %v435, %v434
        %v439 = vpack.c.b16 %v437, %v436
        %v448 = vunpack.c.l.b16 %v416
        %v449 = vunpack.c.l.b16 %v417
        %v450 = vunpack.c.l.b16 %v418
        %v451 = vunpack.c.l.b16 %v419
        %v452 = vunpack.c.l.b16 %v420
        %v453 = vunpack.c.l.b16 %v421
        %v454 = vunpack.c.l.b16 %v422
        %v455 = vunpack.c.l.b16 %v423
        %v456 = vpack.c.b16 %v449, %v448
        %v457 = vpack.c.b16 %v451, %v450
        %v458 = vpack.c.b16 %v453, %v452
        %v459 = vpack.c.b16 %v455, %v454
        %vm464 = vcmask 523264
        %v466 = vsel %vm464, %v438, 0
        %v469 = vsel %vm464, %v439, 0
        %471 = vmatprep.subr.bf16.mxu0 0
        %472 = vmatpush1.bf16.msra.mxu0 0
        %473 = vmatprep.subr.bf16.mxu0 0
        %474 = vmatpush1.bf16.msra.mxu0 0
        %475 = vmatprep.subr.bf16.mxu0 0
        %476 = vmatpush1.bf16.msra.mxu0 0
        %477 = vmatprep.subr.bf16.mxu0 0
        %478 = vmatpush1.bf16.msra.mxu0 0
        %479 = vmatprep.subr.bf16.mxu0 0
        %480 = vmatpush1.bf16.msra.mxu0 %v459
        %481 = vmatprep.subr.bf16.mxu0 0
        %482 = vmatpush1.bf16.msra.mxu0 %v458
        %483 = vmatprep.subr.bf16.mxu0 0
        %484 = vmatpush1.bf16.msra.mxu0 %v457
        %485 = vmatprep.subr.bf16.mxu0 0
        %486 = vmatpush1.bf16.msra.mxu0 %v456
        %487 = vmatprep.subr.bf16.mxu0 0
        %488 = vmatpush2.bf16.msra.mxu0 0
        %489 = vmatprep.subr.bf16.mxu0 0
        %490 = vmatpush2.bf16.msra.mxu0 0
        %491 = vmatprep.subr.bf16.mxu0 0
        %492 = vmatpush2.bf16.msra.mxu0 0
        %493 = vmatprep.subr.bf16.mxu0 0
        %494 = vmatpush2.bf16.msra.mxu0 0
        %495 = vmatprep.subr.bf16.mxu0 0
        %496 = vmatpush2.bf16.msra.mxu0 0
        %497 = vmatprep.subr.bf16.mxu0 0
        %498 = vmatpush2.bf16.msra.mxu0 0
        %499 = vmatprep.subr.bf16.mxu0 0
        %500 = vmatpush2.bf16.msra.mxu0 0
        %501 = vmatprep.subr.bf16.mxu0 0
        %502 = vmatpush2.bf16.msra.mxu0 0
        %503 = vmatprep.mubr.bf16.mxu0 0
        %504 = vmatmul.mubr.bf16.gmra.mxu0 %v466
        %v505 = vpop.f32.mrf.mxu0
        %v506 = vadd.f32 %v429, %v505
        %v507 = vpop.f32.mrf.mxu0
        %v508 = vpop.f32.mrf.mxu0
        %v509 = vadd.f32 %v429, %v508
        %v510 = vpop.f32.mrf.mxu0
        %511 = vmatprep.mubr.bf16.mxu0 0
        %512 = vmatmul.mubr.bf16.gmra.mxu0 %v469
        %v513 = vpop.f32.mrf.mxu0
        %v514 = vadd.f32 %v429, %v513
        %v515 = vpop.f32.mrf.mxu0
        %v516 = vpop.f32.mrf.mxu0
        %v517 = vadd.f32 %v429, %v516
        %v518 = vpop.f32.mrf.mxu0
        %519 = vdwg.mxu0
        %v520 = vpack.c.bf16 %v509, %v506
        %v521 = vpack.c.bf16 %v517, %v514
        %v522 = vld [vmem:[#allocation7] sm:$0xf]
        %v523 = vld [vmem:[#allocation7 + $0x4] sm:$0xf]
        %v524 = vld [vmem:[#allocation7 + $0x8] sm:$0xf]
        %v525 = vld [vmem:[#allocation7 + $0xc] sm:$0xf]
        %v526 = vld [vmem:[#allocation7 + $0x10] sm:$0xf]
        %v527 = vld [vmem:[#allocation7 + $0x14] sm:$0xf]
        %v528 = vld [vmem:[#allocation7 + $0x18] sm:$0xf]
        %v529 = vld [vmem:[#allocation7 + $0x1c] sm:$0xf]
        %v530 = vld [vmem:[%s5] sm:$0x1]
        %v531 = vunpack.c.l.bf16 %v530
        %v532 = vlaneseq
        %v533 = vshrl.u32 %v532, 7
        %v534 = vsub.s32 0, %v533
        %v535 = vrot.slane %v531, %v534
        %v544 = vunpack.c.l.b16 %v522
        %v545 = vunpack.c.l.b16 %v523
        %v546 = vunpack.c.l.b16 %v524
        %v547 = vunpack.c.l.b16 %v525
        %v548 = vunpack.c.l.b16 %v526
        %v549 = vunpack.c.l.b16 %v527
        %v550 = vunpack.c.l.b16 %v528
        %v551 = vunpack.c.l.b16 %v529
        %v552 = vpack.c.b16 %v545, %v544
        %v553 = vpack.c.b16 %v547, %v546
        %v554 = vpack.c.b16 %v549, %v548
        %v555 = vpack.c.b16 %v551, %v550
        %560 = vmatprep.subr.bf16.mxu0 0
        %561 = vmatpush1.bf16.msra.mxu0 0
        %562 = vmatprep.subr.bf16.mxu0 0
        %563 = vmatpush1.bf16.msra.mxu0 0
        %564 = vmatprep.subr.bf16.mxu0 0
        %565 = vmatpush1.bf16.msra.mxu0 0
        %566 = vmatprep.subr.bf16.mxu0 0
        %567 = vmatpush1.bf16.msra.mxu0 0
        %568 = vmatprep.subr.bf16.mxu0 0
        %569 = vmatpush1.bf16.msra.mxu0 %v555
        %570 = vmatprep.subr.bf16.mxu0 0
        %571 = vmatpush1.bf16.msra.mxu0 %v554
        %572 = vmatprep.subr.bf16.mxu0 0
        %573 = vmatpush1.bf16.msra.mxu0 %v553
        %574 = vmatprep.subr.bf16.mxu0 0
        %575 = vmatpush1.bf16.msra.mxu0 %v552
        %576 = vmatprep.subr.bf16.mxu0 0
        %577 = vmatpush2.bf16.msra.mxu0 0
        %578 = vmatprep.subr.bf16.mxu0 0
        %579 = vmatpush2.bf16.msra.mxu0 0
        %580 = vmatprep.subr.bf16.mxu0 0
        %581 = vmatpush2.bf16.msra.mxu0 0
        %582 = vmatprep.subr.bf16.mxu0 0
        %583 = vmatpush2.bf16.msra.mxu0 0
        %584 = vmatprep.subr.bf16.mxu0 0
        %585 = vmatpush2.bf16.msra.mxu0 0
        %586 = vmatprep.subr.bf16.mxu0 0
        %587 = vmatpush2.bf16.msra.mxu0 0
        %588 = vmatprep.subr.bf16.mxu0 0
        %589 = vmatpush2.bf16.msra.mxu0 0
        %590 = vmatprep.subr.bf16.mxu0 0
        %591 = vmatpush2.bf16.msra.mxu0 0
        %592 = vmatprep.mubr.bf16.mxu0 0
        %593 = vmatmul.mubr.bf16.gmra.mxu0 %v466
        %v594 = vpop.f32.mrf.mxu0
        %v595 = vadd.f32 %v535, %v594
        %v596 = vpop.f32.mrf.mxu0
        %v597 = vpop.f32.mrf.mxu0
        %v598 = vadd.f32 %v535, %v597
        %v599 = vpop.f32.mrf.mxu0
        %600 = vmatprep.mubr.bf16.mxu0 0
        %601 = vmatmul.mubr.bf16.gmra.mxu0 %v469
        %v602 = vpop.f32.mrf.mxu0
        %v603 = vadd.f32 %v535, %v602
        %v604 = vpop.f32.mrf.mxu0
        %v605 = vpop.f32.mrf.mxu0
        %v606 = vadd.f32 %v535, %v605
        %v607 = vpop.f32.mrf.mxu0
        %608 = vdwg.mxu0
        %v609 = vpack.c.bf16 %v598, %v595
        %v610 = vpack.c.bf16 %v606, %v603
        %v611 = vld [vmem:[#allocation8] sm:$0xf]
        %v612 = vld [vmem:[#allocation8 + $0x4] sm:$0xf]
        %v613 = vld [vmem:[#allocation8 + $0x8] sm:$0xf]
        %v614 = vld [vmem:[#allocation8 + $0xc] sm:$0xf]
        %v615 = vld [vmem:[#allocation8 + $0x10] sm:$0xf]
        %v616 = vld [vmem:[#allocation8 + $0x14] sm:$0xf]
        %v617 = vld [vmem:[#allocation8 + $0x18] sm:$0xf]
        %v618 = vld [vmem:[#allocation8 + $0x1c] sm:$0xf]
        %v619 = vld [vmem:[%s6] sm:$0x1]
        %v620 = vunpack.c.l.bf16 %v619
        %v621 = vlaneseq
        %v622 = vshrl.u32 %v621, 7
        %v623 = vsub.s32 0, %v622
        %v624 = vrot.slane %v620, %v623
        %v633 = vunpack.c.l.b16 %v611
        %v634 = vunpack.c.l.b16 %v612
        %v635 = vunpack.c.l.b16 %v613
        %v636 = vunpack.c.l.b16 %v614
        %v637 = vunpack.c.l.b16 %v615
        %v638 = vunpack.c.l.b16 %v616
        %v639 = vunpack.c.l.b16 %v617
        %v640 = vunpack.c.l.b16 %v618
        %v641 = vpack.c.b16 %v634, %v633
        %v642 = vpack.c.b16 %v636, %v635
        %v643 = vpack.c.b16 %v638, %v637
        %v644 = vpack.c.b16 %v640, %v639
        %649 = vmatprep.subr.bf16.mxu0 0
        %650 = vmatpush1.bf16.msra.mxu0 0
        %651 = vmatprep.subr.bf16.mxu0 0
        %652 = vmatpush1.bf16.msra.mxu0 0
        %653 = vmatprep.subr.bf16.mxu0 0
        %654 = vmatpush1.bf16.msra.mxu0 0
        %655 = vmatprep.subr.bf16.mxu0 0
        %656 = vmatpush1.bf16.msra.mxu0 0
        %657 = vmatprep.subr.bf16.mxu0 0
        %658 = vmatpush1.bf16.msra.mxu0 %v644
        %659 = vmatprep.subr.bf16.mxu0 0
        %660 = vmatpush1.bf16.msra.mxu0 %v643
        %661 = vmatprep.subr.bf16.mxu0 0
        %662 = vmatpush1.bf16.msra.mxu0 %v642
        %663 = vmatprep.subr.bf16.mxu0 0
        %664 = vmatpush1.bf16.msra.mxu0 %v641
        %665 = vmatprep.subr.bf16.mxu0 0
        %666 = vmatpush2.bf16.msra.mxu0 0
        %667 = vmatprep.subr.bf16.mxu0 0
        %668 = vmatpush2.bf16.msra.mxu0 0
        %669 = vmatprep.subr.bf16.mxu0 0
        %670 = vmatpush2.bf16.msra.mxu0 0
        %671 = vmatprep.subr.bf16.mxu0 0
        %672 = vmatpush2.bf16.msra.mxu0 0
        %673 = vmatprep.subr.bf16.mxu0 0
        %674 = vmatpush2.bf16.msra.mxu0 0
        %675 = vmatprep.subr.bf16.mxu0 0
        %676 = vmatpush2.bf16.msra.mxu0 0
        %677 = vmatprep.subr.bf16.mxu0 0
        %678 = vmatpush2.bf16.msra.mxu0 0
        %679 = vmatprep.subr.bf16.mxu0 0
        %680 = vmatpush2.bf16.msra.mxu0 0
        %681 = vmatprep.mubr.bf16.mxu0 0
        %682 = vmatmul.mubr.bf16.gmra.mxu0 %v466
        %v683 = vpop.f32.mrf.mxu0
        %v684 = vadd.f32 %v624, %v683
        %v685 = vpop.f32.mrf.mxu0
        %v686 = vpop.f32.mrf.mxu0
        %v687 = vadd.f32 %v624, %v686
        %v688 = vpop.f32.mrf.mxu0
        %689 = vmatprep.mubr.bf16.mxu0 0
        %690 = vmatmul.mubr.bf16.gmra.mxu0 %v469
        %v691 = vpop.f32.mrf.mxu0
        %v692 = vadd.f32 %v624, %v691
        %v693 = vpop.f32.mrf.mxu0
        %v694 = vpop.f32.mrf.mxu0
        %v695 = vadd.f32 %v624, %v694
        %v696 = vpop.f32.mrf.mxu0
        %697 = vdwg.mxu0
        %v698 = vpack.c.bf16 %v687, %v684
        %v699 = vpack.c.bf16 %v695, %v692
        %702 = vrot.lane.b32.xlu0 %v520, 112
        %v703 = vpop.permute.xlu0 %702
        %704 = vrot.lane.b32.xlu0 %v521, 112
        %v705 = vpop.permute.xlu0 %704
        %706 = vrot.lane.b32.xlu0 %v520, 96
        %v707 = vpop.permute.xlu0 %706
        %708 = vrot.lane.b32.xlu0 %v521, 96
        %v709 = vpop.permute.xlu0 %708
        %710 = vrot.lane.b32.xlu0 %v520, 80
        %v711 = vpop.permute.xlu0 %710
        %712 = vrot.lane.b32.xlu0 %v521, 80
        %v713 = vpop.permute.xlu0 %712
        %v716 = vpack.i.b16 %v703, %v520
        %v718 = vshrl.u32 %v520, 16
        %v719 = vshrl.u32 %v703, 16
        %v720 = vpack.i.b16 %v719, %v718
        %v724 = vpack.i.b16 %v711, %v707
        %v726 = vshrl.u32 %v707, 16
        %v727 = vshrl.u32 %v711, 16
        %v728 = vpack.i.b16 %v727, %v726
        %v731 = vpack.i.b16 0, 0
        %v733 = vshrl.u32 0, 16
        %v734 = vpack.i.b16 %v733, %v733
        %v738 = vpack.i.b16 %v705, %v521
        %v740 = vshrl.u32 %v521, 16
        %v741 = vshrl.u32 %v705, 16
        %v742 = vpack.i.b16 %v741, %v740
        %v746 = vpack.i.b16 %v713, %v709
        %v748 = vshrl.u32 %v709, 16
        %v749 = vshrl.u32 %v713, 16
        %v750 = vpack.i.b16 %v749, %v748
        %v752 = vcombine.high %v716, %v731
        %v754 = vunpack.c.l.s4 1983009808
        %v755 = vunpack.c.0.s8 %v754
        %v756 = vlaneseq
        %v757 = vshrl.u32 %v756, 7
        %v758 = vsub.s32 %v755, %v757
        %v759 = vrot.slane %v716, %v758
        %v761 = vunpack.c.l.s4 1983009808
        %v762 = vunpack.c.0.s8 %v761
        %v763 = vlaneseq
        %v764 = vshrl.u32 %v763, 7
        %v765 = vsub.s32 %v762, %v764
        %v766 = vrot.slane %v752, %v765
        %v767 = vcombine.high %v724, %v731
        %v769 = vunpack.c.l.s4 1983009808
        %v770 = vunpack.c.0.s8 %v769
        %v771 = vlaneseq
        %v772 = vshrl.u32 %v771, 7
        %v773 = vsub.s32 %v770, %v772
        %v774 = vrot.slane %v724, %v773
        %v776 = vunpack.c.l.s4 1983009808
        %v777 = vunpack.c.0.s8 %v776
        %v778 = vlaneseq
        %v779 = vshrl.u32 %v778, 7
        %v780 = vsub.s32 %v777, %v779
        %v781 = vrot.slane %v767, %v780
        %v782 = vcombine.low %v759, %v774
        %v783 = vcombine.high %v759, %v774
        %v785 = vunpack.c.l.s4 1934713408
        %v786 = vunpack.c.0.s8 %v785
        %v787 = vlaneseq
        %v788 = vshrl.u32 %v787, 7
        %v789 = vsub.s32 %v786, %v788
        %v790 = vrot.slane %v782, %v789
        %v792 = vunpack.c.l.s4 1934713408
        %v793 = vunpack.c.0.s8 %v792
        %v794 = vlaneseq
        %v795 = vshrl.u32 %v794, 7
        %v796 = vsub.s32 %v793, %v795
        %v797 = vrot.slane %v783, %v796
        %v798 = vcombine.low %v766, %v781
        %v799 = vcombine.high %v766, %v781
        %v801 = vunpack.c.l.s4 1934713408
        %v802 = vunpack.c.0.s8 %v801
        %v803 = vlaneseq
        %v804 = vshrl.u32 %v803, 7
        %v805 = vsub.s32 %v802, %v804
        %v806 = vrot.slane %v798, %v805
        %v808 = vunpack.c.l.s4 1934713408
        %v809 = vunpack.c.0.s8 %v808
        %v810 = vlaneseq
        %v811 = vshrl.u32 %v810, 7
        %v812 = vsub.s32 %v809, %v811
        %v813 = vrot.slane %v799, %v812
        %v814 = vcombine.high %v790, 0
        %v815 = vcombine.high %v797, 0
        %v816 = vcombine.high %v806, 0
        %v817 = vcombine.high %v813, 0
        %v818 = vcombine.high %v720, %v734
        %v820 = vunpack.c.l.s4 1983009808
        %v821 = vunpack.c.0.s8 %v820
        %v822 = vlaneseq
        %v823 = vshrl.u32 %v822, 7
        %v824 = vsub.s32 %v821, %v823
        %v825 = vrot.slane %v720, %v824
        %v827 = vunpack.c.l.s4 1983009808
        %v828 = vunpack.c.0.s8 %v827
        %v829 = vlaneseq
        %v830 = vshrl.u32 %v829, 7
        %v831 = vsub.s32 %v828, %v830
        %v832 = vrot.slane %v818, %v831
        %v833 = vcombine.high %v728, %v734
        %v835 = vunpack.c.l.s4 1983009808
        %v836 = vunpack.c.0.s8 %v835
        %v837 = vlaneseq
        %v838 = vshrl.u32 %v837, 7
        %v839 = vsub.s32 %v836, %v838
        %v840 = vrot.slane %v728, %v839
        %v842 = vunpack.c.l.s4 1983009808
        %v843 = vunpack.c.0.s8 %v842
        %v844 = vlaneseq
        %v845 = vshrl.u32 %v844, 7
        %v846 = vsub.s32 %v843, %v845
        %v847 = vrot.slane %v833, %v846
        %v848 = vcombine.low %v825, %v840
        %v849 = vcombine.high %v825, %v840
        %v851 = vunpack.c.l.s4 1934713408
        %v852 = vunpack.c.0.s8 %v851
        %v853 = vlaneseq
        %v854 = vshrl.u32 %v853, 7
        %v855 = vsub.s32 %v852, %v854
        %v856 = vrot.slane %v848, %v855
        %v858 = vunpack.c.l.s4 1934713408
        %v859 = vunpack.c.0.s8 %v858
        %v860 = vlaneseq
        %v861 = vshrl.u32 %v860, 7
        %v862 = vsub.s32 %v859, %v861
        %v863 = vrot.slane %v849, %v862
        %v864 = vcombine.low %v832, %v847
        %v865 = vcombine.high %v832, %v847
        %v867 = vunpack.c.l.s4 1934713408
        %v868 = vunpack.c.0.s8 %v867
        %v869 = vlaneseq
        %v870 = vshrl.u32 %v869, 7
        %v871 = vsub.s32 %v868, %v870
        %v872 = vrot.slane %v864, %v871
        %v874 = vunpack.c.l.s4 1934713408
        %v875 = vunpack.c.0.s8 %v874
        %v876 = vlaneseq
        %v877 = vshrl.u32 %v876, 7
        %v878 = vsub.s32 %v875, %v877
        %v879 = vrot.slane %v865, %v878
        %v880 = vcombine.high %v856, 0
        %v881 = vcombine.high %v863, 0
        %v882 = vcombine.high %v872, 0
        %v883 = vcombine.high %v879, 0
        %v884 = vcombine.high %v738, %v731
        %v886 = vunpack.c.l.s4 1983009808
        %v887 = vunpack.c.0.s8 %v886
        %v888 = vlaneseq
        %v889 = vshrl.u32 %v888, 7
        %v890 = vsub.s32 %v887, %v889
        %v891 = vrot.slane %v738, %v890
        %v893 = vunpack.c.l.s4 1983009808
        %v894 = vunpack.c.0.s8 %v893
        %v895 = vlaneseq
        %v896 = vshrl.u32 %v895, 7
        %v897 = vsub.s32 %v894, %v896
        %v898 = vrot.slane %v884, %v897
        %v899 = vcombine.high %v746, %v731
        %v901 = vunpack.c.l.s4 1983009808
        %v902 = vunpack.c.0.s8 %v901
        %v903 = vlaneseq
        %v904 = vshrl.u32 %v903, 7
        %v905 = vsub.s32 %v902, %v904
        %v906 = vrot.slane %v746, %v905
        %v908 = vunpack.c.l.s4 1983009808
        %v909 = vunpack.c.0.s8 %v908
        %v910 = vlaneseq
        %v911 = vshrl.u32 %v910, 7
        %v912 = vsub.s32 %v909, %v911
        %v913 = vrot.slane %v899, %v912
        %v914 = vcombine.low %v891, %v906
        %v915 = vcombine.high %v891, %v906
        %v917 = vunpack.c.l.s4 1934713408
        %v918 = vunpack.c.0.s8 %v917
        %v919 = vlaneseq
        %v920 = vshrl.u32 %v919, 7
        %v921 = vsub.s32 %v918, %v920
        %v922 = vrot.slane %v914, %v921
        %v924 = vunpack.c.l.s4 1934713408
        %v925 = vunpack.c.0.s8 %v924
        %v926 = vlaneseq
        %v927 = vshrl.u32 %v926, 7
        %v928 = vsub.s32 %v925, %v927
        %v929 = vrot.slane %v915, %v928
        %v930 = vcombine.low %v898, %v913
        %v931 = vcombine.high %v898, %v913
        %v933 = vunpack.c.l.s4 1934713408
        %v934 = vunpack.c.0.s8 %v933
        %v935 = vlaneseq
        %v936 = vshrl.u32 %v935, 7
        %v937 = vsub.s32 %v934, %v936
        %v938 = vrot.slane %v930, %v937
        %v940 = vunpack.c.l.s4 1934713408
        %v941 = vunpack.c.0.s8 %v940
        %v942 = vlaneseq
        %v943 = vshrl.u32 %v942, 7
        %v944 = vsub.s32 %v941, %v943
        %v945 = vrot.slane %v931, %v944
        %v946 = vcombine.high %v922, 0
        %v947 = vcombine.high %v929, 0
        %v948 = vcombine.high %v938, 0
        %v949 = vcombine.high %v945, 0
        %v950 = vcombine.high %v742, %v734
        %v952 = vunpack.c.l.s4 1983009808
        %v953 = vunpack.c.0.s8 %v952
        %v954 = vlaneseq
        %v955 = vshrl.u32 %v954, 7
        %v956 = vsub.s32 %v953, %v955
        %v957 = vrot.slane %v742, %v956
        %v959 = vunpack.c.l.s4 1983009808
        %v960 = vunpack.c.0.s8 %v959
        %v961 = vlaneseq
        %v962 = vshrl.u32 %v961, 7
        %v963 = vsub.s32 %v960, %v962
        %v964 = vrot.slane %v950, %v963
        %v965 = vcombine.high %v750, %v734
        %v967 = vunpack.c.l.s4 1983009808
        %v968 = vunpack.c.0.s8 %v967
        %v969 = vlaneseq
        %v970 = vshrl.u32 %v969, 7
        %v971 = vsub.s32 %v968, %v970
        %v972 = vrot.slane %v750, %v971
        %v974 = vunpack.c.l.s4 1983009808
        %v975 = vunpack.c.0.s8 %v974
        %v976 = vlaneseq
        %v977 = vshrl.u32 %v976, 7
        %v978 = vsub.s32 %v975, %v977
        %v979 = vrot.slane %v965, %v978
        %v980 = vcombine.low %v957, %v972
        %v981 = vcombine.high %v957, %v972
        %v983 = vunpack.c.l.s4 1934713408
        %v984 = vunpack.c.0.s8 %v983
        %v985 = vlaneseq
        %v986 = vshrl.u32 %v985, 7
        %v987 = vsub.s32 %v984, %v986
        %v988 = vrot.slane %v980, %v987
        %v990 = vunpack.c.l.s4 1934713408
        %v991 = vunpack.c.0.s8 %v990
        %v992 = vlaneseq
        %v993 = vshrl.u32 %v992, 7
        %v994 = vsub.s32 %v991, %v993
        %v995 = vrot.slane %v981, %v994
        %v996 = vcombine.low %v964, %v979
        %v997 = vcombine.high %v964, %v979
        %v999 = vunpack.c.l.s4 1934713408
        %v1000 = vunpack.c.0.s8 %v999
        %v1001 = vlaneseq
        %v1002 = vshrl.u32 %v1001, 7
        %v1003 = vsub.s32 %v1000, %v1002
        %v1004 = vrot.slane %v996, %v1003
        %v1006 = vunpack.c.l.s4 1934713408
        %v1007 = vunpack.c.0.s8 %v1006
        %v1008 = vlaneseq
        %v1009 = vshrl.u32 %v1008, 7
        %v1010 = vsub.s32 %v1007, %v1009
        %v1011 = vrot.slane %v997, %v1010
        %v1012 = vcombine.high %v988, 0
        %v1013 = vcombine.high %v995, 0
        %v1014 = vcombine.high %v1004, 0
        %v1015 = vcombine.high %v1011, 0
        %v1016 = vcombine.low %v790, %v797
        %v1018 = vunpack.c.l.s4 1983009808
        %v1019 = vunpack.c.0.s8 %v1018
        %v1020 = vlaneseq
        %v1021 = vshrl.u32 %v1020, 7
        %v1022 = vsub.s32 %v1019, %v1021
        %v1023 = vrot.slane %v1016, %v1022
        %v1024 = vcombine.low %v814, %v815
        %v1026 = vunpack.c.l.s4 1983009808
        %v1027 = vunpack.c.0.s8 %v1026
        %v1028 = vlaneseq
        %v1029 = vshrl.u32 %v1028, 7
        %v1030 = vsub.s32 %v1027, %v1029
        %v1031 = vrot.slane %v1024, %v1030
        %v1032 = vcombine.low %v1023, %v1031
        %v1034 = vunpack.c.l.s4 1934713408
        %v1035 = vunpack.c.0.s8 %v1034
        %v1036 = vlaneseq
        %v1037 = vshrl.u32 %v1036, 7
        %v1038 = vsub.s32 %v1035, %v1037
        %v1039 = vrot.slane %v1032, %v1038
        %v1040 = vcombine.high %v1039, 0
        %v1041 = vcombine.low %v856, %v863
        %v1043 = vunpack.c.l.s4 1983009808
        %v1044 = vunpack.c.0.s8 %v1043
        %v1045 = vlaneseq
        %v1046 = vshrl.u32 %v1045, 7
        %v1047 = vsub.s32 %v1044, %v1046
        %v1048 = vrot.slane %v1041, %v1047
        %v1049 = vcombine.low %v880, %v881
        %v1051 = vunpack.c.l.s4 1983009808
        %v1052 = vunpack.c.0.s8 %v1051
        %v1053 = vlaneseq
        %v1054 = vshrl.u32 %v1053, 7
        %v1055 = vsub.s32 %v1052, %v1054
        %v1056 = vrot.slane %v1049, %v1055
        %v1057 = vcombine.low %v1048, %v1056
        %v1059 = vunpack.c.l.s4 1934713408
        %v1060 = vunpack.c.0.s8 %v1059
        %v1061 = vlaneseq
        %v1062 = vshrl.u32 %v1061, 7
        %v1063 = vsub.s32 %v1060, %v1062
        %v1064 = vrot.slane %v1057, %v1063
        %v1065 = vcombine.high %v1064, 0
        %v1066 = vcombine.low %v806, %v813
        %v1068 = vunpack.c.l.s4 1983009808
        %v1069 = vunpack.c.0.s8 %v1068
        %v1070 = vlaneseq
        %v1071 = vshrl.u32 %v1070, 7
        %v1072 = vsub.s32 %v1069, %v1071
        %v1073 = vrot.slane %v1066, %v1072
        %v1074 = vcombine.low %v816, %v817
        %v1076 = vunpack.c.l.s4 1983009808
        %v1077 = vunpack.c.0.s8 %v1076
        %v1078 = vlaneseq
        %v1079 = vshrl.u32 %v1078, 7
        %v1080 = vsub.s32 %v1077, %v1079
        %v1081 = vrot.slane %v1074, %v1080
        %v1082 = vcombine.low %v1073, %v1081
        %v1084 = vunpack.c.l.s4 1934713408
        %v1085 = vunpack.c.0.s8 %v1084
        %v1086 = vlaneseq
        %v1087 = vshrl.u32 %v1086, 7
        %v1088 = vsub.s32 %v1085, %v1087
        %v1089 = vrot.slane %v1082, %v1088
        %v1090 = vcombine.high %v1089, 0
        %v1091 = vcombine.low %v872, %v879
        %v1093 = vunpack.c.l.s4 1983009808
        %v1094 = vunpack.c.0.s8 %v1093
        %v1095 = vlaneseq
        %v1096 = vshrl.u32 %v1095, 7
        %v1097 = vsub.s32 %v1094, %v1096
        %v1098 = vrot.slane %v1091, %v1097
        %v1099 = vcombine.low %v882, %v883
        %v1101 = vunpack.c.l.s4 1983009808
        %v1102 = vunpack.c.0.s8 %v1101
        %v1103 = vlaneseq
        %v1104 = vshrl.u32 %v1103, 7
        %v1105 = vsub.s32 %v1102, %v1104
        %v1106 = vrot.slane %v1099, %v1105
        %v1107 = vcombine.low %v1098, %v1106
        %v1109 = vunpack.c.l.s4 1934713408
        %v1110 = vunpack.c.0.s8 %v1109
        %v1111 = vlaneseq
        %v1112 = vshrl.u32 %v1111, 7
        %v1113 = vsub.s32 %v1110, %v1112
        %v1114 = vrot.slane %v1107, %v1113
        %v1115 = vcombine.high %v1114, 0
        %v1116 = vcombine.low %v922, %v929
        %v1118 = vunpack.c.l.s4 1983009808
        %v1119 = vunpack.c.0.s8 %v1118
        %v1120 = vlaneseq
        %v1121 = vshrl.u32 %v1120, 7
        %v1122 = vsub.s32 %v1119, %v1121
        %v1123 = vrot.slane %v1116, %v1122
        %v1124 = vcombine.low %v946, %v947
        %v1126 = vunpack.c.l.s4 1983009808
        %v1127 = vunpack.c.0.s8 %v1126
        %v1128 = vlaneseq
        %v1129 = vshrl.u32 %v1128, 7
        %v1130 = vsub.s32 %v1127, %v1129
        %v1131 = vrot.slane %v1124, %v1130
        %v1132 = vcombine.low %v1123, %v1131
        %v1134 = vunpack.c.l.s4 1934713408
        %v1135 = vunpack.c.0.s8 %v1134
        %v1136 = vlaneseq
        %v1137 = vshrl.u32 %v1136, 7
        %v1138 = vsub.s32 %v1135, %v1137
        %v1139 = vrot.slane %v1132, %v1138
        %v1140 = vcombine.high %v1139, 0
        %v1141 = vcombine.low %v988, %v995
        %v1143 = vunpack.c.l.s4 1983009808
        %v1144 = vunpack.c.0.s8 %v1143
        %v1145 = vlaneseq
        %v1146 = vshrl.u32 %v1145, 7
        %v1147 = vsub.s32 %v1144, %v1146
        %v1148 = vrot.slane %v1141, %v1147
        %v1149 = vcombine.low %v1012, %v1013
        %v1151 = vunpack.c.l.s4 1983009808
        %v1152 = vunpack.c.0.s8 %v1151
        %v1153 = vlaneseq
        %v1154 = vshrl.u32 %v1153, 7
        %v1155 = vsub.s32 %v1152, %v1154
        %v1156 = vrot.slane %v1149, %v1155
        %v1157 = vcombine.low %v1148, %v1156
        %v1159 = vunpack.c.l.s4 1934713408
        %v1160 = vunpack.c.0.s8 %v1159
        %v1161 = vlaneseq
        %v1162 = vshrl.u32 %v1161, 7
        %v1163 = vsub.s32 %v1160, %v1162
        %v1164 = vrot.slane %v1157, %v1163
        %v1165 = vcombine.high %v1164, 0
        %v1166 = vcombine.low %v938, %v945
        %v1168 = vunpack.c.l.s4 1983009808
        %v1169 = vunpack.c.0.s8 %v1168
        %v1170 = vlaneseq
        %v1171 = vshrl.u32 %v1170, 7
        %v1172 = vsub.s32 %v1169, %v1171
        %v1173 = vrot.slane %v1166, %v1172
        %v1174 = vcombine.low %v948, %v949
        %v1176 = vunpack.c.l.s4 1983009808
        %v1177 = vunpack.c.0.s8 %v1176
        %v1178 = vlaneseq
        %v1179 = vshrl.u32 %v1178, 7
        %v1180 = vsub.s32 %v1177, %v1179
        %v1181 = vrot.slane %v1174, %v1180
        %v1182 = vcombine.low %v1173, %v1181
        %v1184 = vunpack.c.l.s4 1934713408
        %v1185 = vunpack.c.0.s8 %v1184
        %v1186 = vlaneseq
        %v1187 = vshrl.u32 %v1186, 7
        %v1188 = vsub.s32 %v1185, %v1187
        %v1189 = vrot.slane %v1182, %v1188
        %v1190 = vcombine.high %v1189, 0
        %v1191 = vcombine.low %v1004, %v1011
        %v1193 = vunpack.c.l.s4 1983009808
        %v1194 = vunpack.c.0.s8 %v1193
        %v1195 = vlaneseq
        %v1196 = vshrl.u32 %v1195, 7
        %v1197 = vsub.s32 %v1194, %v1196
        %v1198 = vrot.slane %v1191, %v1197
        %v1199 = vcombine.low %v1014, %v1015
        %v1201 = vunpack.c.l.s4 1983009808
        %v1202 = vunpack.c.0.s8 %v1201
        %v1203 = vlaneseq
        %v1204 = vshrl.u32 %v1203, 7
        %v1205 = vsub.s32 %v1202, %v1204
        %v1206 = vrot.slane %v1199, %v1205
        %v1207 = vcombine.low %v1198, %v1206
        %v1209 = vunpack.c.l.s4 1934713408
        %v1210 = vunpack.c.0.s8 %v1209
        %v1211 = vlaneseq
        %v1212 = vshrl.u32 %v1211, 7
        %v1213 = vsub.s32 %v1210, %v1212
        %v1214 = vrot.slane %v1207, %v1213
        %v1215 = vcombine.high %v1214, 0
        %v1218 = vpack.i.b16 %v1064, %v1039
        %v1219 = vshrl.u32 %v1039, 16
        %v1220 = vshrl.u32 %v1064, 16
        %v1221 = vpack.i.b16 %v1220, %v1219
        %v1224 = vpack.i.b16 %v1065, %v1040
        %v1225 = vshrl.u32 %v1040, 16
        %v1226 = vshrl.u32 %v1065, 16
        %v1227 = vpack.i.b16 %v1226, %v1225
        %v1230 = vpack.i.b16 %v1114, %v1089
        %v1231 = vshrl.u32 %v1089, 16
        %v1232 = vshrl.u32 %v1114, 16
        %v1233 = vpack.i.b16 %v1232, %v1231
        %v1236 = vpack.i.b16 %v1115, %v1090
        %v1237 = vshrl.u32 %v1090, 16
        %v1238 = vshrl.u32 %v1115, 16
        %v1239 = vpack.i.b16 %v1238, %v1237
        %v1242 = vpack.i.b16 %v1164, %v1139
        %v1243 = vshrl.u32 %v1139, 16
        %v1244 = vshrl.u32 %v1164, 16
        %v1245 = vpack.i.b16 %v1244, %v1243
        %v1248 = vpack.i.b16 %v1165, %v1140
        %v1249 = vshrl.u32 %v1140, 16
        %v1250 = vshrl.u32 %v1165, 16
        %v1251 = vpack.i.b16 %v1250, %v1249
        %v1254 = vpack.i.b16 %v1214, %v1189
        %v1255 = vshrl.u32 %v1189, 16
        %v1256 = vshrl.u32 %v1214, 16
        %v1257 = vpack.i.b16 %v1256, %v1255
        %v1260 = vpack.i.b16 %v1215, %v1190
        %v1261 = vshrl.u32 %v1190, 16
        %v1262 = vshrl.u32 %v1215, 16
        %v1263 = vpack.i.b16 %v1262, %v1261
        %1266 = vrot.lane.b32.xlu0 %v609, 112
        %v1267 = vpop.permute.xlu0 %1266
        %1268 = vrot.lane.b32.xlu0 %v610, 112
        %v1269 = vpop.permute.xlu0 %1268
        %1270 = vrot.lane.b32.xlu0 %v609, 96
        %v1271 = vpop.permute.xlu0 %1270
        %1272 = vrot.lane.b32.xlu0 %v610, 96
        %v1273 = vpop.permute.xlu0 %1272
        %1274 = vrot.lane.b32.xlu0 %v609, 80
        %v1275 = vpop.permute.xlu0 %1274
        %1276 = vrot.lane.b32.xlu0 %v610, 80
        %v1277 = vpop.permute.xlu0 %1276
        %v1280 = vpack.i.b16 %v1267, %v609
        %v1282 = vshrl.u32 %v609, 16
        %v1283 = vshrl.u32 %v1267, 16
        %v1284 = vpack.i.b16 %v1283, %v1282
        %v1288 = vpack.i.b16 %v1275, %v1271
        %v1290 = vshrl.u32 %v1271, 16
        %v1291 = vshrl.u32 %v1275, 16
        %v1292 = vpack.i.b16 %v1291, %v1290
        %v1296 = vpack.i.b16 %v1269, %v610
        %v1298 = vshrl.u32 %v610, 16
        %v1299 = vshrl.u32 %v1269, 16
        %v1300 = vpack.i.b16 %v1299, %v1298
        %v1304 = vpack.i.b16 %v1277, %v1273
        %v1306 = vshrl.u32 %v1273, 16
        %v1307 = vshrl.u32 %v1277, 16
        %v1308 = vpack.i.b16 %v1307, %v1306
        %v1310 = vcombine.high %v1280, %v731
        %v1312 = vunpack.c.l.s4 1983009808
        %v1313 = vunpack.c.0.s8 %v1312
        %v1314 = vlaneseq
        %v1315 = vshrl.u32 %v1314, 7
        %v1316 = vsub.s32 %v1313, %v1315
        %v1317 = vrot.slane %v1280, %v1316
        %v1319 = vunpack.c.l.s4 1983009808
        %v1320 = vunpack.c.0.s8 %v1319
        %v1321 = vlaneseq
        %v1322 = vshrl.u32 %v1321, 7
        %v1323 = vsub.s32 %v1320, %v1322
        %v1324 = vrot.slane %v1310, %v1323
        %v1325 = vcombine.high %v1288, %v731
        %v1327 = vunpack.c.l.s4 1983009808
        %v1328 = vunpack.c.0.s8 %v1327
        %v1329 = vlaneseq
        %v1330 = vshrl.u32 %v1329, 7
        %v1331 = vsub.s32 %v1328, %v1330
        %v1332 = vrot.slane %v1288, %v1331
        %v1334 = vunpack.c.l.s4 1983009808
        %v1335 = vunpack.c.0.s8 %v1334
        %v1336 = vlaneseq
        %v1337 = vshrl.u32 %v1336, 7
        %v1338 = vsub.s32 %v1335, %v1337
        %v1339 = vrot.slane %v1325, %v1338
        %v1340 = vcombine.low %v1317, %v1332
        %v1341 = vcombine.high %v1317, %v1332
        %v1343 = vunpack.c.l.s4 1934713408
        %v1344 = vunpack.c.0.s8 %v1343
        %v1345 = vlaneseq
        %v1346 = vshrl.u32 %v1345, 7
        %v1347 = vsub.s32 %v1344, %v1346
        %v1348 = vrot.slane %v1340, %v1347
        %v1350 = vunpack.c.l.s4 1934713408
        %v1351 = vunpack.c.0.s8 %v1350
        %v1352 = vlaneseq
        %v1353 = vshrl.u32 %v1352, 7
        %v1354 = vsub.s32 %v1351, %v1353
        %v1355 = vrot.slane %v1341, %v1354
        %v1356 = vcombine.low %v1324, %v1339
        %v1357 = vcombine.high %v1324, %v1339
        %v1359 = vunpack.c.l.s4 1934713408
        %v1360 = vunpack.c.0.s8 %v1359
        %v1361 = vlaneseq
        %v1362 = vshrl.u32 %v1361, 7
        %v1363 = vsub.s32 %v1360, %v1362
        %v1364 = vrot.slane %v1356, %v1363
        %v1366 = vunpack.c.l.s4 1934713408
        %v1367 = vunpack.c.0.s8 %v1366
        %v1368 = vlaneseq
        %v1369 = vshrl.u32 %v1368, 7
        %v1370 = vsub.s32 %v1367, %v1369
        %v1371 = vrot.slane %v1357, %v1370
        %v1372 = vcombine.high %v1348, 0
        %v1373 = vcombine.high %v1355, 0
        %v1374 = vcombine.high %v1364, 0
        %v1375 = vcombine.high %v1371, 0
        %v1376 = vcombine.high %v1284, %v734
        %v1378 = vunpack.c.l.s4 1983009808
        %v1379 = vunpack.c.0.s8 %v1378
        %v1380 = vlaneseq
        %v1381 = vshrl.u32 %v1380, 7
        %v1382 = vsub.s32 %v1379, %v1381
        %v1383 = vrot.slane %v1284, %v1382
        %v1385 = vunpack.c.l.s4 1983009808
        %v1386 = vunpack.c.0.s8 %v1385
        %v1387 = vlaneseq
        %v1388 = vshrl.u32 %v1387, 7
        %v1389 = vsub.s32 %v1386, %v1388
        %v1390 = vrot.slane %v1376, %v1389
        %v1391 = vcombine.high %v1292, %v734
        %v1393 = vunpack.c.l.s4 1983009808
        %v1394 = vunpack.c.0.s8 %v1393
        %v1395 = vlaneseq
        %v1396 = vshrl.u32 %v1395, 7
        %v1397 = vsub.s32 %v1394, %v1396
        %v1398 = vrot.slane %v1292, %v1397
        %v1400 = vunpack.c.l.s4 1983009808
        %v1401 = vunpack.c.0.s8 %v1400
        %v1402 = vlaneseq
        %v1403 = vshrl.u32 %v1402, 7
        %v1404 = vsub.s32 %v1401, %v1403
        %v1405 = vrot.slane %v1391, %v1404
        %v1406 = vcombine.low %v1383, %v1398
        %v1407 = vcombine.high %v1383, %v1398
        %v1409 = vunpack.c.l.s4 1934713408
        %v1410 = vunpack.c.0.s8 %v1409
        %v1411 = vlaneseq
        %v1412 = vshrl.u32 %v1411, 7
        %v1413 = vsub.s32 %v1410, %v1412
        %v1414 = vrot.slane %v1406, %v1413
        %v1416 = vunpack.c.l.s4 1934713408
        %v1417 = vunpack.c.0.s8 %v1416
        %v1418 = vlaneseq
        %v1419 = vshrl.u32 %v1418, 7
        %v1420 = vsub.s32 %v1417, %v1419
        %v1421 = vrot.slane %v1407, %v1420
        %v1422 = vcombine.low %v1390, %v1405
        %v1423 = vcombine.high %v1390, %v1405
        %v1425 = vunpack.c.l.s4 1934713408
        %v1426 = vunpack.c.0.s8 %v1425
        %v1427 = vlaneseq
        %v1428 = vshrl.u32 %v1427, 7
        %v1429 = vsub.s32 %v1426, %v1428
        %v1430 = vrot.slane %v1422, %v1429
        %v1432 = vunpack.c.l.s4 1934713408
        %v1433 = vunpack.c.0.s8 %v1432
        %v1434 = vlaneseq
        %v1435 = vshrl.u32 %v1434, 7
        %v1436 = vsub.s32 %v1433, %v1435
        %v1437 = vrot.slane %v1423, %v1436
        %v1438 = vcombine.high %v1414, 0
        %v1439 = vcombine.high %v1421, 0
        %v1440 = vcombine.high %v1430, 0
        %v1441 = vcombine.high %v1437, 0
        %v1442 = vcombine.high %v1296, %v731
        %v1444 = vunpack.c.l.s4 1983009808
        %v1445 = vunpack.c.0.s8 %v1444
        %v1446 = vlaneseq
        %v1447 = vshrl.u32 %v1446, 7
        %v1448 = vsub.s32 %v1445, %v1447
        %v1449 = vrot.slane %v1296, %v1448
        %v1451 = vunpack.c.l.s4 1983009808
        %v1452 = vunpack.c.0.s8 %v1451
        %v1453 = vlaneseq
        %v1454 = vshrl.u32 %v1453, 7
        %v1455 = vsub.s32 %v1452, %v1454
        %v1456 = vrot.slane %v1442, %v1455
        %v1457 = vcombine.high %v1304, %v731
        %v1459 = vunpack.c.l.s4 1983009808
        %v1460 = vunpack.c.0.s8 %v1459
        %v1461 = vlaneseq
        %v1462 = vshrl.u32 %v1461, 7
        %v1463 = vsub.s32 %v1460, %v1462
        %v1464 = vrot.slane %v1304, %v1463
        %v1466 = vunpack.c.l.s4 1983009808
        %v1467 = vunpack.c.0.s8 %v1466
        %v1468 = vlaneseq
        %v1469 = vshrl.u32 %v1468, 7
        %v1470 = vsub.s32 %v1467, %v1469
        %v1471 = vrot.slane %v1457, %v1470
        %v1472 = vcombine.low %v1449, %v1464
        %v1473 = vcombine.high %v1449, %v1464
        %v1475 = vunpack.c.l.s4 1934713408
        %v1476 = vunpack.c.0.s8 %v1475
        %v1477 = vlaneseq
        %v1478 = vshrl.u32 %v1477, 7
        %v1479 = vsub.s32 %v1476, %v1478
        %v1480 = vrot.slane %v1472, %v1479
        %v1482 = vunpack.c.l.s4 1934713408
        %v1483 = vunpack.c.0.s8 %v1482
        %v1484 = vlaneseq
        %v1485 = vshrl.u32 %v1484, 7
        %v1486 = vsub.s32 %v1483, %v1485
        %v1487 = vrot.slane %v1473, %v1486
        %v1488 = vcombine.low %v1456, %v1471
        %v1489 = vcombine.high %v1456, %v1471
        %v1491 = vunpack.c.l.s4 1934713408
        %v1492 = vunpack.c.0.s8 %v1491
        %v1493 = vlaneseq
        %v1494 = vshrl.u32 %v1493, 7
        %v1495 = vsub.s32 %v1492, %v1494
        %v1496 = vrot.slane %v1488, %v1495
        %v1498 = vunpack.c.l.s4 1934713408
        %v1499 = vunpack.c.0.s8 %v1498
        %v1500 = vlaneseq
        %v1501 = vshrl.u32 %v1500, 7
        %v1502 = vsub.s32 %v1499, %v1501
        %v1503 = vrot.slane %v1489, %v1502
        %v1504 = vcombine.high %v1480, 0
        %v1505 = vcombine.high %v1487, 0
        %v1506 = vcombine.high %v1496, 0
        %v1507 = vcombine.high %v1503, 0
        %v1508 = vcombine.high %v1300, %v734
        %v1510 = vunpack.c.l.s4 1983009808
        %v1511 = vunpack.c.0.s8 %v1510
        %v1512 = vlaneseq
        %v1513 = vshrl.u32 %v1512, 7
        %v1514 = vsub.s32 %v1511, %v1513
        %v1515 = vrot.slane %v1300, %v1514
        %v1517 = vunpack.c.l.s4 1983009808
        %v1518 = vunpack.c.0.s8 %v1517
        %v1519 = vlaneseq
        %v1520 = vshrl.u32 %v1519, 7
        %v1521 = vsub.s32 %v1518, %v1520
        %v1522 = vrot.slane %v1508, %v1521
        %v1523 = vcombine.high %v1308, %v734
        %v1525 = vunpack.c.l.s4 1983009808
        %v1526 = vunpack.c.0.s8 %v1525
        %v1527 = vlaneseq
        %v1528 = vshrl.u32 %v1527, 7
        %v1529 = vsub.s32 %v1526, %v1528
        %v1530 = vrot.slane %v1308, %v1529
        %v1532 = vunpack.c.l.s4 1983009808
        %v1533 = vunpack.c.0.s8 %v1532
        %v1534 = vlaneseq
        %v1535 = vshrl.u32 %v1534, 7
        %v1536 = vsub.s32 %v1533, %v1535
        %v1537 = vrot.slane %v1523, %v1536
        %v1538 = vcombine.low %v1515, %v1530
        %v1539 = vcombine.high %v1515, %v1530
        %v1541 = vunpack.c.l.s4 1934713408
        %v1542 = vunpack.c.0.s8 %v1541
        %v1543 = vlaneseq
        %v1544 = vshrl.u32 %v1543, 7
        %v1545 = vsub.s32 %v1542, %v1544
        %v1546 = vrot.slane %v1538, %v1545
        %v1548 = vunpack.c.l.s4 1934713408
        %v1549 = vunpack.c.0.s8 %v1548
        %v1550 = vlaneseq
        %v1551 = vshrl.u32 %v1550, 7
        %v1552 = vsub.s32 %v1549, %v1551
        %v1553 = vrot.slane %v1539, %v1552
        %v1554 = vcombine.low %v1522, %v1537
        %v1555 = vcombine.high %v1522, %v1537
        %v1557 = vunpack.c.l.s4 1934713408
        %v1558 = vunpack.c.0.s8 %v1557
        %v1559 = vlaneseq
        %v1560 = vshrl.u32 %v1559, 7
        %v1561 = vsub.s32 %v1558, %v1560
        %v1562 = vrot.slane %v1554, %v1561
        %v1564 = vunpack.c.l.s4 1934713408
        %v1565 = vunpack.c.0.s8 %v1564
        %v1566 = vlaneseq
        %v1567 = vshrl.u32 %v1566, 7
        %v1568 = vsub.s32 %v1565, %v1567
        %v1569 = vrot.slane %v1555, %v1568
        %v1570 = vcombine.high %v1546, 0
        %v1571 = vcombine.high %v1553, 0
        %v1572 = vcombine.high %v1562, 0
        %v1573 = vcombine.high %v1569, 0
        %v1574 = vcombine.low %v1348, %v1355
        %v1576 = vunpack.c.l.s4 1983009808
        %v1577 = vunpack.c.0.s8 %v1576
        %v1578 = vlaneseq
        %v1579 = vshrl.u32 %v1578, 7
        %v1580 = vsub.s32 %v1577, %v1579
        %v1581 = vrot.slane %v1574, %v1580
        %v1582 = vcombine.low %v1372, %v1373
        %v1584 = vunpack.c.l.s4 1983009808
        %v1585 = vunpack.c.0.s8 %v1584
        %v1586 = vlaneseq
        %v1587 = vshrl.u32 %v1586, 7
        %v1588 = vsub.s32 %v1585, %v1587
        %v1589 = vrot.slane %v1582, %v1588
        %v1590 = vcombine.low %v1581, %v1589
        %v1592 = vunpack.c.l.s4 1934713408
        %v1593 = vunpack.c.0.s8 %v1592
        %v1594 = vlaneseq
        %v1595 = vshrl.u32 %v1594, 7
        %v1596 = vsub.s32 %v1593, %v1595
        %v1597 = vrot.slane %v1590, %v1596
        %v1598 = vcombine.high %v1597, 0
        %v1599 = vcombine.low %v1414, %v1421
        %v1601 = vunpack.c.l.s4 1983009808
        %v1602 = vunpack.c.0.s8 %v1601
        %v1603 = vlaneseq
        %v1604 = vshrl.u32 %v1603, 7
        %v1605 = vsub.s32 %v1602, %v1604
        %v1606 = vrot.slane %v1599, %v1605
        %v1607 = vcombine.low %v1438, %v1439
        %v1609 = vunpack.c.l.s4 1983009808
        %v1610 = vunpack.c.0.s8 %v1609
        %v1611 = vlaneseq
        %v1612 = vshrl.u32 %v1611, 7
        %v1613 = vsub.s32 %v1610, %v1612
        %v1614 = vrot.slane %v1607, %v1613
        %v1615 = vcombine.low %v1606, %v1614
        %v1617 = vunpack.c.l.s4 1934713408
        %v1618 = vunpack.c.0.s8 %v1617
        %v1619 = vlaneseq
        %v1620 = vshrl.u32 %v1619, 7
        %v1621 = vsub.s32 %v1618, %v1620
        %v1622 = vrot.slane %v1615, %v1621
        %v1623 = vcombine.high %v1622, 0
        %v1624 = vcombine.low %v1364, %v1371
        %v1626 = vunpack.c.l.s4 1983009808
        %v1627 = vunpack.c.0.s8 %v1626
        %v1628 = vlaneseq
        %v1629 = vshrl.u32 %v1628, 7
        %v1630 = vsub.s32 %v1627, %v1629
        %v1631 = vrot.slane %v1624, %v1630
        %v1632 = vcombine.low %v1374, %v1375
        %v1634 = vunpack.c.l.s4 1983009808
        %v1635 = vunpack.c.0.s8 %v1634
        %v1636 = vlaneseq
        %v1637 = vshrl.u32 %v1636, 7
        %v1638 = vsub.s32 %v1635, %v1637
        %v1639 = vrot.slane %v1632, %v1638
        %v1640 = vcombine.low %v1631, %v1639
        %v1642 = vunpack.c.l.s4 1934713408
        %v1643 = vunpack.c.0.s8 %v1642
        %v1644 = vlaneseq
        %v1645 = vshrl.u32 %v1644, 7
        %v1646 = vsub.s32 %v1643, %v1645
        %v1647 = vrot.slane %v1640, %v1646
        %v1648 = vcombine.high %v1647, 0
        %v1649 = vcombine.low %v1430, %v1437
        %v1651 = vunpack.c.l.s4 1983009808
        %v1652 = vunpack.c.0.s8 %v1651
        %v1653 = vlaneseq
        %v1654 = vshrl.u32 %v1653, 7
        %v1655 = vsub.s32 %v1652, %v1654
        %v1656 = vrot.slane %v1649, %v1655
        %v1657 = vcombine.low %v1440, %v1441
        %v1659 = vunpack.c.l.s4 1983009808
        %v1660 = vunpack.c.0.s8 %v1659
        %v1661 = vlaneseq
        %v1662 = vshrl.u32 %v1661, 7
        %v1663 = vsub.s32 %v1660, %v1662
        %v1664 = vrot.slane %v1657, %v1663
        %v1665 = vcombine.low %v1656, %v1664
        %v1667 = vunpack.c.l.s4 1934713408
        %v1668 = vunpack.c.0.s8 %v1667
        %v1669 = vlaneseq
        %v1670 = vshrl.u32 %v1669, 7
        %v1671 = vsub.s32 %v1668, %v1670
        %v1672 = vrot.slane %v1665, %v1671
        %v1673 = vcombine.high %v1672, 0
        %v1674 = vcombine.low %v1480, %v1487
        %v1676 = vunpack.c.l.s4 1983009808
        %v1677 = vunpack.c.0.s8 %v1676
        %v1678 = vlaneseq
        %v1679 = vshrl.u32 %v1678, 7
        %v1680 = vsub.s32 %v1677, %v1679
        %v1681 = vrot.slane %v1674, %v1680
        %v1682 = vcombine.low %v1504, %v1505
        %v1684 = vunpack.c.l.s4 1983009808
        %v1685 = vunpack.c.0.s8 %v1684
        %v1686 = vlaneseq
        %v1687 = vshrl.u32 %v1686, 7
        %v1688 = vsub.s32 %v1685, %v1687
        %v1689 = vrot.slane %v1682, %v1688
        %v1690 = vcombine.low %v1681, %v1689
        %v1692 = vunpack.c.l.s4 1934713408
        %v1693 = vunpack.c.0.s8 %v1692
        %v1694 = vlaneseq
        %v1695 = vshrl.u32 %v1694, 7
        %v1696 = vsub.s32 %v1693, %v1695
        %v1697 = vrot.slane %v1690, %v1696
        %v1698 = vcombine.high %v1697, 0
        %v1699 = vcombine.low %v1546, %v1553
        %v1701 = vunpack.c.l.s4 1983009808
        %v1702 = vunpack.c.0.s8 %v1701
        %v1703 = vlaneseq
        %v1704 = vshrl.u32 %v1703, 7
        %v1705 = vsub.s32 %v1702, %v1704
        %v1706 = vrot.slane %v1699, %v1705
        %v1707 = vcombine.low %v1570, %v1571
        %v1709 = vunpack.c.l.s4 1983009808
        %v1710 = vunpack.c.0.s8 %v1709
        %v1711 = vlaneseq
        %v1712 = vshrl.u32 %v1711, 7
        %v1713 = vsub.s32 %v1710, %v1712
        %v1714 = vrot.slane %v1707, %v1713
        %v1715 = vcombine.low %v1706, %v1714
        %v1717 = vunpack.c.l.s4 1934713408
        %v1718 = vunpack.c.0.s8 %v1717
        %v1719 = vlaneseq
        %v1720 = vshrl.u32 %v1719, 7
        %v1721 = vsub.s32 %v1718, %v1720
        %v1722 = vrot.slane %v1715, %v1721
        %v1723 = vcombine.high %v1722, 0
        %v1724 = vcombine.low %v1496, %v1503
        %v1726 = vunpack.c.l.s4 1983009808
        %v1727 = vunpack.c.0.s8 %v1726
        %v1728 = vlaneseq
        %v1729 = vshrl.u32 %v1728, 7
        %v1730 = vsub.s32 %v1727, %v1729
        %v1731 = vrot.slane %v1724, %v1730
        %v1732 = vcombine.low %v1506, %v1507
        %v1734 = vunpack.c.l.s4 1983009808
        %v1735 = vunpack.c.0.s8 %v1734
        %v1736 = vlaneseq
        %v1737 = vshrl.u32 %v1736, 7
        %v1738 = vsub.s32 %v1735, %v1737
        %v1739 = vrot.slane %v1732, %v1738
        %v1740 = vcombine.low %v1731, %v1739
        %v1742 = vunpack.c.l.s4 1934713408
        %v1743 = vunpack.c.0.s8 %v1742
        %v1744 = vlaneseq
        %v1745 = vshrl.u32 %v1744, 7
        %v1746 = vsub.s32 %v1743, %v1745
        %v1747 = vrot.slane %v1740, %v1746
        %v1748 = vcombine.high %v1747, 0
        %v1749 = vcombine.low %v1562, %v1569
        %v1751 = vunpack.c.l.s4 1983009808
        %v1752 = vunpack.c.0.s8 %v1751
        %v1753 = vlaneseq
        %v1754 = vshrl.u32 %v1753, 7
        %v1755 = vsub.s32 %v1752, %v1754
        %v1756 = vrot.slane %v1749, %v1755
        %v1757 = vcombine.low %v1572, %v1573
        %v1759 = vunpack.c.l.s4 1983009808
        %v1760 = vunpack.c.0.s8 %v1759
        %v1761 = vlaneseq
        %v1762 = vshrl.u32 %v1761, 7
        %v1763 = vsub.s32 %v1760, %v1762
        %v1764 = vrot.slane %v1757, %v1763
        %v1765 = vcombine.low %v1756, %v1764
        %v1767 = vunpack.c.l.s4 1934713408
        %v1768 = vunpack.c.0.s8 %v1767
        %v1769 = vlaneseq
        %v1770 = vshrl.u32 %v1769, 7
        %v1771 = vsub.s32 %v1768, %v1770
        %v1772 = vrot.slane %v1765, %v1771
        %v1773 = vcombine.high %v1772, 0
        %v1776 = vpack.i.b16 %v1622, %v1597
        %v1777 = vshrl.u32 %v1597, 16
        %v1778 = vshrl.u32 %v1622, 16
        %v1779 = vpack.i.b16 %v1778, %v1777
        %v1782 = vpack.i.b16 %v1623, %v1598
        %v1783 = vshrl.u32 %v1598, 16
        %v1784 = vshrl.u32 %v1623, 16
        %v1785 = vpack.i.b16 %v1784, %v1783
        %v1788 = vpack.i.b16 %v1672, %v1647
        %v1789 = vshrl.u32 %v1647, 16
        %v1790 = vshrl.u32 %v1672, 16
        %v1791 = vpack.i.b16 %v1790, %v1789
        %v1794 = vpack.i.b16 %v1673, %v1648
        %v1795 = vshrl.u32 %v1648, 16
        %v1796 = vshrl.u32 %v1673, 16
        %v1797 = vpack.i.b16 %v1796, %v1795
        %v1800 = vpack.i.b16 %v1722, %v1697
        %v1801 = vshrl.u32 %v1697, 16
        %v1802 = vshrl.u32 %v1722, 16
        %v1803 = vpack.i.b16 %v1802, %v1801
        %v1806 = vpack.i.b16 %v1723, %v1698
        %v1807 = vshrl.u32 %v1698, 16
        %v1808 = vshrl.u32 %v1723, 16
        %v1809 = vpack.i.b16 %v1808, %v1807
        %v1812 = vpack.i.b16 %v1772, %v1747
        %v1813 = vshrl.u32 %v1747, 16
        %v1814 = vshrl.u32 %v1772, 16
        %v1815 = vpack.i.b16 %v1814, %v1813
        %v1818 = vpack.i.b16 %v1773, %v1748
        %v1819 = vshrl.u32 %v1748, 16
        %v1820 = vshrl.u32 %v1773, 16
        %v1821 = vpack.i.b16 %v1820, %v1819
        %1824 = vrot.lane.b32.xlu0 %v698, 112
        %v1825 = vpop.permute.xlu0 %1824
        %1826 = vrot.lane.b32.xlu0 %v699, 112
        %v1827 = vpop.permute.xlu0 %1826
        %1828 = vrot.lane.b32.xlu0 %v698, 96
        %v1829 = vpop.permute.xlu0 %1828
        %1830 = vrot.lane.b32.xlu0 %v699, 96
        %v1831 = vpop.permute.xlu0 %1830
        %1832 = vrot.lane.b32.xlu0 %v698, 80
        %v1833 = vpop.permute.xlu0 %1832
        %1834 = vrot.lane.b32.xlu0 %v699, 80
        %v1835 = vpop.permute.xlu0 %1834
        %v1838 = vpack.i.b16 %v1825, %v698
        %v1840 = vshrl.u32 %v698, 16
        %v1841 = vshrl.u32 %v1825, 16
        %v1842 = vpack.i.b16 %v1841, %v1840
        %v1846 = vpack.i.b16 %v1833, %v1829
        %v1848 = vshrl.u32 %v1829, 16
        %v1849 = vshrl.u32 %v1833, 16
        %v1850 = vpack.i.b16 %v1849, %v1848
        %v1854 = vpack.i.b16 %v1827, %v699
        %v1856 = vshrl.u32 %v699, 16
        %v1857 = vshrl.u32 %v1827, 16
        %v1858 = vpack.i.b16 %v1857, %v1856
        %v1862 = vpack.i.b16 %v1835, %v1831
        %v1864 = vshrl.u32 %v1831, 16
        %v1865 = vshrl.u32 %v1835, 16
        %v1866 = vpack.i.b16 %v1865, %v1864
        %v1868 = vcombine.high %v1838, %v731
        %v1870 = vunpack.c.l.s4 1983009808
        %v1871 = vunpack.c.0.s8 %v1870
        %v1872 = vlaneseq
        %v1873 = vshrl.u32 %v1872, 7
        %v1874 = vsub.s32 %v1871, %v1873
        %v1875 = vrot.slane %v1838, %v1874
        %v1877 = vunpack.c.l.s4 1983009808
        %v1878 = vunpack.c.0.s8 %v1877
        %v1879 = vlaneseq
        %v1880 = vshrl.u32 %v1879, 7
        %v1881 = vsub.s32 %v1878, %v1880
        %v1882 = vrot.slane %v1868, %v1881
        %v1883 = vcombine.high %v1846, %v731
        %v1885 = vunpack.c.l.s4 1983009808
        %v1886 = vunpack.c.0.s8 %v1885
        %v1887 = vlaneseq
        %v1888 = vshrl.u32 %v1887, 7
        %v1889 = vsub.s32 %v1886, %v1888
        %v1890 = vrot.slane %v1846, %v1889
        %v1892 = vunpack.c.l.s4 1983009808
        %v1893 = vunpack.c.0.s8 %v1892
        %v1894 = vlaneseq
        %v1895 = vshrl.u32 %v1894, 7
        %v1896 = vsub.s32 %v1893, %v1895
        %v1897 = vrot.slane %v1883, %v1896
        %v1898 = vcombine.low %v1875, %v1890
        %v1899 = vcombine.high %v1875, %v1890
        %v1901 = vunpack.c.l.s4 1934713408
        %v1902 = vunpack.c.0.s8 %v1901
        %v1903 = vlaneseq
        %v1904 = vshrl.u32 %v1903, 7
        %v1905 = vsub.s32 %v1902, %v1904
        %v1906 = vrot.slane %v1898, %v1905
        %v1908 = vunpack.c.l.s4 1934713408
        %v1909 = vunpack.c.0.s8 %v1908
        %v1910 = vlaneseq
        %v1911 = vshrl.u32 %v1910, 7
        %v1912 = vsub.s32 %v1909, %v1911
        %v1913 = vrot.slane %v1899, %v1912
        %v1914 = vcombine.low %v1882, %v1897
        %v1915 = vcombine.high %v1882, %v1897
        %v1917 = vunpack.c.l.s4 1934713408
        %v1918 = vunpack.c.0.s8 %v1917
        %v1919 = vlaneseq
        %v1920 = vshrl.u32 %v1919, 7
        %v1921 = vsub.s32 %v1918, %v1920
        %v1922 = vrot.slane %v1914, %v1921
        %v1924 = vunpack.c.l.s4 1934713408
        %v1925 = vunpack.c.0.s8 %v1924
        %v1926 = vlaneseq
        %v1927 = vshrl.u32 %v1926, 7
        %v1928 = vsub.s32 %v1925, %v1927
        %v1929 = vrot.slane %v1915, %v1928
        %v1930 = vcombine.high %v1906, 0
        %v1931 = vcombine.high %v1913, 0
        %v1932 = vcombine.high %v1922, 0
        %v1933 = vcombine.high %v1929, 0
        %v1934 = vcombine.high %v1842, %v734
        %v1936 = vunpack.c.l.s4 1983009808
        %v1937 = vunpack.c.0.s8 %v1936
        %v1938 = vlaneseq
        %v1939 = vshrl.u32 %v1938, 7
        %v1940 = vsub.s32 %v1937, %v1939
        %v1941 = vrot.slane %v1842, %v1940
        %v1943 = vunpack.c.l.s4 1983009808
        %v1944 = vunpack.c.0.s8 %v1943
        %v1945 = vlaneseq
        %v1946 = vshrl.u32 %v1945, 7
        %v1947 = vsub.s32 %v1944, %v1946
        %v1948 = vrot.slane %v1934, %v1947
        %v1949 = vcombine.high %v1850, %v734
        %v1951 = vunpack.c.l.s4 1983009808
        %v1952 = vunpack.c.0.s8 %v1951
        %v1953 = vlaneseq
        %v1954 = vshrl.u32 %v1953, 7
        %v1955 = vsub.s32 %v1952, %v1954
        %v1956 = vrot.slane %v1850, %v1955
        %v1958 = vunpack.c.l.s4 1983009808
        %v1959 = vunpack.c.0.s8 %v1958
        %v1960 = vlaneseq
        %v1961 = vshrl.u32 %v1960, 7
        %v1962 = vsub.s32 %v1959, %v1961
        %v1963 = vrot.slane %v1949, %v1962
        %v1964 = vcombine.low %v1941, %v1956
        %v1965 = vcombine.high %v1941, %v1956
        %v1967 = vunpack.c.l.s4 1934713408
        %v1968 = vunpack.c.0.s8 %v1967
        %v1969 = vlaneseq
        %v1970 = vshrl.u32 %v1969, 7
        %v1971 = vsub.s32 %v1968, %v1970
        %v1972 = vrot.slane %v1964, %v1971
        %v1974 = vunpack.c.l.s4 1934713408
        %v1975 = vunpack.c.0.s8 %v1974
        %v1976 = vlaneseq
        %v1977 = vshrl.u32 %v1976, 7
        %v1978 = vsub.s32 %v1975, %v1977
        %v1979 = vrot.slane %v1965, %v1978
        %v1980 = vcombine.low %v1948, %v1963
        %v1981 = vcombine.high %v1948, %v1963
        %v1983 = vunpack.c.l.s4 1934713408
        %v1984 = vunpack.c.0.s8 %v1983
        %v1985 = vlaneseq
        %v1986 = vshrl.u32 %v1985, 7
        %v1987 = vsub.s32 %v1984, %v1986
        %v1988 = vrot.slane %v1980, %v1987
        %v1990 = vunpack.c.l.s4 1934713408
        %v1991 = vunpack.c.0.s8 %v1990
        %v1992 = vlaneseq
        %v1993 = vshrl.u32 %v1992, 7
        %v1994 = vsub.s32 %v1991, %v1993
        %v1995 = vrot.slane %v1981, %v1994
        %v1996 = vcombine.high %v1972, 0
        %v1997 = vcombine.high %v1979, 0
        %v1998 = vcombine.high %v1988, 0
        %v1999 = vcombine.high %v1995, 0
        %v2000 = vcombine.high %v1854, %v731
        %v2002 = vunpack.c.l.s4 1983009808
        %v2003 = vunpack.c.0.s8 %v2002
        %v2004 = vlaneseq
        %v2005 = vshrl.u32 %v2004, 7
        %v2006 = vsub.s32 %v2003, %v2005
        %v2007 = vrot.slane %v1854, %v2006
        %v2009 = vunpack.c.l.s4 1983009808
        %v2010 = vunpack.c.0.s8 %v2009
        %v2011 = vlaneseq
        %v2012 = vshrl.u32 %v2011, 7
        %v2013 = vsub.s32 %v2010, %v2012
        %v2014 = vrot.slane %v2000, %v2013
        %v2015 = vcombine.high %v1862, %v731
        %v2017 = vunpack.c.l.s4 1983009808
        %v2018 = vunpack.c.0.s8 %v2017
        %v2019 = vlaneseq
        %v2020 = vshrl.u32 %v2019, 7
        %v2021 = vsub.s32 %v2018, %v2020
        %v2022 = vrot.slane %v1862, %v2021
        %v2024 = vunpack.c.l.s4 1983009808
        %v2025 = vunpack.c.0.s8 %v2024
        %v2026 = vlaneseq
        %v2027 = vshrl.u32 %v2026, 7
        %v2028 = vsub.s32 %v2025, %v2027
        %v2029 = vrot.slane %v2015, %v2028
        %v2030 = vcombine.low %v2007, %v2022
        %v2031 = vcombine.high %v2007, %v2022
        %v2033 = vunpack.c.l.s4 1934713408
        %v2034 = vunpack.c.0.s8 %v2033
        %v2035 = vlaneseq
        %v2036 = vshrl.u32 %v2035, 7
        %v2037 = vsub.s32 %v2034, %v2036
        %v2038 = vrot.slane %v2030, %v2037
        %v2040 = vunpack.c.l.s4 1934713408
        %v2041 = vunpack.c.0.s8 %v2040
        %v2042 = vlaneseq
        %v2043 = vshrl.u32 %v2042, 7
        %v2044 = vsub.s32 %v2041, %v2043
        %v2045 = vrot.slane %v2031, %v2044
        %v2046 = vcombine.low %v2014, %v2029
        %v2047 = vcombine.high %v2014, %v2029
        %v2049 = vunpack.c.l.s4 1934713408
        %v2050 = vunpack.c.0.s8 %v2049
        %v2051 = vlaneseq
        %v2052 = vshrl.u32 %v2051, 7
        %v2053 = vsub.s32 %v2050, %v2052
        %v2054 = vrot.slane %v2046, %v2053
        %v2056 = vunpack.c.l.s4 1934713408
        %v2057 = vunpack.c.0.s8 %v2056
        %v2058 = vlaneseq
        %v2059 = vshrl.u32 %v2058, 7
        %v2060 = vsub.s32 %v2057, %v2059
        %v2061 = vrot.slane %v2047, %v2060
        %v2062 = vcombine.high %v2038, 0
        %v2063 = vcombine.high %v2045, 0
        %v2064 = vcombine.high %v2054, 0
        %v2065 = vcombine.high %v2061, 0
        %v2066 = vcombine.high %v1858, %v734
        %v2068 = vunpack.c.l.s4 1983009808
        %v2069 = vunpack.c.0.s8 %v2068
        %v2070 = vlaneseq
        %v2071 = vshrl.u32 %v2070, 7
        %v2072 = vsub.s32 %v2069, %v2071
        %v2073 = vrot.slane %v1858, %v2072
        %v2075 = vunpack.c.l.s4 1983009808
        %v2076 = vunpack.c.0.s8 %v2075
        %v2077 = vlaneseq
        %v2078 = vshrl.u32 %v2077, 7
        %v2079 = vsub.s32 %v2076, %v2078
        %v2080 = vrot.slane %v2066, %v2079
        %v2081 = vcombine.high %v1866, %v734
        %v2083 = vunpack.c.l.s4 1983009808
        %v2084 = vunpack.c.0.s8 %v2083
        %v2085 = vlaneseq
        %v2086 = vshrl.u32 %v2085, 7
        %v2087 = vsub.s32 %v2084, %v2086
        %v2088 = vrot.slane %v1866, %v2087
        %v2090 = vunpack.c.l.s4 1983009808
        %v2091 = vunpack.c.0.s8 %v2090
        %v2092 = vlaneseq
        %v2093 = vshrl.u32 %v2092, 7
        %v2094 = vsub.s32 %v2091, %v2093
        %v2095 = vrot.slane %v2081, %v2094
        %v2096 = vcombine.low %v2073, %v2088
        %v2097 = vcombine.high %v2073, %v2088
        %v2099 = vunpack.c.l.s4 1934713408
        %v2100 = vunpack.c.0.s8 %v2099
        %v2101 = vlaneseq
        %v2102 = vshrl.u32 %v2101, 7
        %v2103 = vsub.s32 %v2100, %v2102
        %v2104 = vrot.slane %v2096, %v2103
        %v2106 = vunpack.c.l.s4 1934713408
        %v2107 = vunpack.c.0.s8 %v2106
        %v2108 = vlaneseq
        %v2109 = vshrl.u32 %v2108, 7
        %v2110 = vsub.s32 %v2107, %v2109
        %v2111 = vrot.slane %v2097, %v2110
        %v2112 = vcombine.low %v2080, %v2095
        %v2113 = vcombine.high %v2080, %v2095
        %v2115 = vunpack.c.l.s4 1934713408
        %v2116 = vunpack.c.0.s8 %v2115
        %v2117 = vlaneseq
        %v2118 = vshrl.u32 %v2117, 7
        %v2119 = vsub.s32 %v2116, %v2118
        %v2120 = vrot.slane %v2112, %v2119
        %v2122 = vunpack.c.l.s4 1934713408
        %v2123 = vunpack.c.0.s8 %v2122
        %v2124 = vlaneseq
        %v2125 = vshrl.u32 %v2124, 7
        %v2126 = vsub.s32 %v2123, %v2125
        %v2127 = vrot.slane %v2113, %v2126
        %v2128 = vcombine.high %v2104, 0
        %v2129 = vcombine.high %v2111, 0
        %v2130 = vcombine.high %v2120, 0
        %v2131 = vcombine.high %v2127, 0
        %v2132 = vcombine.low %v1906, %v1913
        %v2134 = vunpack.c.l.s4 1983009808
        %v2135 = vunpack.c.0.s8 %v2134
        %v2136 = vlaneseq
        %v2137 = vshrl.u32 %v2136, 7
        %v2138 = vsub.s32 %v2135, %v2137
        %v2139 = vrot.slane %v2132, %v2138
        %v2140 = vcombine.low %v1930, %v1931
        %v2142 = vunpack.c.l.s4 1983009808
        %v2143 = vunpack.c.0.s8 %v2142
        %v2144 = vlaneseq
        %v2145 = vshrl.u32 %v2144, 7
        %v2146 = vsub.s32 %v2143, %v2145
        %v2147 = vrot.slane %v2140, %v2146
        %v2148 = vcombine.low %v2139, %v2147
        %v2150 = vunpack.c.l.s4 1934713408
        %v2151 = vunpack.c.0.s8 %v2150
        %v2152 = vlaneseq
        %v2153 = vshrl.u32 %v2152, 7
        %v2154 = vsub.s32 %v2151, %v2153
        %v2155 = vrot.slane %v2148, %v2154
        %v2156 = vcombine.high %v2155, 0
        %v2157 = vcombine.low %v1972, %v1979
        %v2159 = vunpack.c.l.s4 1983009808
        %v2160 = vunpack.c.0.s8 %v2159
        %v2161 = vlaneseq
        %v2162 = vshrl.u32 %v2161, 7
        %v2163 = vsub.s32 %v2160, %v2162
        %v2164 = vrot.slane %v2157, %v2163
        %v2165 = vcombine.low %v1996, %v1997
        %v2167 = vunpack.c.l.s4 1983009808
        %v2168 = vunpack.c.0.s8 %v2167
        %v2169 = vlaneseq
        %v2170 = vshrl.u32 %v2169, 7
        %v2171 = vsub.s32 %v2168, %v2170
        %v2172 = vrot.slane %v2165, %v2171
        %v2173 = vcombine.low %v2164, %v2172
        %v2175 = vunpack.c.l.s4 1934713408
        %v2176 = vunpack.c.0.s8 %v2175
        %v2177 = vlaneseq
        %v2178 = vshrl.u32 %v2177, 7
        %v2179 = vsub.s32 %v2176, %v2178
        %v2180 = vrot.slane %v2173, %v2179
        %v2181 = vcombine.high %v2180, 0
        %v2182 = vcombine.low %v1922, %v1929
        %v2184 = vunpack.c.l.s4 1983009808
        %v2185 = vunpack.c.0.s8 %v2184
        %v2186 = vlaneseq
        %v2187 = vshrl.u32 %v2186, 7
        %v2188 = vsub.s32 %v2185, %v2187
        %v2189 = vrot.slane %v2182, %v2188
        %v2190 = vcombine.low %v1932, %v1933
        %v2192 = vunpack.c.l.s4 1983009808
        %v2193 = vunpack.c.0.s8 %v2192
        %v2194 = vlaneseq
        %v2195 = vshrl.u32 %v2194, 7
        %v2196 = vsub.s32 %v2193, %v2195
        %v2197 = vrot.slane %v2190, %v2196
        %v2198 = vcombine.low %v2189, %v2197
        %v2200 = vunpack.c.l.s4 1934713408
        %v2201 = vunpack.c.0.s8 %v2200
        %v2202 = vlaneseq
        %v2203 = vshrl.u32 %v2202, 7
        %v2204 = vsub.s32 %v2201, %v2203
        %v2205 = vrot.slane %v2198, %v2204
        %v2206 = vcombine.high %v2205, 0
        %v2207 = vcombine.low %v1988, %v1995
        %v2209 = vunpack.c.l.s4 1983009808
        %v2210 = vunpack.c.0.s8 %v2209
        %v2211 = vlaneseq
        %v2212 = vshrl.u32 %v2211, 7
        %v2213 = vsub.s32 %v2210, %v2212
        %v2214 = vrot.slane %v2207, %v2213
        %v2215 = vcombine.low %v1998, %v1999
        %v2217 = vunpack.c.l.s4 1983009808
        %v2218 = vunpack.c.0.s8 %v2217
        %v2219 = vlaneseq
        %v2220 = vshrl.u32 %v2219, 7
        %v2221 = vsub.s32 %v2218, %v2220
        %v2222 = vrot.slane %v2215, %v2221
        %v2223 = vcombine.low %v2214, %v2222
        %v2225 = vunpack.c.l.s4 1934713408
        %v2226 = vunpack.c.0.s8 %v2225
        %v2227 = vlaneseq
        %v2228 = vshrl.u32 %v2227, 7
        %v2229 = vsub.s32 %v2226, %v2228
        %v2230 = vrot.slane %v2223, %v2229
        %v2231 = vcombine.high %v2230, 0
        %v2232 = vcombine.low %v2038, %v2045
        %v2234 = vunpack.c.l.s4 1983009808
        %v2235 = vunpack.c.0.s8 %v2234
        %v2236 = vlaneseq
        %v2237 = vshrl.u32 %v2236, 7
        %v2238 = vsub.s32 %v2235, %v2237
        %v2239 = vrot.slane %v2232, %v2238
        %v2240 = vcombine.low %v2062, %v2063
        %v2242 = vunpack.c.l.s4 1983009808
        %v2243 = vunpack.c.0.s8 %v2242
        %v2244 = vlaneseq
        %v2245 = vshrl.u32 %v2244, 7
        %v2246 = vsub.s32 %v2243, %v2245
        %v2247 = vrot.slane %v2240, %v2246
        %v2248 = vcombine.low %v2239, %v2247
        %v2250 = vunpack.c.l.s4 1934713408
        %v2251 = vunpack.c.0.s8 %v2250
        %v2252 = vlaneseq
        %v2253 = vshrl.u32 %v2252, 7
        %v2254 = vsub.s32 %v2251, %v2253
        %v2255 = vrot.slane %v2248, %v2254
        %v2256 = vcombine.high %v2255, 0
        %v2257 = vcombine.low %v2104, %v2111
        %v2259 = vunpack.c.l.s4 1983009808
        %v2260 = vunpack.c.0.s8 %v2259
        %v2261 = vlaneseq
        %v2262 = vshrl.u32 %v2261, 7
        %v2263 = vsub.s32 %v2260, %v2262
        %v2264 = vrot.slane %v2257, %v2263
        %v2265 = vcombine.low %v2128, %v2129
        %v2267 = vunpack.c.l.s4 1983009808
        %v2268 = vunpack.c.0.s8 %v2267
        %v2269 = vlaneseq
        %v2270 = vshrl.u32 %v2269, 7
        %v2271 = vsub.s32 %v2268, %v2270
        %v2272 = vrot.slane %v2265, %v2271
        %v2273 = vcombine.low %v2264, %v2272
        %v2275 = vunpack.c.l.s4 1934713408
        %v2276 = vunpack.c.0.s8 %v2275
        %v2277 = vlaneseq
        %v2278 = vshrl.u32 %v2277, 7
        %v2279 = vsub.s32 %v2276, %v2278
        %v2280 = vrot.slane %v2273, %v2279
        %v2281 = vcombine.high %v2280, 0
        %v2282 = vcombine.low %v2054, %v2061
        %v2284 = vunpack.c.l.s4 1983009808
        %v2285 = vunpack.c.0.s8 %v2284
        %v2286 = vlaneseq
        %v2287 = vshrl.u32 %v2286, 7
        %v2288 = vsub.s32 %v2285, %v2287
        %v2289 = vrot.slane %v2282, %v2288
        %v2290 = vcombine.low %v2064, %v2065
        %v2292 = vunpack.c.l.s4 1983009808
        %v2293 = vunpack.c.0.s8 %v2292
        %v2294 = vlaneseq
        %v2295 = vshrl.u32 %v2294, 7
        %v2296 = vsub.s32 %v2293, %v2295
        %v2297 = vrot.slane %v2290, %v2296
        %v2298 = vcombine.low %v2289, %v2297
        %v2300 = vunpack.c.l.s4 1934713408
        %v2301 = vunpack.c.0.s8 %v2300
        %v2302 = vlaneseq
        %v2303 = vshrl.u32 %v2302, 7
        %v2304 = vsub.s32 %v2301, %v2303
        %v2305 = vrot.slane %v2298, %v2304
        %v2306 = vcombine.high %v2305, 0
        %v2307 = vcombine.low %v2120, %v2127
        %v2309 = vunpack.c.l.s4 1983009808
        %v2310 = vunpack.c.0.s8 %v2309
        %v2311 = vlaneseq
        %v2312 = vshrl.u32 %v2311, 7
        %v2313 = vsub.s32 %v2310, %v2312
        %v2314 = vrot.slane %v2307, %v2313
        %v2315 = vcombine.low %v2130, %v2131
        %v2317 = vunpack.c.l.s4 1983009808
        %v2318 = vunpack.c.0.s8 %v2317
        %v2319 = vlaneseq
        %v2320 = vshrl.u32 %v2319, 7
        %v2321 = vsub.s32 %v2318, %v2320
        %v2322 = vrot.slane %v2315, %v2321
        %v2323 = vcombine.low %v2314, %v2322
        %v2325 = vunpack.c.l.s4 1934713408
        %v2326 = vunpack.c.0.s8 %v2325
        %v2327 = vlaneseq
        %v2328 = vshrl.u32 %v2327, 7
        %v2329 = vsub.s32 %v2326, %v2328
        %v2330 = vrot.slane %v2323, %v2329
        %v2331 = vcombine.high %v2330, 0
        %v2334 = vpack.i.b16 %v2180, %v2155
        %v2335 = vshrl.u32 %v2155, 16
        %v2336 = vshrl.u32 %v2180, 16
        %v2337 = vpack.i.b16 %v2336, %v2335
        %v2340 = vpack.i.b16 %v2181, %v2156
        %v2341 = vshrl.u32 %v2156, 16
        %v2342 = vshrl.u32 %v2181, 16
        %v2343 = vpack.i.b16 %v2342, %v2341
        %v2346 = vpack.i.b16 %v2230, %v2205
        %v2347 = vshrl.u32 %v2205, 16
        %v2348 = vshrl.u32 %v2230, 16
        %v2349 = vpack.i.b16 %v2348, %v2347
        %v2352 = vpack.i.b16 %v2231, %v2206
        %v2353 = vshrl.u32 %v2206, 16
        %v2354 = vshrl.u32 %v2231, 16
        %v2355 = vpack.i.b16 %v2354, %v2353
        %v2358 = vpack.i.b16 %v2280, %v2255
        %v2359 = vshrl.u32 %v2255, 16
        %v2360 = vshrl.u32 %v2280, 16
        %v2361 = vpack.i.b16 %v2360, %v2359
        %v2364 = vpack.i.b16 %v2281, %v2256
        %v2365 = vshrl.u32 %v2256, 16
        %v2366 = vshrl.u32 %v2281, 16
        %v2367 = vpack.i.b16 %v2366, %v2365
        %v2370 = vpack.i.b16 %v2330, %v2305
        %v2371 = vshrl.u32 %v2305, 16
        %v2372 = vshrl.u32 %v2330, 16
        %v2373 = vpack.i.b16 %v2372, %v2371
        %v2376 = vpack.i.b16 %v2331, %v2306
        %v2377 = vshrl.u32 %v2306, 16
        %v2378 = vshrl.u32 %v2331, 16
        %v2379 = vpack.i.b16 %v2378, %v2377
        %vm2380 = vcmask 130048
        %v2382 = vsel %vm2380, %v1218, 0
        %v2385 = vsel %vm2380, %v1776, 0
        %2387 = vmatprep.subr.bf16.mxu0 0
        %2388 = vmatpush1.bf16.xpose.msra.mxu0 0
        %2389 = vmatprep.subr.bf16.mxu0 0
        %2390 = vmatpush1.bf16.xpose.msra.mxu0 0
        %2391 = vmatprep.subr.bf16.mxu0 0
        %2392 = vmatpush1.bf16.xpose.msra.mxu0 0
        %2393 = vmatprep.subr.bf16.mxu0 0
        %2394 = vmatpush1.bf16.xpose.msra.mxu0 0
        %2395 = vmatprep.subr.bf16.mxu0 0
        %2396 = vmatpush1.bf16.xpose.msra.mxu0 0
        %2397 = vmatprep.subr.bf16.mxu0 0
        %2398 = vmatpush1.bf16.xpose.msra.mxu0 0
        %2399 = vmatprep.subr.bf16.mxu0 0
        %2400 = vmatpush1.bf16.xpose.msra.mxu0 0
        %2401 = vmatprep.subr.bf16.mxu0 0
        %2402 = vmatpush1.bf16.xpose.msra.mxu0 %v2385
        %2403 = vmatprep.subr.bf16.mxu0 0
        %2404 = vmatpush2.bf16.xpose.msra.mxu0 0
        %2405 = vmatprep.subr.bf16.mxu0 0
        %2406 = vmatpush2.bf16.xpose.msra.mxu0 0
        %2407 = vmatprep.subr.bf16.mxu0 0
        %2408 = vmatpush2.bf16.xpose.msra.mxu0 0
        %2409 = vmatprep.subr.bf16.mxu0 0
        %2410 = vmatpush2.bf16.xpose.msra.mxu0 0
        %2411 = vmatprep.subr.bf16.mxu0 0
        %2412 = vmatpush2.bf16.xpose.msra.mxu0 0
        %2413 = vmatprep.subr.bf16.mxu0 0
        %2414 = vmatpush2.bf16.xpose.msra.mxu0 0
        %2415 = vmatprep.subr.bf16.mxu0 0
        %2416 = vmatpush2.bf16.xpose.msra.mxu0 0
        %2417 = vmatprep.subr.bf16.mxu0 0
        %2418 = vmatpush2.bf16.xpose.msra.mxu0 0
        %2419 = vmatprep.mubr.bf16.mxu0 0
        %2420 = vmatmul.mubr.bf16.gmra.mxu0 %v2382
        %v2421 = vpop.f32.mrf.mxu0
        %v2422 = vadd.f32 0.0, %v2421
        %v2423 = vpop.f32.mrf.mxu0
        %v2424 = vpop.f32.mrf.mxu0
        %v2425 = vpop.f32.mrf.mxu0
        %2426 = vdwg.mxu0
        %v2428 = vsel %vm2380, %v1221, 0
        %v2431 = vsel %vm2380, %v1779, 0
        %2433 = vmatprep.subr.bf16.mxu0 0
        %2434 = vmatpush1.bf16.xpose.msra.mxu0 0
        %2435 = vmatprep.subr.bf16.mxu0 0
        %2436 = vmatpush1.bf16.xpose.msra.mxu0 0
        %2437 = vmatprep.subr.bf16.mxu0 0
        %2438 = vmatpush1.bf16.xpose.msra.mxu0 0
        %2439 = vmatprep.subr.bf16.mxu0 0
        %2440 = vmatpush1.bf16.xpose.msra.mxu0 0
        %2441 = vmatprep.subr.bf16.mxu0 0
        %2442 = vmatpush1.bf16.xpose.msra.mxu0 0
        %2443 = vmatprep.subr.bf16.mxu0 0
        %2444 = vmatpush1.bf16.xpose.msra.mxu0 0
        %2445 = vmatprep.subr.bf16.mxu0 0
        %2446 = vmatpush1.bf16.xpose.msra.mxu0 0
        %2447 = vmatprep.subr.bf16.mxu0 0
        %2448 = vmatpush1.bf16.xpose.msra.mxu0 %v2431
        %2449 = vmatprep.subr.bf16.mxu0 0
        %2450 = vmatpush2.bf16.xpose.msra.mxu0 0
        %2451 = vmatprep.subr.bf16.mxu0 0
        %2452 = vmatpush2.bf16.xpose.msra.mxu0 0
        %2453 = vmatprep.subr.bf16.mxu0 0
        %2454 = vmatpush2.bf16.xpose.msra.mxu0 0
        %2455 = vmatprep.subr.bf16.mxu0 0
        %2456 = vmatpush2.bf16.xpose.msra.mxu0 0
        %2457 = vmatprep.subr.bf16.mxu0 0
        %2458 = vmatpush2.bf16.xpose.msra.mxu0 0
        %2459 = vmatprep.subr.bf16.mxu0 0
        %2460 = vmatpush2.bf16.xpose.msra.mxu0 0
        %2461 = vmatprep.subr.bf16.mxu0 0
        %2462 = vmatpush2.bf16.xpose.msra.mxu0 0
        %2463 = vmatprep.subr.bf16.mxu0 0
        %2464 = vmatpush2.bf16.xpose.msra.mxu0 0
        %2465 = vmatprep.mubr.bf16.mxu0 0
        %2466 = vmatmul.mubr.bf16.gmra.mxu0 %v2428
        %v2467 = vpop.f32.mrf.mxu0
        %v2468 = vadd.f32 0.0, %v2467
        %v2469 = vpop.f32.mrf.mxu0
        %v2470 = vpop.f32.mrf.mxu0
        %v2471 = vpop.f32.mrf.mxu0
        %2472 = vdwg.mxu0
        %v2474 = vsel %vm2380, %v1224, 0
        %v2477 = vsel %vm2380, %v1782, 0
        %2479 = vmatprep.subr.bf16.mxu0 0
        %2480 = vmatpush1.bf16.xpose.msra.mxu0 0
        %2481 = vmatprep.subr.bf16.mxu0 0
        %2482 = vmatpush1.bf16.xpose.msra.mxu0 0
        %2483 = vmatprep.subr.bf16.mxu0 0
        %2484 = vmatpush1.bf16.xpose.msra.mxu0 0
        %2485 = vmatprep.subr.bf16.mxu0 0
        %2486 = vmatpush1.bf16.xpose.msra.mxu0 0
        %2487 = vmatprep.subr.bf16.mxu0 0
        %2488 = vmatpush1.bf16.xpose.msra.mxu0 0
        %2489 = vmatprep.subr.bf16.mxu0 0
        %2490 = vmatpush1.bf16.xpose.msra.mxu0 0
        %2491 = vmatprep.subr.bf16.mxu0 0
        %2492 = vmatpush1.bf16.xpose.msra.mxu0 0
        %2493 = vmatprep.subr.bf16.mxu0 0
        %2494 = vmatpush1.bf16.xpose.msra.mxu0 %v2477
        %2495 = vmatprep.subr.bf16.mxu0 0
        %2496 = vmatpush2.bf16.xpose.msra.mxu0 0
        %2497 = vmatprep.subr.bf16.mxu0 0
        %2498 = vmatpush2.bf16.xpose.msra.mxu0 0
        %2499 = vmatprep.subr.bf16.mxu0 0
        %2500 = vmatpush2.bf16.xpose.msra.mxu0 0
        %2501 = vmatprep.subr.bf16.mxu0 0
        %2502 = vmatpush2.bf16.xpose.msra.mxu0 0
        %2503 = vmatprep.subr.bf16.mxu0 0
        %2504 = vmatpush2.bf16.xpose.msra.mxu0 0
        %2505 = vmatprep.subr.bf16.mxu0 0
        %2506 = vmatpush2.bf16.xpose.msra.mxu0 0
        %2507 = vmatprep.subr.bf16.mxu0 0
        %2508 = vmatpush2.bf16.xpose.msra.mxu0 0
        %2509 = vmatprep.subr.bf16.mxu0 0
        %2510 = vmatpush2.bf16.xpose.msra.mxu0 0
        %2511 = vmatprep.mubr.bf16.mxu0 0
        %2512 = vmatmul.mubr.bf16.gmra.mxu0 %v2474
        %v2513 = vpop.f32.mrf.mxu0
        %v2514 = vadd.f32 0.0, %v2513
        %v2515 = vpop.f32.mrf.mxu0
        %v2516 = vpop.f32.mrf.mxu0
        %v2517 = vpop.f32.mrf.mxu0
        %2518 = vdwg.mxu0
        %v2520 = vsel %vm2380, %v1227, 0
        %v2523 = vsel %vm2380, %v1785, 0
        %2525 = vmatprep.subr.bf16.mxu0 0
        %2526 = vmatpush1.bf16.xpose.msra.mxu0 0
        %2527 = vmatprep.subr.bf16.mxu0 0
        %2528 = vmatpush1.bf16.xpose.msra.mxu0 0
        %2529 = vmatprep.subr.bf16.mxu0 0
        %2530 = vmatpush1.bf16.xpose.msra.mxu0 0
        %2531 = vmatprep.subr.bf16.mxu0 0
        %2532 = vmatpush1.bf16.xpose.msra.mxu0 0
        %2533 = vmatprep.subr.bf16.mxu0 0
        %2534 = vmatpush1.bf16.xpose.msra.mxu0 0
        %2535 = vmatprep.subr.bf16.mxu0 0
        %2536 = vmatpush1.bf16.xpose.msra.mxu0 0
        %2537 = vmatprep.subr.bf16.mxu0 0
        %2538 = vmatpush1.bf16.xpose.msra.mxu0 0
        %2539 = vmatprep.subr.bf16.mxu0 0
        %2540 = vmatpush1.bf16.xpose.msra.mxu0 %v2523
        %2541 = vmatprep.subr.bf16.mxu0 0
        %2542 = vmatpush2.bf16.xpose.msra.mxu0 0
        %2543 = vmatprep.subr.bf16.mxu0 0
        %2544 = vmatpush2.bf16.xpose.msra.mxu0 0
        %2545 = vmatprep.subr.bf16.mxu0 0
        %2546 = vmatpush2.bf16.xpose.msra.mxu0 0
        %2547 = vmatprep.subr.bf16.mxu0 0
        %2548 = vmatpush2.bf16.xpose.msra.mxu0 0
        %2549 = vmatprep.subr.bf16.mxu0 0
        %2550 = vmatpush2.bf16.xpose.msra.mxu0 0
        %2551 = vmatprep.subr.bf16.mxu0 0
        %2552 = vmatpush2.bf16.xpose.msra.mxu0 0
        %2553 = vmatprep.subr.bf16.mxu0 0
        %2554 = vmatpush2.bf16.xpose.msra.mxu0 0
        %2555 = vmatprep.subr.bf16.mxu0 0
        %2556 = vmatpush2.bf16.xpose.msra.mxu0 0
        %2557 = vmatprep.mubr.bf16.mxu0 0
        %2558 = vmatmul.mubr.bf16.gmra.mxu0 %v2520
        %v2559 = vpop.f32.mrf.mxu0
        %v2560 = vadd.f32 0.0, %v2559
        %v2561 = vpop.f32.mrf.mxu0
        %v2562 = vpop.f32.mrf.mxu0
        %v2563 = vpop.f32.mrf.mxu0
        %2564 = vdwg.mxu0
        %v2566 = vsel %vm2380, %v1230, 0
        %v2569 = vsel %vm2380, %v1788, 0
        %2571 = vmatprep.subr.bf16.mxu0 0
        %2572 = vmatpush1.bf16.xpose.msra.mxu0 0
        %2573 = vmatprep.subr.bf16.mxu0 0
        %2574 = vmatpush1.bf16.xpose.msra.mxu0 0
        %2575 = vmatprep.subr.bf16.mxu0 0
        %2576 = vmatpush1.bf16.xpose.msra.mxu0 0
        %2577 = vmatprep.subr.bf16.mxu0 0
        %2578 = vmatpush1.bf16.xpose.msra.mxu0 0
        %2579 = vmatprep.subr.bf16.mxu0 0
        %2580 = vmatpush1.bf16.xpose.msra.mxu0 0
        %2581 = vmatprep.subr.bf16.mxu0 0
        %2582 = vmatpush1.bf16.xpose.msra.mxu0 0
        %2583 = vmatprep.subr.bf16.mxu0 0
        %2584 = vmatpush1.bf16.xpose.msra.mxu0 0
        %2585 = vmatprep.subr.bf16.mxu0 0
        %2586 = vmatpush1.bf16.xpose.msra.mxu0 %v2569
        %2587 = vmatprep.subr.bf16.mxu0 0
        %2588 = vmatpush2.bf16.xpose.msra.mxu0 0
        %2589 = vmatprep.subr.bf16.mxu0 0
        %2590 = vmatpush2.bf16.xpose.msra.mxu0 0
        %2591 = vmatprep.subr.bf16.mxu0 0
        %2592 = vmatpush2.bf16.xpose.msra.mxu0 0
        %2593 = vmatprep.subr.bf16.mxu0 0
        %2594 = vmatpush2.bf16.xpose.msra.mxu0 0
        %2595 = vmatprep.subr.bf16.mxu0 0
        %2596 = vmatpush2.bf16.xpose.msra.mxu0 0
        %2597 = vmatprep.subr.bf16.mxu0 0
        %2598 = vmatpush2.bf16.xpose.msra.mxu0 0
        %2599 = vmatprep.subr.bf16.mxu0 0
        %2600 = vmatpush2.bf16.xpose.msra.mxu0 0
        %2601 = vmatprep.subr.bf16.mxu0 0
        %2602 = vmatpush2.bf16.xpose.msra.mxu0 0
        %2603 = vmatprep.mubr.bf16.mxu0 0
        %2604 = vmatmul.mubr.bf16.gmra.mxu0 %v2566
        %v2605 = vpop.f32.mrf.mxu0
        %v2606 = vadd.f32 0.0, %v2605
        %v2607 = vpop.f32.mrf.mxu0
        %v2608 = vpop.f32.mrf.mxu0
        %v2609 = vpop.f32.mrf.mxu0
        %2610 = vdwg.mxu0
        %v2612 = vsel %vm2380, %v1233, 0
        %v2615 = vsel %vm2380, %v1791, 0
        %2617 = vmatprep.subr.bf16.mxu0 0
        %2618 = vmatpush1.bf16.xpose.msra.mxu0 0
        %2619 = vmatprep.subr.bf16.mxu0 0
        %2620 = vmatpush1.bf16.xpose.msra.mxu0 0
        %2621 = vmatprep.subr.bf16.mxu0 0
        %2622 = vmatpush1.bf16.xpose.msra.mxu0 0
        %2623 = vmatprep.subr.bf16.mxu0 0
        %2624 = vmatpush1.bf16.xpose.msra.mxu0 0
        %2625 = vmatprep.subr.bf16.mxu0 0
        %2626 = vmatpush1.bf16.xpose.msra.mxu0 0
        %2627 = vmatprep.subr.bf16.mxu0 0
        %2628 = vmatpush1.bf16.xpose.msra.mxu0 0
        %2629 = vmatprep.subr.bf16.mxu0 0
        %2630 = vmatpush1.bf16.xpose.msra.mxu0 0
        %2631 = vmatprep.subr.bf16.mxu0 0
        %2632 = vmatpush1.bf16.xpose.msra.mxu0 %v2615
        %2633 = vmatprep.subr.bf16.mxu0 0
        %2634 = vmatpush2.bf16.xpose.msra.mxu0 0
        %2635 = vmatprep.subr.bf16.mxu0 0
        %2636 = vmatpush2.bf16.xpose.msra.mxu0 0
        %2637 = vmatprep.subr.bf16.mxu0 0
        %2638 = vmatpush2.bf16.xpose.msra.mxu0 0
        %2639 = vmatprep.subr.bf16.mxu0 0
        %2640 = vmatpush2.bf16.xpose.msra.mxu0 0
        %2641 = vmatprep.subr.bf16.mxu0 0
        %2642 = vmatpush2.bf16.xpose.msra.mxu0 0
        %2643 = vmatprep.subr.bf16.mxu0 0
        %2644 = vmatpush2.bf16.xpose.msra.mxu0 0
        %2645 = vmatprep.subr.bf16.mxu0 0
        %2646 = vmatpush2.bf16.xpose.msra.mxu0 0
        %2647 = vmatprep.subr.bf16.mxu0 0
        %2648 = vmatpush2.bf16.xpose.msra.mxu0 0
        %2649 = vmatprep.mubr.bf16.mxu0 0
        %2650 = vmatmul.mubr.bf16.gmra.mxu0 %v2612
        %v2651 = vpop.f32.mrf.mxu0
        %v2652 = vadd.f32 0.0, %v2651
        %v2653 = vpop.f32.mrf.mxu0
        %v2654 = vpop.f32.mrf.mxu0
        %v2655 = vpop.f32.mrf.mxu0
        %2656 = vdwg.mxu0
        %v2658 = vsel %vm2380, %v1236, 0
        %v2661 = vsel %vm2380, %v1794, 0
        %2663 = vmatprep.subr.bf16.mxu0 0
        %2664 = vmatpush1.bf16.xpose.msra.mxu0 0
        %2665 = vmatprep.subr.bf16.mxu0 0
        %2666 = vmatpush1.bf16.xpose.msra.mxu0 0
        %2667 = vmatprep.subr.bf16.mxu0 0
        %2668 = vmatpush1.bf16.xpose.msra.mxu0 0
        %2669 = vmatprep.subr.bf16.mxu0 0
        %2670 = vmatpush1.bf16.xpose.msra.mxu0 0
        %2671 = vmatprep.subr.bf16.mxu0 0
        %2672 = vmatpush1.bf16.xpose.msra.mxu0 0
        %2673 = vmatprep.subr.bf16.mxu0 0
        %2674 = vmatpush1.bf16.xpose.msra.mxu0 0
        %2675 = vmatprep.subr.bf16.mxu0 0
        %2676 = vmatpush1.bf16.xpose.msra.mxu0 0
        %2677 = vmatprep.subr.bf16.mxu0 0
        %2678 = vmatpush1.bf16.xpose.msra.mxu0 %v2661
        %2679 = vmatprep.subr.bf16.mxu0 0
        %2680 = vmatpush2.bf16.xpose.msra.mxu0 0
        %2681 = vmatprep.subr.bf16.mxu0 0
        %2682 = vmatpush2.bf16.xpose.msra.mxu0 0
        %2683 = vmatprep.subr.bf16.mxu0 0
        %2684 = vmatpush2.bf16.xpose.msra.mxu0 0
        %2685 = vmatprep.subr.bf16.mxu0 0
        %2686 = vmatpush2.bf16.xpose.msra.mxu0 0
        %2687 = vmatprep.subr.bf16.mxu0 0
        %2688 = vmatpush2.bf16.xpose.msra.mxu0 0
        %2689 = vmatprep.subr.bf16.mxu0 0
        %2690 = vmatpush2.bf16.xpose.msra.mxu0 0
        %2691 = vmatprep.subr.bf16.mxu0 0
        %2692 = vmatpush2.bf16.xpose.msra.mxu0 0
        %2693 = vmatprep.subr.bf16.mxu0 0
        %2694 = vmatpush2.bf16.xpose.msra.mxu0 0
        %2695 = vmatprep.mubr.bf16.mxu0 0
        %2696 = vmatmul.mubr.bf16.gmra.mxu0 %v2658
        %v2697 = vpop.f32.mrf.mxu0
        %v2698 = vadd.f32 0.0, %v2697
        %v2699 = vpop.f32.mrf.mxu0
        %v2700 = vpop.f32.mrf.mxu0
        %v2701 = vpop.f32.mrf.mxu0
        %2702 = vdwg.mxu0
        %v2704 = vsel %vm2380, %v1239, 0
        %v2707 = vsel %vm2380, %v1797, 0
        %2709 = vmatprep.subr.bf16.mxu0 0
        %2710 = vmatpush1.bf16.xpose.msra.mxu0 0
        %2711 = vmatprep.subr.bf16.mxu0 0
        %2712 = vmatpush1.bf16.xpose.msra.mxu0 0
        %2713 = vmatprep.subr.bf16.mxu0 0
        %2714 = vmatpush1.bf16.xpose.msra.mxu0 0
        %2715 = vmatprep.subr.bf16.mxu0 0
        %2716 = vmatpush1.bf16.xpose.msra.mxu0 0
        %2717 = vmatprep.subr.bf16.mxu0 0
        %2718 = vmatpush1.bf16.xpose.msra.mxu0 0
        %2719 = vmatprep.subr.bf16.mxu0 0
        %2720 = vmatpush1.bf16.xpose.msra.mxu0 0
        %2721 = vmatprep.subr.bf16.mxu0 0
        %2722 = vmatpush1.bf16.xpose.msra.mxu0 0
        %2723 = vmatprep.subr.bf16.mxu0 0
        %2724 = vmatpush1.bf16.xpose.msra.mxu0 %v2707
        %2725 = vmatprep.subr.bf16.mxu0 0
        %2726 = vmatpush2.bf16.xpose.msra.mxu0 0
        %2727 = vmatprep.subr.bf16.mxu0 0
        %2728 = vmatpush2.bf16.xpose.msra.mxu0 0
        %2729 = vmatprep.subr.bf16.mxu0 0
        %2730 = vmatpush2.bf16.xpose.msra.mxu0 0
        %2731 = vmatprep.subr.bf16.mxu0 0
        %2732 = vmatpush2.bf16.xpose.msra.mxu0 0
        %2733 = vmatprep.subr.bf16.mxu0 0
        %2734 = vmatpush2.bf16.xpose.msra.mxu0 0
        %2735 = vmatprep.subr.bf16.mxu0 0
        %2736 = vmatpush2.bf16.xpose.msra.mxu0 0
        %2737 = vmatprep.subr.bf16.mxu0 0
        %2738 = vmatpush2.bf16.xpose.msra.mxu0 0
        %2739 = vmatprep.subr.bf16.mxu0 0
        %2740 = vmatpush2.bf16.xpose.msra.mxu0 0
        %2741 = vmatprep.mubr.bf16.mxu0 0
        %2742 = vmatmul.mubr.bf16.gmra.mxu0 %v2704
        %v2743 = vpop.f32.mrf.mxu0
        %v2744 = vadd.f32 0.0, %v2743
        %v2745 = vpop.f32.mrf.mxu0
        %v2746 = vpop.f32.mrf.mxu0
        %v2747 = vpop.f32.mrf.mxu0
        %2748 = vdwg.mxu0
        %v2750 = vsel %vm2380, %v1242, 0
        %v2753 = vsel %vm2380, %v1800, 0
        %2755 = vmatprep.subr.bf16.mxu0 0
        %2756 = vmatpush1.bf16.xpose.msra.mxu0 0
        %2757 = vmatprep.subr.bf16.mxu0 0
        %2758 = vmatpush1.bf16.xpose.msra.mxu0 0
        %2759 = vmatprep.subr.bf16.mxu0 0
        %2760 = vmatpush1.bf16.xpose.msra.mxu0 0
        %2761 = vmatprep.subr.bf16.mxu0 0
        %2762 = vmatpush1.bf16.xpose.msra.mxu0 0
        %2763 = vmatprep.subr.bf16.mxu0 0
        %2764 = vmatpush1.bf16.xpose.msra.mxu0 0
        %2765 = vmatprep.subr.bf16.mxu0 0
        %2766 = vmatpush1.bf16.xpose.msra.mxu0 0
        %2767 = vmatprep.subr.bf16.mxu0 0
        %2768 = vmatpush1.bf16.xpose.msra.mxu0 0
        %2769 = vmatprep.subr.bf16.mxu0 0
        %2770 = vmatpush1.bf16.xpose.msra.mxu0 %v2753
        %2771 = vmatprep.subr.bf16.mxu0 0
        %2772 = vmatpush2.bf16.xpose.msra.mxu0 0
        %2773 = vmatprep.subr.bf16.mxu0 0
        %2774 = vmatpush2.bf16.xpose.msra.mxu0 0
        %2775 = vmatprep.subr.bf16.mxu0 0
        %2776 = vmatpush2.bf16.xpose.msra.mxu0 0
        %2777 = vmatprep.subr.bf16.mxu0 0
        %2778 = vmatpush2.bf16.xpose.msra.mxu0 0
        %2779 = vmatprep.subr.bf16.mxu0 0
        %2780 = vmatpush2.bf16.xpose.msra.mxu0 0
        %2781 = vmatprep.subr.bf16.mxu0 0
        %2782 = vmatpush2.bf16.xpose.msra.mxu0 0
        %2783 = vmatprep.subr.bf16.mxu0 0
        %2784 = vmatpush2.bf16.xpose.msra.mxu0 0
        %2785 = vmatprep.subr.bf16.mxu0 0
        %2786 = vmatpush2.bf16.xpose.msra.mxu0 0
        %2787 = vmatprep.mubr.bf16.mxu0 0
        %2788 = vmatmul.mubr.bf16.gmra.mxu0 %v2750
        %v2789 = vpop.f32.mrf.mxu0
        %v2790 = vadd.f32 0.0, %v2789
        %v2791 = vpop.f32.mrf.mxu0
        %v2792 = vpop.f32.mrf.mxu0
        %v2793 = vpop.f32.mrf.mxu0
        %2794 = vdwg.mxu0
        %v2796 = vsel %vm2380, %v1245, 0
        %v2799 = vsel %vm2380, %v1803, 0
        %2801 = vmatprep.subr.bf16.mxu0 0
        %2802 = vmatpush1.bf16.xpose.msra.mxu0 0
        %2803 = vmatprep.subr.bf16.mxu0 0
        %2804 = vmatpush1.bf16.xpose.msra.mxu0 0
        %2805 = vmatprep.subr.bf16.mxu0 0
        %2806 = vmatpush1.bf16.xpose.msra.mxu0 0
        %2807 = vmatprep.subr.bf16.mxu0 0
        %2808 = vmatpush1.bf16.xpose.msra.mxu0 0
        %2809 = vmatprep.subr.bf16.mxu0 0
        %2810 = vmatpush1.bf16.xpose.msra.mxu0 0
        %2811 = vmatprep.subr.bf16.mxu0 0
        %2812 = vmatpush1.bf16.xpose.msra.mxu0 0
        %2813 = vmatprep.subr.bf16.mxu0 0
        %2814 = vmatpush1.bf16.xpose.msra.mxu0 0
        %2815 = vmatprep.subr.bf16.mxu0 0
        %2816 = vmatpush1.bf16.xpose.msra.mxu0 %v2799
        %2817 = vmatprep.subr.bf16.mxu0 0
        %2818 = vmatpush2.bf16.xpose.msra.mxu0 0
        %2819 = vmatprep.subr.bf16.mxu0 0
        %2820 = vmatpush2.bf16.xpose.msra.mxu0 0
        %2821 = vmatprep.subr.bf16.mxu0 0
        %2822 = vmatpush2.bf16.xpose.msra.mxu0 0
        %2823 = vmatprep.subr.bf16.mxu0 0
        %2824 = vmatpush2.bf16.xpose.msra.mxu0 0
        %2825 = vmatprep.subr.bf16.mxu0 0
        %2826 = vmatpush2.bf16.xpose.msra.mxu0 0
        %2827 = vmatprep.subr.bf16.mxu0 0
        %2828 = vmatpush2.bf16.xpose.msra.mxu0 0
        %2829 = vmatprep.subr.bf16.mxu0 0
        %2830 = vmatpush2.bf16.xpose.msra.mxu0 0
        %2831 = vmatprep.subr.bf16.mxu0 0
        %2832 = vmatpush2.bf16.xpose.msra.mxu0 0
        %2833 = vmatprep.mubr.bf16.mxu0 0
        %2834 = vmatmul.mubr.bf16.gmra.mxu0 %v2796
        %v2835 = vpop.f32.mrf.mxu0
        %v2836 = vadd.f32 0.0, %v2835
        %v2837 = vpop.f32.mrf.mxu0
        %v2838 = vpop.f32.mrf.mxu0
        %v2839 = vpop.f32.mrf.mxu0
        %2840 = vdwg.mxu0
        %v2842 = vsel %vm2380, %v1248, 0
        %v2845 = vsel %vm2380, %v1806, 0
        %2847 = vmatprep.subr.bf16.mxu0 0
        %2848 = vmatpush1.bf16.xpose.msra.mxu0 0
        %2849 = vmatprep.subr.bf16.mxu0 0
        %2850 = vmatpush1.bf16.xpose.msra.mxu0 0
        %2851 = vmatprep.subr.bf16.mxu0 0
        %2852 = vmatpush1.bf16.xpose.msra.mxu0 0
        %2853 = vmatprep.subr.bf16.mxu0 0
        %2854 = vmatpush1.bf16.xpose.msra.mxu0 0
        %2855 = vmatprep.subr.bf16.mxu0 0
        %2856 = vmatpush1.bf16.xpose.msra.mxu0 0
        %2857 = vmatprep.subr.bf16.mxu0 0
        %2858 = vmatpush1.bf16.xpose.msra.mxu0 0
        %2859 = vmatprep.subr.bf16.mxu0 0
        %2860 = vmatpush1.bf16.xpose.msra.mxu0 0
        %2861 = vmatprep.subr.bf16.mxu0 0
        %2862 = vmatpush1.bf16.xpose.msra.mxu0 %v2845
        %2863 = vmatprep.subr.bf16.mxu0 0
        %2864 = vmatpush2.bf16.xpose.msra.mxu0 0
        %2865 = vmatprep.subr.bf16.mxu0 0
        %2866 = vmatpush2.bf16.xpose.msra.mxu0 0
        %2867 = vmatprep.subr.bf16.mxu0 0
        %2868 = vmatpush2.bf16.xpose.msra.mxu0 0
        %2869 = vmatprep.subr.bf16.mxu0 0
        %2870 = vmatpush2.bf16.xpose.msra.mxu0 0
        %2871 = vmatprep.subr.bf16.mxu0 0
        %2872 = vmatpush2.bf16.xpose.msra.mxu0 0
        %2873 = vmatprep.subr.bf16.mxu0 0
        %2874 = vmatpush2.bf16.xpose.msra.mxu0 0
        %2875 = vmatprep.subr.bf16.mxu0 0
        %2876 = vmatpush2.bf16.xpose.msra.mxu0 0
        %2877 = vmatprep.subr.bf16.mxu0 0
        %2878 = vmatpush2.bf16.xpose.msra.mxu0 0
        %2879 = vmatprep.mubr.bf16.mxu0 0
        %2880 = vmatmul.mubr.bf16.gmra.mxu0 %v2842
        %v2881 = vpop.f32.mrf.mxu0
        %v2882 = vadd.f32 0.0, %v2881
        %v2883 = vpop.f32.mrf.mxu0
        %v2884 = vpop.f32.mrf.mxu0
        %v2885 = vpop.f32.mrf.mxu0
        %2886 = vdwg.mxu0
        %v2888 = vsel %vm2380, %v1251, 0
        %v2891 = vsel %vm2380, %v1809, 0
        %2893 = vmatprep.subr.bf16.mxu0 0
        %2894 = vmatpush1.bf16.xpose.msra.mxu0 0
        %2895 = vmatprep.subr.bf16.mxu0 0
        %2896 = vmatpush1.bf16.xpose.msra.mxu0 0
        %2897 = vmatprep.subr.bf16.mxu0 0
        %2898 = vmatpush1.bf16.xpose.msra.mxu0 0
        %2899 = vmatprep.subr.bf16.mxu0 0
        %2900 = vmatpush1.bf16.xpose.msra.mxu0 0
        %2901 = vmatprep.subr.bf16.mxu0 0
        %2902 = vmatpush1.bf16.xpose.msra.mxu0 0
        %2903 = vmatprep.subr.bf16.mxu0 0
        %2904 = vmatpush1.bf16.xpose.msra.mxu0 0
        %2905 = vmatprep.subr.bf16.mxu0 0
        %2906 = vmatpush1.bf16.xpose.msra.mxu0 0
        %2907 = vmatprep.subr.bf16.mxu0 0
        %2908 = vmatpush1.bf16.xpose.msra.mxu0 %v2891
        %2909 = vmatprep.subr.bf16.mxu0 0
        %2910 = vmatpush2.bf16.xpose.msra.mxu0 0
        %2911 = vmatprep.subr.bf16.mxu0 0
        %2912 = vmatpush2.bf16.xpose.msra.mxu0 0
        %2913 = vmatprep.subr.bf16.mxu0 0
        %2914 = vmatpush2.bf16.xpose.msra.mxu0 0
        %2915 = vmatprep.subr.bf16.mxu0 0
        %2916 = vmatpush2.bf16.xpose.msra.mxu0 0
        %2917 = vmatprep.subr.bf16.mxu0 0
        %2918 = vmatpush2.bf16.xpose.msra.mxu0 0
        %2919 = vmatprep.subr.bf16.mxu0 0
        %2920 = vmatpush2.bf16.xpose.msra.mxu0 0
        %2921 = vmatprep.subr.bf16.mxu0 0
        %2922 = vmatpush2.bf16.xpose.msra.mxu0 0
        %2923 = vmatprep.subr.bf16.mxu0 0
        %2924 = vmatpush2.bf16.xpose.msra.mxu0 0
        %2925 = vmatprep.mubr.bf16.mxu0 0
        %2926 = vmatmul.mubr.bf16.gmra.mxu0 %v2888
        %v2927 = vpop.f32.mrf.mxu0
        %v2928 = vadd.f32 0.0, %v2927
        %v2929 = vpop.f32.mrf.mxu0
        %v2930 = vpop.f32.mrf.mxu0
        %v2931 = vpop.f32.mrf.mxu0
        %2932 = vdwg.mxu0
        %v2934 = vsel %vm2380, %v1254, 0
        %v2937 = vsel %vm2380, %v1812, 0
        %2939 = vmatprep.subr.bf16.mxu0 0
        %2940 = vmatpush1.bf16.xpose.msra.mxu0 0
        %2941 = vmatprep.subr.bf16.mxu0 0
        %2942 = vmatpush1.bf16.xpose.msra.mxu0 0
        %2943 = vmatprep.subr.bf16.mxu0 0
        %2944 = vmatpush1.bf16.xpose.msra.mxu0 0
        %2945 = vmatprep.subr.bf16.mxu0 0
        %2946 = vmatpush1.bf16.xpose.msra.mxu0 0
        %2947 = vmatprep.subr.bf16.mxu0 0
        %2948 = vmatpush1.bf16.xpose.msra.mxu0 0
        %2949 = vmatprep.subr.bf16.mxu0 0
        %2950 = vmatpush1.bf16.xpose.msra.mxu0 0
        %2951 = vmatprep.subr.bf16.mxu0 0
        %2952 = vmatpush1.bf16.xpose.msra.mxu0 0
        %2953 = vmatprep.subr.bf16.mxu0 0
        %2954 = vmatpush1.bf16.xpose.msra.mxu0 %v2937
        %2955 = vmatprep.subr.bf16.mxu0 0
        %2956 = vmatpush2.bf16.xpose.msra.mxu0 0
        %2957 = vmatprep.subr.bf16.mxu0 0
        %2958 = vmatpush2.bf16.xpose.msra.mxu0 0
        %2959 = vmatprep.subr.bf16.mxu0 0
        %2960 = vmatpush2.bf16.xpose.msra.mxu0 0
        %2961 = vmatprep.subr.bf16.mxu0 0
        %2962 = vmatpush2.bf16.xpose.msra.mxu0 0
        %2963 = vmatprep.subr.bf16.mxu0 0
        %2964 = vmatpush2.bf16.xpose.msra.mxu0 0
        %2965 = vmatprep.subr.bf16.mxu0 0
        %2966 = vmatpush2.bf16.xpose.msra.mxu0 0
        %2967 = vmatprep.subr.bf16.mxu0 0
        %2968 = vmatpush2.bf16.xpose.msra.mxu0 0
        %2969 = vmatprep.subr.bf16.mxu0 0
        %2970 = vmatpush2.bf16.xpose.msra.mxu0 0
        %2971 = vmatprep.mubr.bf16.mxu0 0
        %2972 = vmatmul.mubr.bf16.gmra.mxu0 %v2934
        %v2973 = vpop.f32.mrf.mxu0
        %v2974 = vadd.f32 0.0, %v2973
        %v2975 = vpop.f32.mrf.mxu0
        %v2976 = vpop.f32.mrf.mxu0
        %v2977 = vpop.f32.mrf.mxu0
        %2978 = vdwg.mxu0
        %v2980 = vsel %vm2380, %v1257, 0
        %v2983 = vsel %vm2380, %v1815, 0
        %2985 = vmatprep.subr.bf16.mxu0 0
        %2986 = vmatpush1.bf16.xpose.msra.mxu0 0
        %2987 = vmatprep.subr.bf16.mxu0 0
        %2988 = vmatpush1.bf16.xpose.msra.mxu0 0
        %2989 = vmatprep.subr.bf16.mxu0 0
        %2990 = vmatpush1.bf16.xpose.msra.mxu0 0
        %2991 = vmatprep.subr.bf16.mxu0 0
        %2992 = vmatpush1.bf16.xpose.msra.mxu0 0
        %2993 = vmatprep.subr.bf16.mxu0 0
        %2994 = vmatpush1.bf16.xpose.msra.mxu0 0
        %2995 = vmatprep.subr.bf16.mxu0 0
        %2996 = vmatpush1.bf16.xpose.msra.mxu0 0
        %2997 = vmatprep.subr.bf16.mxu0 0
        %2998 = vmatpush1.bf16.xpose.msra.mxu0 0
        %2999 = vmatprep.subr.bf16.mxu0 0
        %3000 = vmatpush1.bf16.xpose.msra.mxu0 %v2983
        %3001 = vmatprep.subr.bf16.mxu0 0
        %3002 = vmatpush2.bf16.xpose.msra.mxu0 0
        %3003 = vmatprep.subr.bf16.mxu0 0
        %3004 = vmatpush2.bf16.xpose.msra.mxu0 0
        %3005 = vmatprep.subr.bf16.mxu0 0
        %3006 = vmatpush2.bf16.xpose.msra.mxu0 0
        %3007 = vmatprep.subr.bf16.mxu0 0
        %3008 = vmatpush2.bf16.xpose.msra.mxu0 0
        %3009 = vmatprep.subr.bf16.mxu0 0
        %3010 = vmatpush2.bf16.xpose.msra.mxu0 0
        %3011 = vmatprep.subr.bf16.mxu0 0
        %3012 = vmatpush2.bf16.xpose.msra.mxu0 0
        %3013 = vmatprep.subr.bf16.mxu0 0
        %3014 = vmatpush2.bf16.xpose.msra.mxu0 0
        %3015 = vmatprep.subr.bf16.mxu0 0
        %3016 = vmatpush2.bf16.xpose.msra.mxu0 0
        %3017 = vmatprep.mubr.bf16.mxu0 0
        %3018 = vmatmul.mubr.bf16.gmra.mxu0 %v2980
        %v3019 = vpop.f32.mrf.mxu0
        %v3020 = vadd.f32 0.0, %v3019
        %v3021 = vpop.f32.mrf.mxu0
        %v3022 = vpop.f32.mrf.mxu0
        %v3023 = vpop.f32.mrf.mxu0
        %3024 = vdwg.mxu0
        %v3026 = vsel %vm2380, %v1260, 0
        %v3029 = vsel %vm2380, %v1818, 0
        %3031 = vmatprep.subr.bf16.mxu0 0
        %3032 = vmatpush1.bf16.xpose.msra.mxu0 0
        %3033 = vmatprep.subr.bf16.mxu0 0
        %3034 = vmatpush1.bf16.xpose.msra.mxu0 0
        %3035 = vmatprep.subr.bf16.mxu0 0
        %3036 = vmatpush1.bf16.xpose.msra.mxu0 0
        %3037 = vmatprep.subr.bf16.mxu0 0
        %3038 = vmatpush1.bf16.xpose.msra.mxu0 0
        %3039 = vmatprep.subr.bf16.mxu0 0
        %3040 = vmatpush1.bf16.xpose.msra.mxu0 0
        %3041 = vmatprep.subr.bf16.mxu0 0
        %3042 = vmatpush1.bf16.xpose.msra.mxu0 0
        %3043 = vmatprep.subr.bf16.mxu0 0
        %3044 = vmatpush1.bf16.xpose.msra.mxu0 0
        %3045 = vmatprep.subr.bf16.mxu0 0
        %3046 = vmatpush1.bf16.xpose.msra.mxu0 %v3029
        %3047 = vmatprep.subr.bf16.mxu0 0
        %3048 = vmatpush2.bf16.xpose.msra.mxu0 0
        %3049 = vmatprep.subr.bf16.mxu0 0
        %3050 = vmatpush2.bf16.xpose.msra.mxu0 0
        %3051 = vmatprep.subr.bf16.mxu0 0
        %3052 = vmatpush2.bf16.xpose.msra.mxu0 0
        %3053 = vmatprep.subr.bf16.mxu0 0
        %3054 = vmatpush2.bf16.xpose.msra.mxu0 0
        %3055 = vmatprep.subr.bf16.mxu0 0
        %3056 = vmatpush2.bf16.xpose.msra.mxu0 0
        %3057 = vmatprep.subr.bf16.mxu0 0
        %3058 = vmatpush2.bf16.xpose.msra.mxu0 0
        %3059 = vmatprep.subr.bf16.mxu0 0
        %3060 = vmatpush2.bf16.xpose.msra.mxu0 0
        %3061 = vmatprep.subr.bf16.mxu0 0
        %3062 = vmatpush2.bf16.xpose.msra.mxu0 0
        %3063 = vmatprep.mubr.bf16.mxu0 0
        %3064 = vmatmul.mubr.bf16.gmra.mxu0 %v3026
        %v3065 = vpop.f32.mrf.mxu0
        %v3066 = vadd.f32 0.0, %v3065
        %v3067 = vpop.f32.mrf.mxu0
        %v3068 = vpop.f32.mrf.mxu0
        %v3069 = vpop.f32.mrf.mxu0
        %3070 = vdwg.mxu0
        %v3072 = vsel %vm2380, %v1263, 0
        %v3075 = vsel %vm2380, %v1821, 0
        %3077 = vmatprep.subr.bf16.mxu0 0
        %3078 = vmatpush1.bf16.xpose.msra.mxu0 0
        %3079 = vmatprep.subr.bf16.mxu0 0
        %3080 = vmatpush1.bf16.xpose.msra.mxu0 0
        %3081 = vmatprep.subr.bf16.mxu0 0
        %3082 = vmatpush1.bf16.xpose.msra.mxu0 0
        %3083 = vmatprep.subr.bf16.mxu0 0
        %3084 = vmatpush1.bf16.xpose.msra.mxu0 0
        %3085 = vmatprep.subr.bf16.mxu0 0
        %3086 = vmatpush1.bf16.xpose.msra.mxu0 0
        %3087 = vmatprep.subr.bf16.mxu0 0
        %3088 = vmatpush1.bf16.xpose.msra.mxu0 0
        %3089 = vmatprep.subr.bf16.mxu0 0
        %3090 = vmatpush1.bf16.xpose.msra.mxu0 0
        %3091 = vmatprep.subr.bf16.mxu0 0
        %3092 = vmatpush1.bf16.xpose.msra.mxu0 %v3075
        %3093 = vmatprep.subr.bf16.mxu0 0
        %3094 = vmatpush2.bf16.xpose.msra.mxu0 0
        %3095 = vmatprep.subr.bf16.mxu0 0
        %3096 = vmatpush2.bf16.xpose.msra.mxu0 0
        %3097 = vmatprep.subr.bf16.mxu0 0
        %3098 = vmatpush2.bf16.xpose.msra.mxu0 0
        %3099 = vmatprep.subr.bf16.mxu0 0
        %3100 = vmatpush2.bf16.xpose.msra.mxu0 0
        %3101 = vmatprep.subr.bf16.mxu0 0
        %3102 = vmatpush2.bf16.xpose.msra.mxu0 0
        %3103 = vmatprep.subr.bf16.mxu0 0
        %3104 = vmatpush2.bf16.xpose.msra.mxu0 0
        %3105 = vmatprep.subr.bf16.mxu0 0
        %3106 = vmatpush2.bf16.xpose.msra.mxu0 0
        %3107 = vmatprep.subr.bf16.mxu0 0
        %3108 = vmatpush2.bf16.xpose.msra.mxu0 0
        %3109 = vmatprep.mubr.bf16.mxu0 0
        %3110 = vmatmul.mubr.bf16.gmra.mxu0 %v3072
        %v3111 = vpop.f32.mrf.mxu0
        %v3112 = vadd.f32 0.0, %v3111
        %v3113 = vpop.f32.mrf.mxu0
        %v3114 = vpop.f32.mrf.mxu0
        %v3115 = vpop.f32.mrf.mxu0
        %3116 = vdwg.mxu0
        %vm3117 = vcmask 64512
        %v3118 = vsel %vm3117, %v2422, -inf
        %3119 = vmax.xlane.f32.xlu0 %v3118
        %v3120 = vpop.xlane.xlu0 %3119
        %v3121 = vsel %vm3117, %v2468, -inf
        %3122 = vmax.xlane.f32.xlu0 %v3121
        %v3123 = vpop.xlane.xlu0 %3122
        %v3124 = vsel %vm3117, %v2514, -inf
        %3125 = vmax.xlane.f32.xlu0 %v3124
        %v3126 = vpop.xlane.xlu0 %3125
        %v3127 = vsel %vm3117, %v2560, -inf
        %3128 = vmax.xlane.f32.xlu0 %v3127
        %v3129 = vpop.xlane.xlu0 %3128
        %v3130 = vsel %vm3117, %v2606, -inf
        %3131 = vmax.xlane.f32.xlu0 %v3130
        %v3132 = vpop.xlane.xlu0 %3131
        %v3133 = vsel %vm3117, %v2652, -inf
        %3134 = vmax.xlane.f32.xlu0 %v3133
        %v3135 = vpop.xlane.xlu0 %3134
        %v3136 = vsel %vm3117, %v2698, -inf
        %3137 = vmax.xlane.f32.xlu0 %v3136
        %v3138 = vpop.xlane.xlu0 %3137
        %v3139 = vsel %vm3117, %v2744, -inf
        %3140 = vmax.xlane.f32.xlu0 %v3139
        %v3141 = vpop.xlane.xlu0 %3140
        %v3142 = vsel %vm3117, %v2790, -inf
        %3143 = vmax.xlane.f32.xlu0 %v3142
        %v3144 = vpop.xlane.xlu0 %3143
        %v3145 = vsel %vm3117, %v2836, -inf
        %3146 = vmax.xlane.f32.xlu0 %v3145
        %v3147 = vpop.xlane.xlu0 %3146
        %v3148 = vsel %vm3117, %v2882, -inf
        %3149 = vmax.xlane.f32.xlu0 %v3148
        %v3150 = vpop.xlane.xlu0 %3149
        %v3151 = vsel %vm3117, %v2928, -inf
        %3152 = vmax.xlane.f32.xlu0 %v3151
        %v3153 = vpop.xlane.xlu0 %3152
        %v3154 = vsel %vm3117, %v2974, -inf
        %3155 = vmax.xlane.f32.xlu0 %v3154
        %v3156 = vpop.xlane.xlu0 %3155
        %v3157 = vsel %vm3117, %v3020, -inf
        %3158 = vmax.xlane.f32.xlu0 %v3157
        %v3159 = vpop.xlane.xlu0 %3158
        %v3160 = vsel %vm3117, %v3066, -inf
        %3161 = vmax.xlane.f32.xlu0 %v3160
        %v3162 = vpop.xlane.xlu0 %3161
        %v3163 = vsel %vm3117, %v3112, -inf
        %3164 = vmax.xlane.f32.xlu0 %v3163
        %v3165 = vpop.xlane.xlu0 %3164
        %v3166 = vsub.f32 %v2422, %v3120
        %v3167 = vsub.f32 %v2468, %v3123
        %v3168 = vsub.f32 %v2514, %v3126
        %v3169 = vsub.f32 %v2560, %v3129
        %v3170 = vsub.f32 %v2606, %v3132
        %v3171 = vsub.f32 %v2652, %v3135
        %v3172 = vsub.f32 %v2698, %v3138
        %v3173 = vsub.f32 %v2744, %v3141
        %v3174 = vsub.f32 %v2790, %v3144
        %v3175 = vsub.f32 %v2836, %v3147
        %v3176 = vsub.f32 %v2882, %v3150
        %v3177 = vsub.f32 %v2928, %v3153
        %v3178 = vsub.f32 %v2974, %v3156
        %v3179 = vsub.f32 %v3020, %v3159
        %v3180 = vsub.f32 %v3066, %v3162
        %v3181 = vsub.f32 %v3112, %v3165
        %v3182 = vmul.f32 %v3166, 1.442695
        %v3183 = vpow.pop %v3182
        %v3184 = vmul.f32 %v3167, 1.442695
        %v3185 = vpow.pop %v3184
        %v3186 = vmul.f32 %v3168, 1.442695
        %v3187 = vpow.pop %v3186
        %v3188 = vmul.f32 %v3169, 1.442695
        %v3189 = vpow.pop %v3188
        %v3190 = vmul.f32 %v3170, 1.442695
        %v3191 = vpow.pop %v3190
        %v3192 = vmul.f32 %v3171, 1.442695
        %v3193 = vpow.pop %v3192
        %v3194 = vmul.f32 %v3172, 1.442695
        %v3195 = vpow.pop %v3194
        %v3196 = vmul.f32 %v3173, 1.442695
        %v3197 = vpow.pop %v3196
        %v3198 = vmul.f32 %v3174, 1.442695
        %v3199 = vpow.pop %v3198
        %v3200 = vmul.f32 %v3175, 1.442695
        %v3201 = vpow.pop %v3200
        %v3202 = vmul.f32 %v3176, 1.442695
        %v3203 = vpow.pop %v3202
        %v3204 = vmul.f32 %v3177, 1.442695
        %v3205 = vpow.pop %v3204
        %v3206 = vmul.f32 %v3178, 1.442695
        %v3207 = vpow.pop %v3206
        %v3208 = vmul.f32 %v3179, 1.442695
        %v3209 = vpow.pop %v3208
        %v3210 = vmul.f32 %v3180, 1.442695
        %v3211 = vpow.pop %v3210
        %v3212 = vmul.f32 %v3181, 1.442695
        %v3213 = vpow.pop %v3212
        %v3214 = vsel %vm3117, %v3183, 0.0
        %3215 = vadd.xlane.f32.xlu0 %v3214
        %v3216 = vpop.xlane.xlu0 %3215
        %v3217 = vsel %vm3117, %v3185, 0.0
        %3218 = vadd.xlane.f32.xlu0 %v3217
        %v3219 = vpop.xlane.xlu0 %3218
        %v3220 = vsel %vm3117, %v3187, 0.0
        %3221 = vadd.xlane.f32.xlu0 %v3220
        %v3222 = vpop.xlane.xlu0 %3221
        %v3223 = vsel %vm3117, %v3189, 0.0
        %3224 = vadd.xlane.f32.xlu0 %v3223
        %v3225 = vpop.xlane.xlu0 %3224
        %v3226 = vsel %vm3117, %v3191, 0.0
        %3227 = vadd.xlane.f32.xlu0 %v3226
        %v3228 = vpop.xlane.xlu0 %3227
        %v3229 = vsel %vm3117, %v3193, 0.0
        %3230 = vadd.xlane.f32.xlu0 %v3229
        %v3231 = vpop.xlane.xlu0 %3230
        %v3232 = vsel %vm3117, %v3195, 0.0
        %3233 = vadd.xlane.f32.xlu0 %v3232
        %v3234 = vpop.xlane.xlu0 %3233
        %v3235 = vsel %vm3117, %v3197, 0.0
        %3236 = vadd.xlane.f32.xlu0 %v3235
        %v3237 = vpop.xlane.xlu0 %3236
        %v3238 = vsel %vm3117, %v3199, 0.0
        %3239 = vadd.xlane.f32.xlu0 %v3238
        %v3240 = vpop.xlane.xlu0 %3239
        %v3241 = vsel %vm3117, %v3201, 0.0
        %3242 = vadd.xlane.f32.xlu0 %v3241
        %v3243 = vpop.xlane.xlu0 %3242
        %v3244 = vsel %vm3117, %v3203, 0.0
        %3245 = vadd.xlane.f32.xlu0 %v3244
        %v3246 = vpop.xlane.xlu0 %3245
        %v3247 = vsel %vm3117, %v3205, 0.0
        %3248 = vadd.xlane.f32.xlu0 %v3247
        %v3249 = vpop.xlane.xlu0 %3248
        %v3250 = vsel %vm3117, %v3207, 0.0
        %3251 = vadd.xlane.f32.xlu0 %v3250
        %v3252 = vpop.xlane.xlu0 %3251
        %v3253 = vsel %vm3117, %v3209, 0.0
        %3254 = vadd.xlane.f32.xlu0 %v3253
        %v3255 = vpop.xlane.xlu0 %3254
        %v3256 = vsel %vm3117, %v3211, 0.0
        %3257 = vadd.xlane.f32.xlu0 %v3256
        %v3258 = vpop.xlane.xlu0 %3257
        %v3259 = vsel %vm3117, %v3213, 0.0
        %3260 = vadd.xlane.f32.xlu0 %v3259
        %v3261 = vpop.xlane.xlu0 %3260
        %v3262 = vpack.c.bf16 %v3183, %v3183
        %v3263 = vpack.c.bf16 %v3185, %v3185
        %v3264 = vpack.c.bf16 %v3187, %v3187
        %v3265 = vpack.c.bf16 %v3189, %v3189
        %v3266 = vpack.c.bf16 %v3191, %v3191
        %v3267 = vpack.c.bf16 %v3193, %v3193
        %v3268 = vpack.c.bf16 %v3195, %v3195
        %v3269 = vpack.c.bf16 %v3197, %v3197
        %v3270 = vpack.c.bf16 %v3199, %v3199
        %v3271 = vpack.c.bf16 %v3201, %v3201
        %v3272 = vpack.c.bf16 %v3203, %v3203
        %v3273 = vpack.c.bf16 %v3205, %v3205
        %v3274 = vpack.c.bf16 %v3207, %v3207
        %v3275 = vpack.c.bf16 %v3209, %v3209
        %v3276 = vpack.c.bf16 %v3211, %v3211
        %v3277 = vpack.c.bf16 %v3213, %v3213
        %v3279 = vsel %vm3117, %v3262, 0
        %vm3281 = vcmask 1043456
        %v3283 = vsel %vm3281, %v2334, 0
        %3285 = vmatprep.subr.bf16.mxu0 0
        %3286 = vmatpush1.bf16.msra.mxu0 0
        %3287 = vmatprep.subr.bf16.mxu0 0
        %3288 = vmatpush1.bf16.msra.mxu0 0
        %3289 = vmatprep.subr.bf16.mxu0 0
        %3290 = vmatpush1.bf16.msra.mxu0 0
        %3291 = vmatprep.subr.bf16.mxu0 0
        %3292 = vmatpush1.bf16.msra.mxu0 0
        %3293 = vmatprep.subr.bf16.mxu0 0
        %3294 = vmatpush1.bf16.msra.mxu0 0
        %3295 = vmatprep.subr.bf16.mxu0 0
        %3296 = vmatpush1.bf16.msra.mxu0 0
        %3297 = vmatprep.subr.bf16.mxu0 0
        %3298 = vmatpush1.bf16.msra.mxu0 0
        %3299 = vmatprep.subr.bf16.mxu0 0
        %3300 = vmatpush1.bf16.msra.mxu0 %v3283
        %3301 = vmatprep.subr.bf16.mxu0 0
        %3302 = vmatpush2.bf16.msra.mxu0 0
        %3303 = vmatprep.subr.bf16.mxu0 0
        %3304 = vmatpush2.bf16.msra.mxu0 0
        %3305 = vmatprep.subr.bf16.mxu0 0
        %3306 = vmatpush2.bf16.msra.mxu0 0
        %3307 = vmatprep.subr.bf16.mxu0 0
        %3308 = vmatpush2.bf16.msra.mxu0 0
        %3309 = vmatprep.subr.bf16.mxu0 0
        %3310 = vmatpush2.bf16.msra.mxu0 0
        %3311 = vmatprep.subr.bf16.mxu0 0
        %3312 = vmatpush2.bf16.msra.mxu0 0
        %3313 = vmatprep.subr.bf16.mxu0 0
        %3314 = vmatpush2.bf16.msra.mxu0 0
        %3315 = vmatprep.subr.bf16.mxu0 0
        %3316 = vmatpush2.bf16.msra.mxu0 0
        %3317 = vmatprep.mubr.bf16.mxu0 0
        %3318 = vmatmul.mubr.bf16.gmra.mxu0 %v3279
        %v3319 = vpop.f32.mrf.mxu0
        %v3320 = vadd.f32 0.0, %v3319
        %v3321 = vpop.f32.mrf.mxu0
        %v3322 = vpop.f32.mrf.mxu0
        %v3323 = vpop.f32.mrf.mxu0
        %3324 = vdwg.mxu0
        %v3326 = vsel %vm3117, %v3263, 0
        %v3329 = vsel %vm3281, %v2337, 0
        %3331 = vmatprep.subr.bf16.mxu0 0
        %3332 = vmatpush1.bf16.msra.mxu0 0
        %3333 = vmatprep.subr.bf16.mxu0 0
        %3334 = vmatpush1.bf16.msra.mxu0 0
        %3335 = vmatprep.subr.bf16.mxu0 0
        %3336 = vmatpush1.bf16.msra.mxu0 0
        %3337 = vmatprep.subr.bf16.mxu0 0
        %3338 = vmatpush1.bf16.msra.mxu0 0
        %3339 = vmatprep.subr.bf16.mxu0 0
        %3340 = vmatpush1.bf16.msra.mxu0 0
        %3341 = vmatprep.subr.bf16.mxu0 0
        %3342 = vmatpush1.bf16.msra.mxu0 0
        %3343 = vmatprep.subr.bf16.mxu0 0
        %3344 = vmatpush1.bf16.msra.mxu0 0
        %3345 = vmatprep.subr.bf16.mxu0 0
        %3346 = vmatpush1.bf16.msra.mxu0 %v3329
        %3347 = vmatprep.subr.bf16.mxu0 0
        %3348 = vmatpush2.bf16.msra.mxu0 0
        %3349 = vmatprep.subr.bf16.mxu0 0
        %3350 = vmatpush2.bf16.msra.mxu0 0
        %3351 = vmatprep.subr.bf16.mxu0 0
        %3352 = vmatpush2.bf16.msra.mxu0 0
        %3353 = vmatprep.subr.bf16.mxu0 0
        %3354 = vmatpush2.bf16.msra.mxu0 0
        %3355 = vmatprep.subr.bf16.mxu0 0
        %3356 = vmatpush2.bf16.msra.mxu0 0
        %3357 = vmatprep.subr.bf16.mxu0 0
        %3358 = vmatpush2.bf16.msra.mxu0 0
        %3359 = vmatprep.subr.bf16.mxu0 0
        %3360 = vmatpush2.bf16.msra.mxu0 0
        %3361 = vmatprep.subr.bf16.mxu0 0
        %3362 = vmatpush2.bf16.msra.mxu0 0
        %3363 = vmatprep.mubr.bf16.mxu0 0
        %3364 = vmatmul.mubr.bf16.gmra.mxu0 %v3326
        %v3365 = vpop.f32.mrf.mxu0
        %v3366 = vadd.f32 0.0, %v3365
        %v3367 = vpop.f32.mrf.mxu0
        %v3368 = vpop.f32.mrf.mxu0
        %v3369 = vpop.f32.mrf.mxu0
        %3370 = vdwg.mxu0
        %v3372 = vsel %vm3117, %v3264, 0
        %v3375 = vsel %vm3281, %v2340, 0
        %3377 = vmatprep.subr.bf16.mxu0 0
        %3378 = vmatpush1.bf16.msra.mxu0 0
        %3379 = vmatprep.subr.bf16.mxu0 0
        %3380 = vmatpush1.bf16.msra.mxu0 0
        %3381 = vmatprep.subr.bf16.mxu0 0
        %3382 = vmatpush1.bf16.msra.mxu0 0
        %3383 = vmatprep.subr.bf16.mxu0 0
        %3384 = vmatpush1.bf16.msra.mxu0 0
        %3385 = vmatprep.subr.bf16.mxu0 0
        %3386 = vmatpush1.bf16.msra.mxu0 0
        %3387 = vmatprep.subr.bf16.mxu0 0
        %3388 = vmatpush1.bf16.msra.mxu0 0
        %3389 = vmatprep.subr.bf16.mxu0 0
        %3390 = vmatpush1.bf16.msra.mxu0 0
        %3391 = vmatprep.subr.bf16.mxu0 0
        %3392 = vmatpush1.bf16.msra.mxu0 %v3375
        %3393 = vmatprep.subr.bf16.mxu0 0
        %3394 = vmatpush2.bf16.msra.mxu0 0
        %3395 = vmatprep.subr.bf16.mxu0 0
        %3396 = vmatpush2.bf16.msra.mxu0 0
        %3397 = vmatprep.subr.bf16.mxu0 0
        %3398 = vmatpush2.bf16.msra.mxu0 0
        %3399 = vmatprep.subr.bf16.mxu0 0
        %3400 = vmatpush2.bf16.msra.mxu0 0
        %3401 = vmatprep.subr.bf16.mxu0 0
        %3402 = vmatpush2.bf16.msra.mxu0 0
        %3403 = vmatprep.subr.bf16.mxu0 0
        %3404 = vmatpush2.bf16.msra.mxu0 0
        %3405 = vmatprep.subr.bf16.mxu0 0
        %3406 = vmatpush2.bf16.msra.mxu0 0
        %3407 = vmatprep.subr.bf16.mxu0 0
        %3408 = vmatpush2.bf16.msra.mxu0 0
        %3409 = vmatprep.mubr.bf16.mxu0 0
        %3410 = vmatmul.mubr.bf16.gmra.mxu0 %v3372
        %v3411 = vpop.f32.mrf.mxu0
        %v3412 = vadd.f32 0.0, %v3411
        %v3413 = vpop.f32.mrf.mxu0
        %v3414 = vpop.f32.mrf.mxu0
        %v3415 = vpop.f32.mrf.mxu0
        %3416 = vdwg.mxu0
        %v3418 = vsel %vm3117, %v3265, 0
        %v3421 = vsel %vm3281, %v2343, 0
        %3423 = vmatprep.subr.bf16.mxu0 0
        %3424 = vmatpush1.bf16.msra.mxu0 0
        %3425 = vmatprep.subr.bf16.mxu0 0
        %3426 = vmatpush1.bf16.msra.mxu0 0
        %3427 = vmatprep.subr.bf16.mxu0 0
        %3428 = vmatpush1.bf16.msra.mxu0 0
        %3429 = vmatprep.subr.bf16.mxu0 0
        %3430 = vmatpush1.bf16.msra.mxu0 0
        %3431 = vmatprep.subr.bf16.mxu0 0
        %3432 = vmatpush1.bf16.msra.mxu0 0
        %3433 = vmatprep.subr.bf16.mxu0 0
        %3434 = vmatpush1.bf16.msra.mxu0 0
        %3435 = vmatprep.subr.bf16.mxu0 0
        %3436 = vmatpush1.bf16.msra.mxu0 0
        %3437 = vmatprep.subr.bf16.mxu0 0
        %3438 = vmatpush1.bf16.msra.mxu0 %v3421
        %3439 = vmatprep.subr.bf16.mxu0 0
        %3440 = vmatpush2.bf16.msra.mxu0 0
        %3441 = vmatprep.subr.bf16.mxu0 0
        %3442 = vmatpush2.bf16.msra.mxu0 0
        %3443 = vmatprep.subr.bf16.mxu0 0
        %3444 = vmatpush2.bf16.msra.mxu0 0
        %3445 = vmatprep.subr.bf16.mxu0 0
        %3446 = vmatpush2.bf16.msra.mxu0 0
        %3447 = vmatprep.subr.bf16.mxu0 0
        %3448 = vmatpush2.bf16.msra.mxu0 0
        %3449 = vmatprep.subr.bf16.mxu0 0
        %3450 = vmatpush2.bf16.msra.mxu0 0
        %3451 = vmatprep.subr.bf16.mxu0 0
        %3452 = vmatpush2.bf16.msra.mxu0 0
        %3453 = vmatprep.subr.bf16.mxu0 0
        %3454 = vmatpush2.bf16.msra.mxu0 0
        %3455 = vmatprep.mubr.bf16.mxu0 0
        %3456 = vmatmul.mubr.bf16.gmra.mxu0 %v3418
        %v3457 = vpop.f32.mrf.mxu0
        %v3458 = vadd.f32 0.0, %v3457
        %v3459 = vpop.f32.mrf.mxu0
        %v3460 = vpop.f32.mrf.mxu0
        %v3461 = vpop.f32.mrf.mxu0
        %3462 = vdwg.mxu0
        %v3464 = vsel %vm3117, %v3266, 0
        %v3467 = vsel %vm3281, %v2346, 0
        %3469 = vmatprep.subr.bf16.mxu0 0
        %3470 = vmatpush1.bf16.msra.mxu0 0
        %3471 = vmatprep.subr.bf16.mxu0 0
        %3472 = vmatpush1.bf16.msra.mxu0 0
        %3473 = vmatprep.subr.bf16.mxu0 0
        %3474 = vmatpush1.bf16.msra.mxu0 0
        %3475 = vmatprep.subr.bf16.mxu0 0
        %3476 = vmatpush1.bf16.msra.mxu0 0
        %3477 = vmatprep.subr.bf16.mxu0 0
        %3478 = vmatpush1.bf16.msra.mxu0 0
        %3479 = vmatprep.subr.bf16.mxu0 0
        %3480 = vmatpush1.bf16.msra.mxu0 0
        %3481 = vmatprep.subr.bf16.mxu0 0
        %3482 = vmatpush1.bf16.msra.mxu0 0
        %3483 = vmatprep.subr.bf16.mxu0 0
        %3484 = vmatpush1.bf16.msra.mxu0 %v3467
        %3485 = vmatprep.subr.bf16.mxu0 0
        %3486 = vmatpush2.bf16.msra.mxu0 0
        %3487 = vmatprep.subr.bf16.mxu0 0
        %3488 = vmatpush2.bf16.msra.mxu0 0
        %3489 = vmatprep.subr.bf16.mxu0 0
        %3490 = vmatpush2.bf16.msra.mxu0 0
        %3491 = vmatprep.subr.bf16.mxu0 0
        %3492 = vmatpush2.bf16.msra.mxu0 0
        %3493 = vmatprep.subr.bf16.mxu0 0
        %3494 = vmatpush2.bf16.msra.mxu0 0
        %3495 = vmatprep.subr.bf16.mxu0 0
        %3496 = vmatpush2.bf16.msra.mxu0 0
        %3497 = vmatprep.subr.bf16.mxu0 0
        %3498 = vmatpush2.bf16.msra.mxu0 0
        %3499 = vmatprep.subr.bf16.mxu0 0
        %3500 = vmatpush2.bf16.msra.mxu0 0
        %3501 = vmatprep.mubr.bf16.mxu0 0
        %3502 = vmatmul.mubr.bf16.gmra.mxu0 %v3464
        %v3503 = vpop.f32.mrf.mxu0
        %v3504 = vadd.f32 0.0, %v3503
        %v3505 = vpop.f32.mrf.mxu0
        %v3506 = vpop.f32.mrf.mxu0
        %v3507 = vpop.f32.mrf.mxu0
        %3508 = vdwg.mxu0
        %v3510 = vsel %vm3117, %v3267, 0
        %v3513 = vsel %vm3281, %v2349, 0
        %3515 = vmatprep.subr.bf16.mxu0 0
        %3516 = vmatpush1.bf16.msra.mxu0 0
        %3517 = vmatprep.subr.bf16.mxu0 0
        %3518 = vmatpush1.bf16.msra.mxu0 0
        %3519 = vmatprep.subr.bf16.mxu0 0
        %3520 = vmatpush1.bf16.msra.mxu0 0
        %3521 = vmatprep.subr.bf16.mxu0 0
        %3522 = vmatpush1.bf16.msra.mxu0 0
        %3523 = vmatprep.subr.bf16.mxu0 0
        %3524 = vmatpush1.bf16.msra.mxu0 0
        %3525 = vmatprep.subr.bf16.mxu0 0
        %3526 = vmatpush1.bf16.msra.mxu0 0
        %3527 = vmatprep.subr.bf16.mxu0 0
        %3528 = vmatpush1.bf16.msra.mxu0 0
        %3529 = vmatprep.subr.bf16.mxu0 0
        %3530 = vmatpush1.bf16.msra.mxu0 %v3513
        %3531 = vmatprep.subr.bf16.mxu0 0
        %3532 = vmatpush2.bf16.msra.mxu0 0
        %3533 = vmatprep.subr.bf16.mxu0 0
        %3534 = vmatpush2.bf16.msra.mxu0 0
        %3535 = vmatprep.subr.bf16.mxu0 0
        %3536 = vmatpush2.bf16.msra.mxu0 0
        %3537 = vmatprep.subr.bf16.mxu0 0
        %3538 = vmatpush2.bf16.msra.mxu0 0
        %3539 = vmatprep.subr.bf16.mxu0 0
        %3540 = vmatpush2.bf16.msra.mxu0 0
        %3541 = vmatprep.subr.bf16.mxu0 0
        %3542 = vmatpush2.bf16.msra.mxu0 0
        %3543 = vmatprep.subr.bf16.mxu0 0
        %3544 = vmatpush2.bf16.msra.mxu0 0
        %3545 = vmatprep.subr.bf16.mxu0 0
        %3546 = vmatpush2.bf16.msra.mxu0 0
        %3547 = vmatprep.mubr.bf16.mxu0 0
        %3548 = vmatmul.mubr.bf16.gmra.mxu0 %v3510
        %v3549 = vpop.f32.mrf.mxu0
        %v3550 = vadd.f32 0.0, %v3549
        %v3551 = vpop.f32.mrf.mxu0
        %v3552 = vpop.f32.mrf.mxu0
        %v3553 = vpop.f32.mrf.mxu0
        %3554 = vdwg.mxu0
        %v3556 = vsel %vm3117, %v3268, 0
        %v3559 = vsel %vm3281, %v2352, 0
        %3561 = vmatprep.subr.bf16.mxu0 0
        %3562 = vmatpush1.bf16.msra.mxu0 0
        %3563 = vmatprep.subr.bf16.mxu0 0
        %3564 = vmatpush1.bf16.msra.mxu0 0
        %3565 = vmatprep.subr.bf16.mxu0 0
        %3566 = vmatpush1.bf16.msra.mxu0 0
        %3567 = vmatprep.subr.bf16.mxu0 0
        %3568 = vmatpush1.bf16.msra.mxu0 0
        %3569 = vmatprep.subr.bf16.mxu0 0
        %3570 = vmatpush1.bf16.msra.mxu0 0
        %3571 = vmatprep.subr.bf16.mxu0 0
        %3572 = vmatpush1.bf16.msra.mxu0 0
        %3573 = vmatprep.subr.bf16.mxu0 0
        %3574 = vmatpush1.bf16.msra.mxu0 0
        %3575 = vmatprep.subr.bf16.mxu0 0
        %3576 = vmatpush1.bf16.msra.mxu0 %v3559
        %3577 = vmatprep.subr.bf16.mxu0 0
        %3578 = vmatpush2.bf16.msra.mxu0 0
        %3579 = vmatprep.subr.bf16.mxu0 0
        %3580 = vmatpush2.bf16.msra.mxu0 0
        %3581 = vmatprep.subr.bf16.mxu0 0
        %3582 = vmatpush2.bf16.msra.mxu0 0
        %3583 = vmatprep.subr.bf16.mxu0 0
        %3584 = vmatpush2.bf16.msra.mxu0 0
        %3585 = vmatprep.subr.bf16.mxu0 0
        %3586 = vmatpush2.bf16.msra.mxu0 0
        %3587 = vmatprep.subr.bf16.mxu0 0
        %3588 = vmatpush2.bf16.msra.mxu0 0
        %3589 = vmatprep.subr.bf16.mxu0 0
        %3590 = vmatpush2.bf16.msra.mxu0 0
        %3591 = vmatprep.subr.bf16.mxu0 0
        %3592 = vmatpush2.bf16.msra.mxu0 0
        %3593 = vmatprep.mubr.bf16.mxu0 0
        %3594 = vmatmul.mubr.bf16.gmra.mxu0 %v3556
        %v3595 = vpop.f32.mrf.mxu0
        %v3596 = vadd.f32 0.0, %v3595
        %v3597 = vpop.f32.mrf.mxu0
        %v3598 = vpop.f32.mrf.mxu0
        %v3599 = vpop.f32.mrf.mxu0
        %3600 = vdwg.mxu0
        %v3602 = vsel %vm3117, %v3269, 0
        %v3605 = vsel %vm3281, %v2355, 0
        %3607 = vmatprep.subr.bf16.mxu0 0
        %3608 = vmatpush1.bf16.msra.mxu0 0
        %3609 = vmatprep.subr.bf16.mxu0 0
        %3610 = vmatpush1.bf16.msra.mxu0 0
        %3611 = vmatprep.subr.bf16.mxu0 0
        %3612 = vmatpush1.bf16.msra.mxu0 0
        %3613 = vmatprep.subr.bf16.mxu0 0
        %3614 = vmatpush1.bf16.msra.mxu0 0
        %3615 = vmatprep.subr.bf16.mxu0 0
        %3616 = vmatpush1.bf16.msra.mxu0 0
        %3617 = vmatprep.subr.bf16.mxu0 0
        %3618 = vmatpush1.bf16.msra.mxu0 0
        %3619 = vmatprep.subr.bf16.mxu0 0
        %3620 = vmatpush1.bf16.msra.mxu0 0
        %3621 = vmatprep.subr.bf16.mxu0 0
        %3622 = vmatpush1.bf16.msra.mxu0 %v3605
        %3623 = vmatprep.subr.bf16.mxu0 0
        %3624 = vmatpush2.bf16.msra.mxu0 0
        %3625 = vmatprep.subr.bf16.mxu0 0
        %3626 = vmatpush2.bf16.msra.mxu0 0
        %3627 = vmatprep.subr.bf16.mxu0 0
        %3628 = vmatpush2.bf16.msra.mxu0 0
        %3629 = vmatprep.subr.bf16.mxu0 0
        %3630 = vmatpush2.bf16.msra.mxu0 0
        %3631 = vmatprep.subr.bf16.mxu0 0
        %3632 = vmatpush2.bf16.msra.mxu0 0
        %3633 = vmatprep.subr.bf16.mxu0 0
        %3634 = vmatpush2.bf16.msra.mxu0 0
        %3635 = vmatprep.subr.bf16.mxu0 0
        %3636 = vmatpush2.bf16.msra.mxu0 0
        %3637 = vmatprep.subr.bf16.mxu0 0
        %3638 = vmatpush2.bf16.msra.mxu0 0
        %3639 = vmatprep.mubr.bf16.mxu0 0
        %3640 = vmatmul.mubr.bf16.gmra.mxu0 %v3602
        %v3641 = vpop.f32.mrf.mxu0
        %v3642 = vadd.f32 0.0, %v3641
        %v3643 = vpop.f32.mrf.mxu0
        %v3644 = vpop.f32.mrf.mxu0
        %v3645 = vpop.f32.mrf.mxu0
        %3646 = vdwg.mxu0
        %v3648 = vsel %vm3117, %v3270, 0
        %v3651 = vsel %vm3281, %v2358, 0
        %3653 = vmatprep.subr.bf16.mxu0 0
        %3654 = vmatpush1.bf16.msra.mxu0 0
        %3655 = vmatprep.subr.bf16.mxu0 0
        %3656 = vmatpush1.bf16.msra.mxu0 0
        %3657 = vmatprep.subr.bf16.mxu0 0
        %3658 = vmatpush1.bf16.msra.mxu0 0
        %3659 = vmatprep.subr.bf16.mxu0 0
        %3660 = vmatpush1.bf16.msra.mxu0 0
        %3661 = vmatprep.subr.bf16.mxu0 0
        %3662 = vmatpush1.bf16.msra.mxu0 0
        %3663 = vmatprep.subr.bf16.mxu0 0
        %3664 = vmatpush1.bf16.msra.mxu0 0
        %3665 = vmatprep.subr.bf16.mxu0 0
        %3666 = vmatpush1.bf16.msra.mxu0 0
        %3667 = vmatprep.subr.bf16.mxu0 0
        %3668 = vmatpush1.bf16.msra.mxu0 %v3651
        %3669 = vmatprep.subr.bf16.mxu0 0
        %3670 = vmatpush2.bf16.msra.mxu0 0
        %3671 = vmatprep.subr.bf16.mxu0 0
        %3672 = vmatpush2.bf16.msra.mxu0 0
        %3673 = vmatprep.subr.bf16.mxu0 0
        %3674 = vmatpush2.bf16.msra.mxu0 0
        %3675 = vmatprep.subr.bf16.mxu0 0
        %3676 = vmatpush2.bf16.msra.mxu0 0
        %3677 = vmatprep.subr.bf16.mxu0 0
        %3678 = vmatpush2.bf16.msra.mxu0 0
        %3679 = vmatprep.subr.bf16.mxu0 0
        %3680 = vmatpush2.bf16.msra.mxu0 0
        %3681 = vmatprep.subr.bf16.mxu0 0
        %3682 = vmatpush2.bf16.msra.mxu0 0
        %3683 = vmatprep.subr.bf16.mxu0 0
        %3684 = vmatpush2.bf16.msra.mxu0 0
        %3685 = vmatprep.mubr.bf16.mxu0 0
        %3686 = vmatmul.mubr.bf16.gmra.mxu0 %v3648
        %v3687 = vpop.f32.mrf.mxu0
        %v3688 = vadd.f32 0.0, %v3687
        %v3689 = vpop.f32.mrf.mxu0
        %v3690 = vpop.f32.mrf.mxu0
        %v3691 = vpop.f32.mrf.mxu0
        %3692 = vdwg.mxu0
        %v3694 = vsel %vm3117, %v3271, 0
        %v3697 = vsel %vm3281, %v2361, 0
        %3699 = vmatprep.subr.bf16.mxu0 0
        %3700 = vmatpush1.bf16.msra.mxu0 0
        %3701 = vmatprep.subr.bf16.mxu0 0
        %3702 = vmatpush1.bf16.msra.mxu0 0
        %3703 = vmatprep.subr.bf16.mxu0 0
        %3704 = vmatpush1.bf16.msra.mxu0 0
        %3705 = vmatprep.subr.bf16.mxu0 0
        %3706 = vmatpush1.bf16.msra.mxu0 0
        %3707 = vmatprep.subr.bf16.mxu0 0
        %3708 = vmatpush1.bf16.msra.mxu0 0
        %3709 = vmatprep.subr.bf16.mxu0 0
        %3710 = vmatpush1.bf16.msra.mxu0 0
        %3711 = vmatprep.subr.bf16.mxu0 0
        %3712 = vmatpush1.bf16.msra.mxu0 0
        %3713 = vmatprep.subr.bf16.mxu0 0
        %3714 = vmatpush1.bf16.msra.mxu0 %v3697
        %3715 = vmatprep.subr.bf16.mxu0 0
        %3716 = vmatpush2.bf16.msra.mxu0 0
        %3717 = vmatprep.subr.bf16.mxu0 0
        %3718 = vmatpush2.bf16.msra.mxu0 0
        %3719 = vmatprep.subr.bf16.mxu0 0
        %3720 = vmatpush2.bf16.msra.mxu0 0
        %3721 = vmatprep.subr.bf16.mxu0 0
        %3722 = vmatpush2.bf16.msra.mxu0 0
        %3723 = vmatprep.subr.bf16.mxu0 0
        %3724 = vmatpush2.bf16.msra.mxu0 0
        %3725 = vmatprep.subr.bf16.mxu0 0
        %3726 = vmatpush2.bf16.msra.mxu0 0
        %3727 = vmatprep.subr.bf16.mxu0 0
        %3728 = vmatpush2.bf16.msra.mxu0 0
        %3729 = vmatprep.subr.bf16.mxu0 0
        %3730 = vmatpush2.bf16.msra.mxu0 0
        %3731 = vmatprep.mubr.bf16.mxu0 0
        %3732 = vmatmul.mubr.bf16.gmra.mxu0 %v3694
        %v3733 = vpop.f32.mrf.mxu0
        %v3734 = vadd.f32 0.0, %v3733
        %v3735 = vpop.f32.mrf.mxu0
        %v3736 = vpop.f32.mrf.mxu0
        %v3737 = vpop.f32.mrf.mxu0
        %3738 = vdwg.mxu0
        %v3740 = vsel %vm3117, %v3272, 0
        %v3743 = vsel %vm3281, %v2364, 0
        %3745 = vmatprep.subr.bf16.mxu0 0
        %3746 = vmatpush1.bf16.msra.mxu0 0
        %3747 = vmatprep.subr.bf16.mxu0 0
        %3748 = vmatpush1.bf16.msra.mxu0 0
        %3749 = vmatprep.subr.bf16.mxu0 0
        %3750 = vmatpush1.bf16.msra.mxu0 0
        %3751 = vmatprep.subr.bf16.mxu0 0
        %3752 = vmatpush1.bf16.msra.mxu0 0
        %3753 = vmatprep.subr.bf16.mxu0 0
        %3754 = vmatpush1.bf16.msra.mxu0 0
        %3755 = vmatprep.subr.bf16.mxu0 0
        %3756 = vmatpush1.bf16.msra.mxu0 0
        %3757 = vmatprep.subr.bf16.mxu0 0
        %3758 = vmatpush1.bf16.msra.mxu0 0
        %3759 = vmatprep.subr.bf16.mxu0 0
        %3760 = vmatpush1.bf16.msra.mxu0 %v3743
        %3761 = vmatprep.subr.bf16.mxu0 0
        %3762 = vmatpush2.bf16.msra.mxu0 0
        %3763 = vmatprep.subr.bf16.mxu0 0
        %3764 = vmatpush2.bf16.msra.mxu0 0
        %3765 = vmatprep.subr.bf16.mxu0 0
        %3766 = vmatpush2.bf16.msra.mxu0 0
        %3767 = vmatprep.subr.bf16.mxu0 0
        %3768 = vmatpush2.bf16.msra.mxu0 0
        %3769 = vmatprep.subr.bf16.mxu0 0
        %3770 = vmatpush2.bf16.msra.mxu0 0
        %3771 = vmatprep.subr.bf16.mxu0 0
        %3772 = vmatpush2.bf16.msra.mxu0 0
        %3773 = vmatprep.subr.bf16.mxu0 0
        %3774 = vmatpush2.bf16.msra.mxu0 0
        %3775 = vmatprep.subr.bf16.mxu0 0
        %3776 = vmatpush2.bf16.msra.mxu0 0
        %3777 = vmatprep.mubr.bf16.mxu0 0
        %3778 = vmatmul.mubr.bf16.gmra.mxu0 %v3740
        %v3779 = vpop.f32.mrf.mxu0
        %v3780 = vadd.f32 0.0, %v3779
        %v3781 = vpop.f32.mrf.mxu0
        %v3782 = vpop.f32.mrf.mxu0
        %v3783 = vpop.f32.mrf.mxu0
        %3784 = vdwg.mxu0
        %v3786 = vsel %vm3117, %v3273, 0
        %v3789 = vsel %vm3281, %v2367, 0
        %3791 = vmatprep.subr.bf16.mxu0 0
        %3792 = vmatpush1.bf16.msra.mxu0 0
        %3793 = vmatprep.subr.bf16.mxu0 0
        %3794 = vmatpush1.bf16.msra.mxu0 0
        %3795 = vmatprep.subr.bf16.mxu0 0
        %3796 = vmatpush1.bf16.msra.mxu0 0
        %3797 = vmatprep.subr.bf16.mxu0 0
        %3798 = vmatpush1.bf16.msra.mxu0 0
        %3799 = vmatprep.subr.bf16.mxu0 0
        %3800 = vmatpush1.bf16.msra.mxu0 0
        %3801 = vmatprep.subr.bf16.mxu0 0
        %3802 = vmatpush1.bf16.msra.mxu0 0
        %3803 = vmatprep.subr.bf16.mxu0 0
        %3804 = vmatpush1.bf16.msra.mxu0 0
        %3805 = vmatprep.subr.bf16.mxu0 0
        %3806 = vmatpush1.bf16.msra.mxu0 %v3789
        %3807 = vmatprep.subr.bf16.mxu0 0
        %3808 = vmatpush2.bf16.msra.mxu0 0
        %3809 = vmatprep.subr.bf16.mxu0 0
        %3810 = vmatpush2.bf16.msra.mxu0 0
        %3811 = vmatprep.subr.bf16.mxu0 0
        %3812 = vmatpush2.bf16.msra.mxu0 0
        %3813 = vmatprep.subr.bf16.mxu0 0
        %3814 = vmatpush2.bf16.msra.mxu0 0
        %3815 = vmatprep.subr.bf16.mxu0 0
        %3816 = vmatpush2.bf16.msra.mxu0 0
        %3817 = vmatprep.subr.bf16.mxu0 0
        %3818 = vmatpush2.bf16.msra.mxu0 0
        %3819 = vmatprep.subr.bf16.mxu0 0
        %3820 = vmatpush2.bf16.msra.mxu0 0
        %3821 = vmatprep.subr.bf16.mxu0 0
        %3822 = vmatpush2.bf16.msra.mxu0 0
        %3823 = vmatprep.mubr.bf16.mxu0 0
        %3824 = vmatmul.mubr.bf16.gmra.mxu0 %v3786
        %v3825 = vpop.f32.mrf.mxu0
        %v3826 = vadd.f32 0.0, %v3825
        %v3827 = vpop.f32.mrf.mxu0
        %v3828 = vpop.f32.mrf.mxu0
        %v3829 = vpop.f32.mrf.mxu0
        %3830 = vdwg.mxu0
        %v3832 = vsel %vm3117, %v3274, 0
        %v3835 = vsel %vm3281, %v2370, 0
        %3837 = vmatprep.subr.bf16.mxu0 0
        %3838 = vmatpush1.bf16.msra.mxu0 0
        %3839 = vmatprep.subr.bf16.mxu0 0
        %3840 = vmatpush1.bf16.msra.mxu0 0
        %3841 = vmatprep.subr.bf16.mxu0 0
        %3842 = vmatpush1.bf16.msra.mxu0 0
        %3843 = vmatprep.subr.bf16.mxu0 0
        %3844 = vmatpush1.bf16.msra.mxu0 0
        %3845 = vmatprep.subr.bf16.mxu0 0
        %3846 = vmatpush1.bf16.msra.mxu0 0
        %3847 = vmatprep.subr.bf16.mxu0 0
        %3848 = vmatpush1.bf16.msra.mxu0 0
        %3849 = vmatprep.subr.bf16.mxu0 0
        %3850 = vmatpush1.bf16.msra.mxu0 0
        %3851 = vmatprep.subr.bf16.mxu0 0
        %3852 = vmatpush1.bf16.msra.mxu0 %v3835
        %3853 = vmatprep.subr.bf16.mxu0 0
        %3854 = vmatpush2.bf16.msra.mxu0 0
        %3855 = vmatprep.subr.bf16.mxu0 0
        %3856 = vmatpush2.bf16.msra.mxu0 0
        %3857 = vmatprep.subr.bf16.mxu0 0
        %3858 = vmatpush2.bf16.msra.mxu0 0
        %3859 = vmatprep.subr.bf16.mxu0 0
        %3860 = vmatpush2.bf16.msra.mxu0 0
        %3861 = vmatprep.subr.bf16.mxu0 0
        %3862 = vmatpush2.bf16.msra.mxu0 0
        %3863 = vmatprep.subr.bf16.mxu0 0
        %3864 = vmatpush2.bf16.msra.mxu0 0
        %3865 = vmatprep.subr.bf16.mxu0 0
        %3866 = vmatpush2.bf16.msra.mxu0 0
        %3867 = vmatprep.subr.bf16.mxu0 0
        %3868 = vmatpush2.bf16.msra.mxu0 0
        %3869 = vmatprep.mubr.bf16.mxu0 0
        %3870 = vmatmul.mubr.bf16.gmra.mxu0 %v3832
        %v3871 = vpop.f32.mrf.mxu0
        %v3872 = vadd.f32 0.0, %v3871
        %v3873 = vpop.f32.mrf.mxu0
        %v3874 = vpop.f32.mrf.mxu0
        %v3875 = vpop.f32.mrf.mxu0
        %3876 = vdwg.mxu0
        %v3878 = vsel %vm3117, %v3275, 0
        %v3881 = vsel %vm3281, %v2373, 0
        %3883 = vmatprep.subr.bf16.mxu0 0
        %3884 = vmatpush1.bf16.msra.mxu0 0
        %3885 = vmatprep.subr.bf16.mxu0 0
        %3886 = vmatpush1.bf16.msra.mxu0 0
        %3887 = vmatprep.subr.bf16.mxu0 0
        %3888 = vmatpush1.bf16.msra.mxu0 0
        %3889 = vmatprep.subr.bf16.mxu0 0
        %3890 = vmatpush1.bf16.msra.mxu0 0
        %3891 = vmatprep.subr.bf16.mxu0 0
        %3892 = vmatpush1.bf16.msra.mxu0 0
        %3893 = vmatprep.subr.bf16.mxu0 0
        %3894 = vmatpush1.bf16.msra.mxu0 0
        %3895 = vmatprep.subr.bf16.mxu0 0
        %3896 = vmatpush1.bf16.msra.mxu0 0
        %3897 = vmatprep.subr.bf16.mxu0 0
        %3898 = vmatpush1.bf16.msra.mxu0 %v3881
        %3899 = vmatprep.subr.bf16.mxu0 0
        %3900 = vmatpush2.bf16.msra.mxu0 0
        %3901 = vmatprep.subr.bf16.mxu0 0
        %3902 = vmatpush2.bf16.msra.mxu0 0
        %3903 = vmatprep.subr.bf16.mxu0 0
        %3904 = vmatpush2.bf16.msra.mxu0 0
        %3905 = vmatprep.subr.bf16.mxu0 0
        %3906 = vmatpush2.bf16.msra.mxu0 0
        %3907 = vmatprep.subr.bf16.mxu0 0
        %3908 = vmatpush2.bf16.msra.mxu0 0
        %3909 = vmatprep.subr.bf16.mxu0 0
        %3910 = vmatpush2.bf16.msra.mxu0 0
        %3911 = vmatprep.subr.bf16.mxu0 0
        %3912 = vmatpush2.bf16.msra.mxu0 0
        %3913 = vmatprep.subr.bf16.mxu0 0
        %3914 = vmatpush2.bf16.msra.mxu0 0
        %3915 = vmatprep.mubr.bf16.mxu0 0
        %3916 = vmatmul.mubr.bf16.gmra.mxu0 %v3878
        %v3917 = vpop.f32.mrf.mxu0
        %v3918 = vadd.f32 0.0, %v3917
        %v3919 = vpop.f32.mrf.mxu0
        %v3920 = vpop.f32.mrf.mxu0
        %v3921 = vpop.f32.mrf.mxu0
        %3922 = vdwg.mxu0
        %v3924 = vsel %vm3117, %v3276, 0
        %v3927 = vsel %vm3281, %v2376, 0
        %3929 = vmatprep.subr.bf16.mxu0 0
        %3930 = vmatpush1.bf16.msra.mxu0 0
        %3931 = vmatprep.subr.bf16.mxu0 0
        %3932 = vmatpush1.bf16.msra.mxu0 0
        %3933 = vmatprep.subr.bf16.mxu0 0
        %3934 = vmatpush1.bf16.msra.mxu0 0
        %3935 = vmatprep.subr.bf16.mxu0 0
        %3936 = vmatpush1.bf16.msra.mxu0 0
        %3937 = vmatprep.subr.bf16.mxu0 0
        %3938 = vmatpush1.bf16.msra.mxu0 0
        %3939 = vmatprep.subr.bf16.mxu0 0
        %3940 = vmatpush1.bf16.msra.mxu0 0
        %3941 = vmatprep.subr.bf16.mxu0 0
        %3942 = vmatpush1.bf16.msra.mxu0 0
        %3943 = vmatprep.subr.bf16.mxu0 0
        %3944 = vmatpush1.bf16.msra.mxu0 %v3927
        %3945 = vmatprep.subr.bf16.mxu0 0
        %3946 = vmatpush2.bf16.msra.mxu0 0
        %3947 = vmatprep.subr.bf16.mxu0 0
        %3948 = vmatpush2.bf16.msra.mxu0 0
        %3949 = vmatprep.subr.bf16.mxu0 0
        %3950 = vmatpush2.bf16.msra.mxu0 0
        %3951 = vmatprep.subr.bf16.mxu0 0
        %3952 = vmatpush2.bf16.msra.mxu0 0
        %3953 = vmatprep.subr.bf16.mxu0 0
        %3954 = vmatpush2.bf16.msra.mxu0 0
        %3955 = vmatprep.subr.bf16.mxu0 0
        %3956 = vmatpush2.bf16.msra.mxu0 0
        %3957 = vmatprep.subr.bf16.mxu0 0
        %3958 = vmatpush2.bf16.msra.mxu0 0
        %3959 = vmatprep.subr.bf16.mxu0 0
        %3960 = vmatpush2.bf16.msra.mxu0 0
        %3961 = vmatprep.mubr.bf16.mxu0 0
        %3962 = vmatmul.mubr.bf16.gmra.mxu0 %v3924
        %v3963 = vpop.f32.mrf.mxu0
        %v3964 = vadd.f32 0.0, %v3963
        %v3965 = vpop.f32.mrf.mxu0
        %v3966 = vpop.f32.mrf.mxu0
        %v3967 = vpop.f32.mrf.mxu0
        %3968 = vdwg.mxu0
        %v3970 = vsel %vm3117, %v3277, 0
        %v3973 = vsel %vm3281, %v2379, 0
        %3975 = vmatprep.subr.bf16.mxu0 0
        %3976 = vmatpush1.bf16.msra.mxu0 0
        %3977 = vmatprep.subr.bf16.mxu0 0
        %3978 = vmatpush1.bf16.msra.mxu0 0
        %3979 = vmatprep.subr.bf16.mxu0 0
        %3980 = vmatpush1.bf16.msra.mxu0 0
        %3981 = vmatprep.subr.bf16.mxu0 0
        %3982 = vmatpush1.bf16.msra.mxu0 0
        %3983 = vmatprep.subr.bf16.mxu0 0
        %3984 = vmatpush1.bf16.msra.mxu0 0
        %3985 = vmatprep.subr.bf16.mxu0 0
        %3986 = vmatpush1.bf16.msra.mxu0 0
        %3987 = vmatprep.subr.bf16.mxu0 0
        %3988 = vmatpush1.bf16.msra.mxu0 0
        %3989 = vmatprep.subr.bf16.mxu0 0
        %3990 = vmatpush1.bf16.msra.mxu0 %v3973
        %3991 = vmatprep.subr.bf16.mxu0 0
        %3992 = vmatpush2.bf16.msra.mxu0 0
        %3993 = vmatprep.subr.bf16.mxu0 0
        %3994 = vmatpush2.bf16.msra.mxu0 0
        %3995 = vmatprep.subr.bf16.mxu0 0
        %3996 = vmatpush2.bf16.msra.mxu0 0
        %3997 = vmatprep.subr.bf16.mxu0 0
        %3998 = vmatpush2.bf16.msra.mxu0 0
        %3999 = vmatprep.subr.bf16.mxu0 0
        %4000 = vmatpush2.bf16.msra.mxu0 0
        %4001 = vmatprep.subr.bf16.mxu0 0
        %4002 = vmatpush2.bf16.msra.mxu0 0
        %4003 = vmatprep.subr.bf16.mxu0 0
        %4004 = vmatpush2.bf16.msra.mxu0 0
        %4005 = vmatprep.subr.bf16.mxu0 0
        %4006 = vmatpush2.bf16.msra.mxu0 0
        %4007 = vmatprep.mubr.bf16.mxu0 0
        %4008 = vmatmul.mubr.bf16.gmra.mxu0 %v3970
        %v4009 = vpop.f32.mrf.mxu0
        %v4010 = vadd.f32 0.0, %v4009
        %v4011 = vpop.f32.mrf.mxu0
        %v4012 = vpop.f32.mrf.mxu0
        %v4013 = vpop.f32.mrf.mxu0
        %4014 = vdwg.mxu0
        %v4015 = vrcp.pop %v3216
        %v4016 = vrcp.pop %v3219
        %v4017 = vrcp.pop %v3222
        %v4018 = vrcp.pop %v3225
        %v4019 = vrcp.pop %v3228
        %v4020 = vrcp.pop %v3231
        %v4021 = vrcp.pop %v3234
        %v4022 = vrcp.pop %v3237
        %v4023 = vrcp.pop %v3240
        %v4024 = vrcp.pop %v3243
        %v4025 = vrcp.pop %v3246
        %v4026 = vrcp.pop %v3249
        %v4027 = vrcp.pop %v3252
        %v4028 = vrcp.pop %v3255
        %v4029 = vrcp.pop %v3258
        %v4030 = vrcp.pop %v3261
        %v4031 = vmul.f32 %v3320, %v4015
        %v4032 = vmul.f32 %v3366, %v4016
        %v4033 = vmul.f32 %v3412, %v4017
        %v4034 = vmul.f32 %v3458, %v4018
        %v4035 = vmul.f32 %v3504, %v4019
        %v4036 = vmul.f32 %v3550, %v4020
        %v4037 = vmul.f32 %v3596, %v4021
        %v4038 = vmul.f32 %v3642, %v4022
        %v4039 = vmul.f32 %v3688, %v4023
        %v4040 = vmul.f32 %v3734, %v4024
        %v4041 = vmul.f32 %v3780, %v4025
        %v4042 = vmul.f32 %v3826, %v4026
        %v4043 = vmul.f32 %v3872, %v4027
        %v4044 = vmul.f32 %v3918, %v4028
        %v4045 = vmul.f32 %v3964, %v4029
        %v4046 = vmul.f32 %v4010, %v4030
        %v4047 = vcombine.low %v4031, %v4033
        %v4048 = vcombine.high %v4031, %v4033
        %v4050 = vunpack.c.l.s4 1983009808
        %v4051 = vunpack.c.0.s8 %v4050
        %v4052 = vlaneseq
        %v4053 = vshrl.u32 %v4052, 7
        %v4054 = vsub.s32 %v4051, %v4053
        %v4055 = vrot.slane %v4047, %v4054
        %v4057 = vunpack.c.l.s4 1983009808
        %v4058 = vunpack.c.0.s8 %v4057
        %v4059 = vlaneseq
        %v4060 = vshrl.u32 %v4059, 7
        %v4061 = vsub.s32 %v4058, %v4060
        %v4062 = vrot.slane %v4048, %v4061
        %v4063 = vcombine.low %v4032, %v4034
        %v4064 = vcombine.high %v4032, %v4034
        %v4066 = vunpack.c.l.s4 1983009808
        %v4067 = vunpack.c.0.s8 %v4066
        %v4068 = vlaneseq
        %v4069 = vshrl.u32 %v4068, 7
        %v4070 = vsub.s32 %v4067, %v4069
        %v4071 = vrot.slane %v4063, %v4070
        %v4073 = vunpack.c.l.s4 1983009808
        %v4074 = vunpack.c.0.s8 %v4073
        %v4075 = vlaneseq
        %v4076 = vshrl.u32 %v4075, 7
        %v4077 = vsub.s32 %v4074, %v4076
        %v4078 = vrot.slane %v4064, %v4077
        %v4079 = vcombine.low %v4055, %v4071
        %v4080 = vcombine.high %v4055, %v4071
        %v4082 = vunpack.c.l.s4 1934713408
        %v4083 = vunpack.c.0.s8 %v4082
        %v4084 = vlaneseq
        %v4085 = vshrl.u32 %v4084, 7
        %v4086 = vsub.s32 %v4083, %v4085
        %v4087 = vrot.slane %v4079, %v4086
        %v4089 = vunpack.c.l.s4 1934713408
        %v4090 = vunpack.c.0.s8 %v4089
        %v4091 = vlaneseq
        %v4092 = vshrl.u32 %v4091, 7
        %v4093 = vsub.s32 %v4090, %v4092
        %v4094 = vrot.slane %v4080, %v4093
        %v4095 = vcombine.low %v4062, %v4078
        %v4096 = vcombine.high %v4062, %v4078
        %v4098 = vunpack.c.l.s4 1934713408
        %v4099 = vunpack.c.0.s8 %v4098
        %v4100 = vlaneseq
        %v4101 = vshrl.u32 %v4100, 7
        %v4102 = vsub.s32 %v4099, %v4101
        %v4103 = vrot.slane %v4095, %v4102
        %v4105 = vunpack.c.l.s4 1934713408
        %v4106 = vunpack.c.0.s8 %v4105
        %v4107 = vlaneseq
        %v4108 = vshrl.u32 %v4107, 7
        %v4109 = vsub.s32 %v4106, %v4108
        %v4110 = vrot.slane %v4096, %v4109
        %v4111 = vcombine.high %v4087, 0.0
        %v4112 = vcombine.high %v4094, 0.0
        %v4113 = vcombine.high %v4103, 0.0
        %v4114 = vcombine.high %v4110, 0.0
        %v4115 = vcombine.low %v4035, %v4037
        %v4116 = vcombine.high %v4035, %v4037
        %v4118 = vunpack.c.l.s4 1983009808
        %v4119 = vunpack.c.0.s8 %v4118
        %v4120 = vlaneseq
        %v4121 = vshrl.u32 %v4120, 7
        %v4122 = vsub.s32 %v4119, %v4121
        %v4123 = vrot.slane %v4115, %v4122
        %v4125 = vunpack.c.l.s4 1983009808
        %v4126 = vunpack.c.0.s8 %v4125
        %v4127 = vlaneseq
        %v4128 = vshrl.u32 %v4127, 7
        %v4129 = vsub.s32 %v4126, %v4128
        %v4130 = vrot.slane %v4116, %v4129
        %v4131 = vcombine.low %v4036, %v4038
        %v4132 = vcombine.high %v4036, %v4038
        %v4134 = vunpack.c.l.s4 1983009808
        %v4135 = vunpack.c.0.s8 %v4134
        %v4136 = vlaneseq
        %v4137 = vshrl.u32 %v4136, 7
        %v4138 = vsub.s32 %v4135, %v4137
        %v4139 = vrot.slane %v4131, %v4138
        %v4141 = vunpack.c.l.s4 1983009808
        %v4142 = vunpack.c.0.s8 %v4141
        %v4143 = vlaneseq
        %v4144 = vshrl.u32 %v4143, 7
        %v4145 = vsub.s32 %v4142, %v4144
        %v4146 = vrot.slane %v4132, %v4145
        %v4147 = vcombine.low %v4123, %v4139
        %v4148 = vcombine.high %v4123, %v4139
        %v4150 = vunpack.c.l.s4 1934713408
        %v4151 = vunpack.c.0.s8 %v4150
        %v4152 = vlaneseq
        %v4153 = vshrl.u32 %v4152, 7
        %v4154 = vsub.s32 %v4151, %v4153
        %v4155 = vrot.slane %v4147, %v4154
        %v4157 = vunpack.c.l.s4 1934713408
        %v4158 = vunpack.c.0.s8 %v4157
        %v4159 = vlaneseq
        %v4160 = vshrl.u32 %v4159, 7
        %v4161 = vsub.s32 %v4158, %v4160
        %v4162 = vrot.slane %v4148, %v4161
        %v4163 = vcombine.low %v4130, %v4146
        %v4164 = vcombine.high %v4130, %v4146
        %v4166 = vunpack.c.l.s4 1934713408
        %v4167 = vunpack.c.0.s8 %v4166
        %v4168 = vlaneseq
        %v4169 = vshrl.u32 %v4168, 7
        %v4170 = vsub.s32 %v4167, %v4169
        %v4171 = vrot.slane %v4163, %v4170
        %v4173 = vunpack.c.l.s4 1934713408
        %v4174 = vunpack.c.0.s8 %v4173
        %v4175 = vlaneseq
        %v4176 = vshrl.u32 %v4175, 7
        %v4177 = vsub.s32 %v4174, %v4176
        %v4178 = vrot.slane %v4164, %v4177
        %v4179 = vcombine.high %v4155, 0.0
        %v4180 = vcombine.high %v4162, 0.0
        %v4181 = vcombine.high %v4171, 0.0
        %v4182 = vcombine.high %v4178, 0.0
        %v4183 = vcombine.low %v4039, %v4041
        %v4184 = vcombine.high %v4039, %v4041
        %v4186 = vunpack.c.l.s4 1983009808
        %v4187 = vunpack.c.0.s8 %v4186
        %v4188 = vlaneseq
        %v4189 = vshrl.u32 %v4188, 7
        %v4190 = vsub.s32 %v4187, %v4189
        %v4191 = vrot.slane %v4183, %v4190
        %v4193 = vunpack.c.l.s4 1983009808
        %v4194 = vunpack.c.0.s8 %v4193
        %v4195 = vlaneseq
        %v4196 = vshrl.u32 %v4195, 7
        %v4197 = vsub.s32 %v4194, %v4196
        %v4198 = vrot.slane %v4184, %v4197
        %v4199 = vcombine.low %v4040, %v4042
        %v4200 = vcombine.high %v4040, %v4042
        %v4202 = vunpack.c.l.s4 1983009808
        %v4203 = vunpack.c.0.s8 %v4202
        %v4204 = vlaneseq
        %v4205 = vshrl.u32 %v4204, 7
        %v4206 = vsub.s32 %v4203, %v4205
        %v4207 = vrot.slane %v4199, %v4206
        %v4209 = vunpack.c.l.s4 1983009808
        %v4210 = vunpack.c.0.s8 %v4209
        %v4211 = vlaneseq
        %v4212 = vshrl.u32 %v4211, 7
        %v4213 = vsub.s32 %v4210, %v4212
        %v4214 = vrot.slane %v4200, %v4213
        %v4215 = vcombine.low %v4191, %v4207
        %v4216 = vcombine.high %v4191, %v4207
        %v4218 = vunpack.c.l.s4 1934713408
        %v4219 = vunpack.c.0.s8 %v4218
        %v4220 = vlaneseq
        %v4221 = vshrl.u32 %v4220, 7
        %v4222 = vsub.s32 %v4219, %v4221
        %v4223 = vrot.slane %v4215, %v4222
        %v4225 = vunpack.c.l.s4 1934713408
        %v4226 = vunpack.c.0.s8 %v4225
        %v4227 = vlaneseq
        %v4228 = vshrl.u32 %v4227, 7
        %v4229 = vsub.s32 %v4226, %v4228
        %v4230 = vrot.slane %v4216, %v4229
        %v4231 = vcombine.low %v4198, %v4214
        %v4232 = vcombine.high %v4198, %v4214
        %v4234 = vunpack.c.l.s4 1934713408
        %v4235 = vunpack.c.0.s8 %v4234
        %v4236 = vlaneseq
        %v4237 = vshrl.u32 %v4236, 7
        %v4238 = vsub.s32 %v4235, %v4237
        %v4239 = vrot.slane %v4231, %v4238
        %v4241 = vunpack.c.l.s4 1934713408
        %v4242 = vunpack.c.0.s8 %v4241
        %v4243 = vlaneseq
        %v4244 = vshrl.u32 %v4243, 7
        %v4245 = vsub.s32 %v4242, %v4244
        %v4246 = vrot.slane %v4232, %v4245
        %v4247 = vcombine.high %v4223, 0.0
        %v4248 = vcombine.high %v4230, 0.0
        %v4249 = vcombine.high %v4239, 0.0
        %v4250 = vcombine.high %v4246, 0.0
        %v4251 = vcombine.low %v4043, %v4045
        %v4252 = vcombine.high %v4043, %v4045
        %v4254 = vunpack.c.l.s4 1983009808
        %v4255 = vunpack.c.0.s8 %v4254
        %v4256 = vlaneseq
        %v4257 = vshrl.u32 %v4256, 7
        %v4258 = vsub.s32 %v4255, %v4257
        %v4259 = vrot.slane %v4251, %v4258
        %v4261 = vunpack.c.l.s4 1983009808
        %v4262 = vunpack.c.0.s8 %v4261
        %v4263 = vlaneseq
        %v4264 = vshrl.u32 %v4263, 7
        %v4265 = vsub.s32 %v4262, %v4264
        %v4266 = vrot.slane %v4252, %v4265
        %v4267 = vcombine.low %v4044, %v4046
        %v4268 = vcombine.high %v4044, %v4046
        %v4270 = vunpack.c.l.s4 1983009808
        %v4271 = vunpack.c.0.s8 %v4270
        %v4272 = vlaneseq
        %v4273 = vshrl.u32 %v4272, 7
        %v4274 = vsub.s32 %v4271, %v4273
        %v4275 = vrot.slane %v4267, %v4274
        %v4277 = vunpack.c.l.s4 1983009808
        %v4278 = vunpack.c.0.s8 %v4277
        %v4279 = vlaneseq
        %v4280 = vshrl.u32 %v4279, 7
        %v4281 = vsub.s32 %v4278, %v4280
        %v4282 = vrot.slane %v4268, %v4281
        %v4283 = vcombine.low %v4259, %v4275
        %v4284 = vcombine.high %v4259, %v4275
        %v4286 = vunpack.c.l.s4 1934713408
        %v4287 = vunpack.c.0.s8 %v4286
        %v4288 = vlaneseq
        %v4289 = vshrl.u32 %v4288, 7
        %v4290 = vsub.s32 %v4287, %v4289
        %v4291 = vrot.slane %v4283, %v4290
        %v4293 = vunpack.c.l.s4 1934713408
        %v4294 = vunpack.c.0.s8 %v4293
        %v4295 = vlaneseq
        %v4296 = vshrl.u32 %v4295, 7
        %v4297 = vsub.s32 %v4294, %v4296
        %v4298 = vrot.slane %v4284, %v4297
        %v4299 = vcombine.low %v4266, %v4282
        %v4300 = vcombine.high %v4266, %v4282
        %v4302 = vunpack.c.l.s4 1934713408
        %v4303 = vunpack.c.0.s8 %v4302
        %v4304 = vlaneseq
        %v4305 = vshrl.u32 %v4304, 7
        %v4306 = vsub.s32 %v4303, %v4305
        %v4307 = vrot.slane %v4299, %v4306
        %v4309 = vunpack.c.l.s4 1934713408
        %v4310 = vunpack.c.0.s8 %v4309
        %v4311 = vlaneseq
        %v4312 = vshrl.u32 %v4311, 7
        %v4313 = vsub.s32 %v4310, %v4312
        %v4314 = vrot.slane %v4300, %v4313
        %v4315 = vcombine.high %v4291, 0.0
        %v4316 = vcombine.high %v4298, 0.0
        %v4317 = vcombine.high %v4307, 0.0
        %v4318 = vcombine.high %v4314, 0.0
        %v4319 = vcombine.low %v4087, %v4094
        %v4321 = vunpack.c.l.s4 1983009808
        %v4322 = vunpack.c.0.s8 %v4321
        %v4323 = vlaneseq
        %v4324 = vshrl.u32 %v4323, 7
        %v4325 = vsub.s32 %v4322, %v4324
        %v4326 = vrot.slane %v4319, %v4325
        %v4327 = vcombine.low %v4111, %v4112
        %v4329 = vunpack.c.l.s4 1983009808
        %v4330 = vunpack.c.0.s8 %v4329
        %v4331 = vlaneseq
        %v4332 = vshrl.u32 %v4331, 7
        %v4333 = vsub.s32 %v4330, %v4332
        %v4334 = vrot.slane %v4327, %v4333
        %v4335 = vcombine.low %v4103, %v4110
        %v4337 = vunpack.c.l.s4 1983009808
        %v4338 = vunpack.c.0.s8 %v4337
        %v4339 = vlaneseq
        %v4340 = vshrl.u32 %v4339, 7
        %v4341 = vsub.s32 %v4338, %v4340
        %v4342 = vrot.slane %v4335, %v4341
        %v4343 = vcombine.low %v4113, %v4114
        %v4345 = vunpack.c.l.s4 1983009808
        %v4346 = vunpack.c.0.s8 %v4345
        %v4347 = vlaneseq
        %v4348 = vshrl.u32 %v4347, 7
        %v4349 = vsub.s32 %v4346, %v4348
        %v4350 = vrot.slane %v4343, %v4349
        %v4351 = vcombine.low %v4326, %v4334
        %v4352 = vcombine.high %v4326, %v4334
        %v4354 = vunpack.c.l.s4 1934713408
        %v4355 = vunpack.c.0.s8 %v4354
        %v4356 = vlaneseq
        %v4357 = vshrl.u32 %v4356, 7
        %v4358 = vsub.s32 %v4355, %v4357
        %v4359 = vrot.slane %v4351, %v4358
        %v4361 = vunpack.c.l.s4 1934713408
        %v4362 = vunpack.c.0.s8 %v4361
        %v4363 = vlaneseq
        %v4364 = vshrl.u32 %v4363, 7
        %v4365 = vsub.s32 %v4362, %v4364
        %v4366 = vrot.slane %v4352, %v4365
        %v4367 = vcombine.low %v4342, %v4350
        %v4368 = vcombine.high %v4342, %v4350
        %v4370 = vunpack.c.l.s4 1934713408
        %v4371 = vunpack.c.0.s8 %v4370
        %v4372 = vlaneseq
        %v4373 = vshrl.u32 %v4372, 7
        %v4374 = vsub.s32 %v4371, %v4373
        %v4375 = vrot.slane %v4367, %v4374
        %v4377 = vunpack.c.l.s4 1934713408
        %v4378 = vunpack.c.0.s8 %v4377
        %v4379 = vlaneseq
        %v4380 = vshrl.u32 %v4379, 7
        %v4381 = vsub.s32 %v4378, %v4380
        %v4382 = vrot.slane %v4368, %v4381
        %v4383 = vcombine.low %v4359, %v4375
        %v4384 = vcombine.high %v4359, %v4375
        %v4385 = vcombine.low %v4366, %v4382
        %v4386 = vcombine.high %v4366, %v4382
        %v4387 = vcombine.low %v4155, %v4162
        %v4389 = vunpack.c.l.s4 1983009808
        %v4390 = vunpack.c.0.s8 %v4389
        %v4391 = vlaneseq
        %v4392 = vshrl.u32 %v4391, 7
        %v4393 = vsub.s32 %v4390, %v4392
        %v4394 = vrot.slane %v4387, %v4393
        %v4395 = vcombine.low %v4179, %v4180
        %v4397 = vunpack.c.l.s4 1983009808
        %v4398 = vunpack.c.0.s8 %v4397
        %v4399 = vlaneseq
        %v4400 = vshrl.u32 %v4399, 7
        %v4401 = vsub.s32 %v4398, %v4400
        %v4402 = vrot.slane %v4395, %v4401
        %v4403 = vcombine.low %v4171, %v4178
        %v4405 = vunpack.c.l.s4 1983009808
        %v4406 = vunpack.c.0.s8 %v4405
        %v4407 = vlaneseq
        %v4408 = vshrl.u32 %v4407, 7
        %v4409 = vsub.s32 %v4406, %v4408
        %v4410 = vrot.slane %v4403, %v4409
        %v4411 = vcombine.low %v4181, %v4182
        %v4413 = vunpack.c.l.s4 1983009808
        %v4414 = vunpack.c.0.s8 %v4413
        %v4415 = vlaneseq
        %v4416 = vshrl.u32 %v4415, 7
        %v4417 = vsub.s32 %v4414, %v4416
        %v4418 = vrot.slane %v4411, %v4417
        %v4419 = vcombine.low %v4394, %v4402
        %v4420 = vcombine.high %v4394, %v4402
        %v4422 = vunpack.c.l.s4 1934713408
        %v4423 = vunpack.c.0.s8 %v4422
        %v4424 = vlaneseq
        %v4425 = vshrl.u32 %v4424, 7
        %v4426 = vsub.s32 %v4423, %v4425
        %v4427 = vrot.slane %v4419, %v4426
        %v4429 = vunpack.c.l.s4 1934713408
        %v4430 = vunpack.c.0.s8 %v4429
        %v4431 = vlaneseq
        %v4432 = vshrl.u32 %v4431, 7
        %v4433 = vsub.s32 %v4430, %v4432
        %v4434 = vrot.slane %v4420, %v4433
        %v4435 = vcombine.low %v4410, %v4418
        %v4436 = vcombine.high %v4410, %v4418
        %v4438 = vunpack.c.l.s4 1934713408
        %v4439 = vunpack.c.0.s8 %v4438
        %v4440 = vlaneseq
        %v4441 = vshrl.u32 %v4440, 7
        %v4442 = vsub.s32 %v4439, %v4441
        %v4443 = vrot.slane %v4435, %v4442
        %v4445 = vunpack.c.l.s4 1934713408
        %v4446 = vunpack.c.0.s8 %v4445
        %v4447 = vlaneseq
        %v4448 = vshrl.u32 %v4447, 7
        %v4449 = vsub.s32 %v4446, %v4448
        %v4450 = vrot.slane %v4436, %v4449
        %v4451 = vcombine.low %v4427, %v4443
        %v4452 = vcombine.high %v4427, %v4443
        %v4453 = vcombine.low %v4434, %v4450
        %v4454 = vcombine.high %v4434, %v4450
        %v4455 = vcombine.low %v4223, %v4230
        %v4457 = vunpack.c.l.s4 1983009808
        %v4458 = vunpack.c.0.s8 %v4457
        %v4459 = vlaneseq
        %v4460 = vshrl.u32 %v4459, 7
        %v4461 = vsub.s32 %v4458, %v4460
        %v4462 = vrot.slane %v4455, %v4461
        %v4463 = vcombine.low %v4247, %v4248
        %v4465 = vunpack.c.l.s4 1983009808
        %v4466 = vunpack.c.0.s8 %v4465
        %v4467 = vlaneseq
        %v4468 = vshrl.u32 %v4467, 7
        %v4469 = vsub.s32 %v4466, %v4468
        %v4470 = vrot.slane %v4463, %v4469
        %v4471 = vcombine.low %v4239, %v4246
        %v4473 = vunpack.c.l.s4 1983009808
        %v4474 = vunpack.c.0.s8 %v4473
        %v4475 = vlaneseq
        %v4476 = vshrl.u32 %v4475, 7
        %v4477 = vsub.s32 %v4474, %v4476
        %v4478 = vrot.slane %v4471, %v4477
        %v4479 = vcombine.low %v4249, %v4250
        %v4481 = vunpack.c.l.s4 1983009808
        %v4482 = vunpack.c.0.s8 %v4481
        %v4483 = vlaneseq
        %v4484 = vshrl.u32 %v4483, 7
        %v4485 = vsub.s32 %v4482, %v4484
        %v4486 = vrot.slane %v4479, %v4485
        %v4487 = vcombine.low %v4462, %v4470
        %v4488 = vcombine.high %v4462, %v4470
        %v4490 = vunpack.c.l.s4 1934713408
        %v4491 = vunpack.c.0.s8 %v4490
        %v4492 = vlaneseq
        %v4493 = vshrl.u32 %v4492, 7
        %v4494 = vsub.s32 %v4491, %v4493
        %v4495 = vrot.slane %v4487, %v4494
        %v4497 = vunpack.c.l.s4 1934713408
        %v4498 = vunpack.c.0.s8 %v4497
        %v4499 = vlaneseq
        %v4500 = vshrl.u32 %v4499, 7
        %v4501 = vsub.s32 %v4498, %v4500
        %v4502 = vrot.slane %v4488, %v4501
        %v4503 = vcombine.low %v4478, %v4486
        %v4504 = vcombine.high %v4478, %v4486
        %v4506 = vunpack.c.l.s4 1934713408
        %v4507 = vunpack.c.0.s8 %v4506
        %v4508 = vlaneseq
        %v4509 = vshrl.u32 %v4508, 7
        %v4510 = vsub.s32 %v4507, %v4509
        %v4511 = vrot.slane %v4503, %v4510
        %v4513 = vunpack.c.l.s4 1934713408
        %v4514 = vunpack.c.0.s8 %v4513
        %v4515 = vlaneseq
        %v4516 = vshrl.u32 %v4515, 7
        %v4517 = vsub.s32 %v4514, %v4516
        %v4518 = vrot.slane %v4504, %v4517
        %v4519 = vcombine.low %v4495, %v4511
        %v4520 = vcombine.high %v4495, %v4511
        %v4521 = vcombine.low %v4502, %v4518
        %v4522 = vcombine.high %v4502, %v4518
        %v4523 = vcombine.low %v4291, %v4298
        %v4525 = vunpack.c.l.s4 1983009808
        %v4526 = vunpack.c.0.s8 %v4525
        %v4527 = vlaneseq
        %v4528 = vshrl.u32 %v4527, 7
        %v4529 = vsub.s32 %v4526, %v4528
        %v4530 = vrot.slane %v4523, %v4529
        %v4531 = vcombine.low %v4315, %v4316
        %v4533 = vunpack.c.l.s4 1983009808
        %v4534 = vunpack.c.0.s8 %v4533
        %v4535 = vlaneseq
        %v4536 = vshrl.u32 %v4535, 7
        %v4537 = vsub.s32 %v4534, %v4536
        %v4538 = vrot.slane %v4531, %v4537
        %v4539 = vcombine.low %v4307, %v4314
        %v4541 = vunpack.c.l.s4 1983009808
        %v4542 = vunpack.c.0.s8 %v4541
        %v4543 = vlaneseq
        %v4544 = vshrl.u32 %v4543, 7
        %v4545 = vsub.s32 %v4542, %v4544
        %v4546 = vrot.slane %v4539, %v4545
        %v4547 = vcombine.low %v4317, %v4318
        %v4549 = vunpack.c.l.s4 1983009808
        %v4550 = vunpack.c.0.s8 %v4549
        %v4551 = vlaneseq
        %v4552 = vshrl.u32 %v4551, 7
        %v4553 = vsub.s32 %v4550, %v4552
        %v4554 = vrot.slane %v4547, %v4553
        %v4555 = vcombine.low %v4530, %v4538
        %v4556 = vcombine.high %v4530, %v4538
        %v4558 = vunpack.c.l.s4 1934713408
        %v4559 = vunpack.c.0.s8 %v4558
        %v4560 = vlaneseq
        %v4561 = vshrl.u32 %v4560, 7
        %v4562 = vsub.s32 %v4559, %v4561
        %v4563 = vrot.slane %v4555, %v4562
        %v4565 = vunpack.c.l.s4 1934713408
        %v4566 = vunpack.c.0.s8 %v4565
        %v4567 = vlaneseq
        %v4568 = vshrl.u32 %v4567, 7
        %v4569 = vsub.s32 %v4566, %v4568
        %v4570 = vrot.slane %v4556, %v4569
        %v4571 = vcombine.low %v4546, %v4554
        %v4572 = vcombine.high %v4546, %v4554
        %v4574 = vunpack.c.l.s4 1934713408
        %v4575 = vunpack.c.0.s8 %v4574
        %v4576 = vlaneseq
        %v4577 = vshrl.u32 %v4576, 7
        %v4578 = vsub.s32 %v4575, %v4577
        %v4579 = vrot.slane %v4571, %v4578
        %v4581 = vunpack.c.l.s4 1934713408
        %v4582 = vunpack.c.0.s8 %v4581
        %v4583 = vlaneseq
        %v4584 = vshrl.u32 %v4583, 7
        %v4585 = vsub.s32 %v4582, %v4584
        %v4586 = vrot.slane %v4572, %v4585
        %v4587 = vcombine.low %v4563, %v4579
        %v4588 = vcombine.high %v4563, %v4579
        %v4589 = vcombine.low %v4570, %v4586
        %v4590 = vcombine.high %v4570, %v4586
        %4595 = vrot.lane.b32.xlu0 %v4384, 16
        %v4596 = vpop.permute.xlu0 %4595
        %4597 = vrot.lane.b32.xlu0 %v4452, 16
        %v4598 = vpop.permute.xlu0 %4597
        %4599 = vrot.lane.b32.xlu0 %v4520, 16
        %v4600 = vpop.permute.xlu0 %4599
        %4601 = vrot.lane.b32.xlu0 %v4588, 16
        %v4602 = vpop.permute.xlu0 %4601
        %4611 = vrot.lane.b32.xlu0 %v4385, 32
        %v4612 = vpop.permute.xlu0 %4611
        %4613 = vrot.lane.b32.xlu0 %v4453, 32
        %v4614 = vpop.permute.xlu0 %4613
        %4615 = vrot.lane.b32.xlu0 %v4521, 32
        %v4616 = vpop.permute.xlu0 %4615
        %4617 = vrot.lane.b32.xlu0 %v4589, 32
        %v4618 = vpop.permute.xlu0 %4617
        %4627 = vrot.lane.b32.xlu0 %v4386, 48
        %v4628 = vpop.permute.xlu0 %4627
        %4629 = vrot.lane.b32.xlu0 %v4454, 48
        %v4630 = vpop.permute.xlu0 %4629
        %4631 = vrot.lane.b32.xlu0 %v4522, 48
        %v4632 = vpop.permute.xlu0 %4631
        %4633 = vrot.lane.b32.xlu0 %v4590, 48
        %v4634 = vpop.permute.xlu0 %4633
        %v4639 = vsel %vm2380, %v4383, %v4596
        %v4640 = vsel %vm2380, %v4451, %v4598
        %v4641 = vsel %vm2380, %v4519, %v4600
        %v4642 = vsel %vm2380, %v4587, %v4602
        %vm4643 = vcmask 261120
        %v4644 = vsel %vm4643, %v4639, %v4612
        %v4645 = vsel %vm4643, %v4640, %v4614
        %v4646 = vsel %vm4643, %v4641, %v4616
        %v4647 = vsel %vm4643, %v4642, %v4618
        %vm4648 = vcmask 392192
        %v4649 = vsel %vm4648, %v4644, %v4628
        %v4650 = vsel %vm4648, %v4645, %v4630
        %v4651 = vsel %vm4648, %v4646, %v4632
        %v4652 = vsel %vm4648, %v4647, %v4634
        %v4653 = vpack.c.bf16 %v4650, %v4649
        %v4654 = vpack.c.bf16 %v4652, %v4651
        %v4655 = vld [vmem:[#allocation10] sm:$0xf]
        %v4656 = vld [vmem:[#allocation10 + $0x4] sm:$0xf]
        %v4657 = vld [vmem:[#allocation10 + $0x8] sm:$0xf]
        %v4658 = vld [vmem:[#allocation10 + $0xc] sm:$0xf]
        %v4659 = vld [vmem:[#allocation10 + $0x10] sm:$0xf]
        %v4660 = vld [vmem:[#allocation10 + $0x14] sm:$0xf]
        %v4661 = vld [vmem:[#allocation10 + $0x18] sm:$0xf]
        %v4662 = vld [vmem:[#allocation10 + $0x1c] sm:$0xf]
        %v4663 = vld [vmem:[%s8] sm:$0x1]
        %v4664 = vunpack.c.l.bf16 %v4663
        %v4665 = vlaneseq
        %v4666 = vshrl.u32 %v4665, 7
        %v4667 = vsub.s32 0, %v4666
        %v4668 = vrot.slane %v4664, %v4667
        %v4677 = vunpack.c.l.b16 %v4655
        %v4678 = vunpack.c.l.b16 %v4656
        %v4679 = vunpack.c.l.b16 %v4657
        %v4680 = vunpack.c.l.b16 %v4658
        %v4681 = vunpack.c.l.b16 %v4659
        %v4682 = vunpack.c.l.b16 %v4660
        %v4683 = vunpack.c.l.b16 %v4661
        %v4684 = vunpack.c.l.b16 %v4662
        %v4685 = vpack.c.b16 %v4678, %v4677
        %v4686 = vpack.c.b16 %v4680, %v4679
        %v4687 = vpack.c.b16 %v4682, %v4681
        %v4688 = vpack.c.b16 %v4684, %v4683
        %v4694 = vsel %vm464, %v4653, 0
        %v4697 = vsel %vm464, %v4654, 0
        %4699 = vmatprep.subr.bf16.mxu0 0
        %4700 = vmatpush1.bf16.msra.mxu0 0
        %4701 = vmatprep.subr.bf16.mxu0 0
        %4702 = vmatpush1.bf16.msra.mxu0 0
        %4703 = vmatprep.subr.bf16.mxu0 0
        %4704 = vmatpush1.bf16.msra.mxu0 0
        %4705 = vmatprep.subr.bf16.mxu0 0
        %4706 = vmatpush1.bf16.msra.mxu0 0
        %4707 = vmatprep.subr.bf16.mxu0 0
        %4708 = vmatpush1.bf16.msra.mxu0 %v4688
        %4709 = vmatprep.subr.bf16.mxu0 0
        %4710 = vmatpush1.bf16.msra.mxu0 %v4687
        %4711 = vmatprep.subr.bf16.mxu0 0
        %4712 = vmatpush1.bf16.msra.mxu0 %v4686
        %4713 = vmatprep.subr.bf16.mxu0 0
        %4714 = vmatpush1.bf16.msra.mxu0 %v4685
        %4715 = vmatprep.subr.bf16.mxu0 0
        %4716 = vmatpush2.bf16.msra.mxu0 0
        %4717 = vmatprep.subr.bf16.mxu0 0
        %4718 = vmatpush2.bf16.msra.mxu0 0
        %4719 = vmatprep.subr.bf16.mxu0 0
        %4720 = vmatpush2.bf16.msra.mxu0 0
        %4721 = vmatprep.subr.bf16.mxu0 0
        %4722 = vmatpush2.bf16.msra.mxu0 0
        %4723 = vmatprep.subr.bf16.mxu0 0
        %4724 = vmatpush2.bf16.msra.mxu0 0
        %4725 = vmatprep.subr.bf16.mxu0 0
        %4726 = vmatpush2.bf16.msra.mxu0 0
        %4727 = vmatprep.subr.bf16.mxu0 0
        %4728 = vmatpush2.bf16.msra.mxu0 0
        %4729 = vmatprep.subr.bf16.mxu0 0
        %4730 = vmatpush2.bf16.msra.mxu0 0
        %4731 = vmatprep.mubr.bf16.mxu0 0
        %4732 = vmatmul.mubr.bf16.gmra.mxu0 %v4694
        %v4733 = vpop.f32.mrf.mxu0
        %v4734 = vadd.f32 %v4668, %v4733
        %v4735 = vpop.f32.mrf.mxu0
        %v4736 = vpop.f32.mrf.mxu0
        %v4737 = vadd.f32 %v4668, %v4736
        %v4738 = vpop.f32.mrf.mxu0
        %4739 = vmatprep.mubr.bf16.mxu0 0
        %4740 = vmatmul.mubr.bf16.gmra.mxu0 %v4697
        %v4741 = vpop.f32.mrf.mxu0
        %v4742 = vadd.f32 %v4668, %v4741
        %v4743 = vpop.f32.mrf.mxu0
        %v4744 = vpop.f32.mrf.mxu0
        %v4745 = vadd.f32 %v4668, %v4744
        %v4746 = vpop.f32.mrf.mxu0
        %4747 = vdwg.mxu0
        %v4748 = vpack.c.bf16 %v4737, %v4734
        %v4749 = vpack.c.bf16 %v4745, %v4742
        %v4752 = vunpack.c.l.b16 %v4748
        %v4753 = vunpack.c.h.b16 %v4748
        %v4754 = vunpack.c.l.b16 %v4749
        %v4755 = vunpack.c.h.b16 %v4749
        %v4756 = vpack.c.b16 %v4752, %v4752
        %v4757 = vpack.c.b16 %v4753, %v4753
        %v4758 = vpack.c.b16 %v4754, %v4754
        %v4759 = vpack.c.b16 %v4755, %v4755
        %4764 = vst [vmem:[%s408] sm:$0xf] %v4756
        %4765 = vst [vmem:[%s408 + $0x4] sm:$0xf] %v4757
        %4766 = vst [vmem:[%s408 + $0x8] sm:$0xf] %v4758
        %4767 = vst [vmem:[%s408 + $0xc] sm:$0xf] %v4759
        %s4768 = sand.u32 %s230, 1
        %s4769 = scalar_lea.sflag [#allocation4], %s4768
        %s4770 = sand.u32 %s230, 1
        %s4771 = smul.addr %s4770, 16
        %s4772 = scalar_lea.vmem [#allocation11], %s4771
        // Predicated region
        $region77: #{tpu_custom_call.1} parent=55 // pred_check
          %p4773 = pneg %p240
        $region78: #{tpu_custom_call.1} parent=55 // pred_check_branch
          %4775 = sbr.rel (%p4773) target = $region80
        $region79: #{tpu_custom_call.1} parent=55 // pred_region
          %s4776 = smul.u32 4, %s28
          %s4778 = ssub.s32 256, 256
          %4779 = vsyncadd %s4769, %s4778
          %s4780 = smul.addr %s4776, 64
          %s4781 = scalar_lea.hbm %s9, %s4780
          %s4782 = sshll.u32 %s4772, 4
          %s4783 = int_to_ptr.vmem [resolvable:$true] %s4782
          %4788 = dma.vmem_to_hbm [thread:$0]  %s4783, 256, %s4781, %s4769, 64, 64, 4
        $region80: #{tpu_custom_call.1} parent=55 // pred_fallthru
          _
      $region56: #{tpu_custom_call.1} parent=5 // pred_fallthru
        _
      %p4789 = scmp.le.s32.totalorder 2, %s23
      // Predicated region
      $region81: #{tpu_custom_call.1} parent=5 // pred_check
        %p4790 = pneg %p4789
      $region82: #{tpu_custom_call.1} parent=5 // pred_check_branch
        %4792 = sbr.rel (%p4790) target = $region84
      $region83: #{tpu_custom_call.1} parent=5 // pred_region
        %s4793 = ssub.s32 %s23, 2
        // Predicated region
        $region85: #{tpu_custom_call.1} parent=83 // pred_check
          %p4794 = pneg %p246
        $region86: #{tpu_custom_call.1} parent=83 // pred_check_branch
          %4796 = sbr.rel (%p4794) target = $region88
        $region87: #{tpu_custom_call.1} parent=83 // pred_region
          %s4797 = sand.u32 %s231, 1
          %s4798 = scalar_lea.sflag [#allocation4], %s4797
          %s4799 = sand.u32 %s231, 1
          %s4800 = smul.addr %s4799, 16
          %s4801 = scalar_lea.vmem [#allocation11], %s4800
          %4802 = dma.done %s4798, 256
        $region88: #{tpu_custom_call.1} parent=83 // pred_fallthru
          _
      $region84: #{tpu_custom_call.1} parent=5 // pred_fallthru
        _
    $region6: #{tpu_custom_call.1} parent=1 // loop_footer
      %s27 = sadd.s32 1, %s23
    $region7: #{tpu_custom_call.1} parent=1 // loop_footer_branch
      %22 = sbr.rel target = $region3
    $region8: #{tpu_custom_call.1} parent=1 // loop_exit
      _
    %4803 = vsyncpa [#allocation3], 1
    %s4804 = scalar_lea.sflag [#allocation3], 1
    %4805 = vsyncpa %s4804, 1
    %4806 = vsyncpa [#allocation6], 1
    %4807 = vsyncpa [#allocation9], 1
    %4808 = vsyncpa [#allocation4], 1
    %s4809 = scalar_lea.sflag [#allocation4], 1
    %4810 = vsyncpa %s4809, 1

</llo_original>
